<compile_context>
chip_gen: v5e
topology: v5e:2x2
jax: 0.10.0
libtpu: 0.0.40
codegen_flags: <defaults>
</compile_context>

<pallas_src>
import functools

import jax
import jax.numpy as jnp
from jax import lax
from jax.experimental import pallas as pl
from jax.experimental.pallas import tpu as pltpu


def _round_up(x, m):
    return (x + m - 1) // m * m


def _make_basic_block_kernel(H, W, P, Pp):
    """Fused conv3x3 -> bn -> relu -> conv3x3 -> bn -> +identity -> relu."""
    M = H * W

    def kernel(x_ref, w1_ref, b1_ref, w2_ref, b2_ref, out_ref):
        cdt = w1_ref.dtype              # matmul operand dtype (bf16 default)
        x = x_ref[...]                  # (M, Cin) f32 -- also the residual

        # In-kernel border-validity masks (destination-indexed).
        row = lax.broadcasted_iota(jnp.int32, (M, 1), 0)   # flattened (h, w)
        col = row % W
        ok_up = row >= W                # source image-row h-1 exists
        ok_dn = row < M - W             # source image-row h+1 exists
        ok_lf = col >= 1                # source column w-1 exists
        ok_rt = col < W - 1             # source column w+1 exists

        def dy_concat(a):
            """[a(h-1) | a(h) | a(h+1)] along lanes, zero outside the image."""
            up = jnp.where(ok_up, pltpu.roll(a, W, axis=0), 0.0)      # a[r-W]
            dn = jnp.where(ok_dn, pltpu.roll(a, M - W, axis=0), 0.0)  # a[r+W]
            return jnp.concatenate([up, a, dn], axis=1)

        def dx_shift_add(z):
            """z: (M, 3*Pp) f32, dx-major groups -> (M, Pp) conv result."""
            zl = z[:, 0 * Pp:1 * Pp]    # dx = -1 partials (lane-aligned slice)
            zc = z[:, 1 * Pp:2 * Pp]    # dx =  0 partials
            zr = z[:, 2 * Pp:3 * Pp]    # dx = +1 partials
            lf = jnp.where(ok_lf, pltpu.roll(zl, 1, axis=0), 0.0)     # z[r-1]
            rt = jnp.where(ok_rt, pltpu.roll(zr, M - 1, axis=0), 0.0) # z[r+1]
            return lf + zc + rt

        # conv1 (bn1 scale folded into w1) -> bias -> ReLU.
        z1 = jnp.dot(dy_concat(x).astype(cdt), w1_ref[...],
                     preferred_element_type=jnp.float32)        # (M, 3*Pp)
        y = jnp.maximum(dx_shift_add(z1) + b1_ref[...], 0.0)    # (M, Pp)

        # conv2 (bn2 scale folded into w2) -> bias -> residual -> ReLU.
        z2 = jnp.dot(dy_concat(y).astype(cdt), w2_ref[...],
                     preferred_element_type=jnp.float32)        # (M, 3*Pp)
        out = dx_shift_add(z2) + b2_ref[...]                    # (M, Pp)
        if Pp != P:                     # drop zero-padded lanes (static)
            out = out[:, :P]
        out_ref[...] = jnp.maximum(out + x, 0.0).astype(out_ref.dtype)

    return kernel


def _vmem_limit_bytes(M, Cin, P, Pp, w_itemsize):
    """Rough per-grid-step working-set estimate, with headroom."""
    f32 = 4
    io_blocks = 2 * M * (Cin + P) * f32                       # x/out, 2-buffered
    weights = (9 * Cin * Pp + 9 * Pp * Pp) * w_itemsize + 2 * Pp * f32
    temps = (M * (3 * Cin + 3 * Pp) * (f32 + w_itemsize)      # x3/y3 + casts
             + M * 6 * Pp * f32                               # z1, z2
             + M * 2 * Pp * f32)                              # y, conv tails
    est = int(1.5 * (io_blocks + weights + temps))
    return int(min(max(est, 32 * 1024 * 1024), 64 * 1024 * 1024))


@functools.partial(jax.jit, static_argnames=("eps", "compute_dtype"))
def basic_block_pallas(x_nchw, params, eps=1e-5, compute_dtype=jnp.bfloat16):
    """BasicBlock.forward. x_nchw: (N, C, H, W) f32 -> (N, C, H, W) f32."""
    N, Cin, H, W = x_nchw.shape
    P = params["w1"].shape[0]
    if params["w1"].shape != (P, Cin, 3, 3) or params["w2"].shape != (P, P, 3, 3):
        raise ValueError("expected 3x3 conv weights in OIHW layout")
    if Cin != P:
        raise ValueError("fused BasicBlock kernel assumes inplanes == planes, "
                         "stride == 1 and downsample == None")
    M = H * W
    cdt = jnp.dtype(compute_dtype)
    Pp = _round_up(P, 128)              # lane-aligned per-dx group width

    # NCHW -> (N, H*W, C): channels on the lane dim, spatial on sublanes.
    x = jnp.transpose(x_nchw, (0, 2, 3, 1)).reshape(N, M, Cin)
    x = x.astype(jnp.float32)

    # Fold eval-mode BatchNorm: scale into conv weights, bias kept separate.
    s1 = params["g1"] / jnp.sqrt(params["rv1"] + eps)
    s2 = params["g2"] / jnp.sqrt(params["rv2"] + eps)
    b1 = jnp.pad(params["b1"] - params["rm1"] * s1, (0, Pp - P))
    b2 = jnp.pad(params["b2"] - params["rm2"] * s2, (0, Pp - P))
    b1 = b1.reshape(1, Pp).astype(jnp.float32)
    b2 = b2.reshape(1, Pp).astype(jnp.float32)

    # OIHW -> (ky, in, kx, out): dy folded into K (rows), dx-major column
    # groups, each group zero-padded to Pp lanes; BN-scaled.
    w1 = jnp.transpose(params["w1"], (2, 1, 3, 0)) * s1        # (3, Cin, 3, P)
    w2 = jnp.transpose(params["w2"], (2, 1, 3, 0)) * s2        # (3, P,   3, P)
    w1 = jnp.pad(w1, ((0, 0), (0, 0), (0, 0), (0, Pp - P)))
    w2 = jnp.pad(w2, ((0, 0), (0, Pp - P), (0, 0), (0, Pp - P)))
    w1 = w1.reshape(3 * Cin, 3 * Pp).astype(cdt)
    w2 = w2.reshape(3 * Pp, 3 * Pp).astype(cdt)

    flops = 2 * N * M * (9 * Cin * Pp + 9 * Pp * Pp)
    bytes_accessed = (N * M * (Cin + P) * 4                    # x in + out
                      + (9 * Cin * Pp + 9 * Pp * Pp) * cdt.itemsize
                      + 2 * Pp * 4)
    cost = pl.CostEstimate(flops=flops, transcendentals=0,
                           bytes_accessed=bytes_accessed)

    kernel = _make_basic_block_kernel(H, W, P, Pp)

    out = pl.pallas_call(
        kernel,
        out_shape=jax.ShapeDtypeStruct((N, M, P), jnp.float32),
        grid_spec=pltpu.PrefetchScalarGridSpec(
            num_scalar_prefetch=0,
            grid=(N,),
            in_specs=[
                pl.BlockSpec((None, M, Cin), lambda n: (n, 0, 0)),     # x
                pl.BlockSpec((3 * Cin, 3 * Pp), lambda n: (0, 0),
                             pipeline_mode=pl.Buffered(1)),            # w1
                pl.BlockSpec((1, Pp), lambda n: (0, 0),
                             pipeline_mode=pl.Buffered(1)),            # b1
                pl.BlockSpec((3 * Pp, 3 * Pp), lambda n: (0, 0),
                             pipeline_mode=pl.Buffered(1)),            # w2
                pl.BlockSpec((1, Pp), lambda n: (0, 0),
                             pipeline_mode=pl.Buffered(1)),            # b2
            ],
            out_specs=pl.BlockSpec((None, M, P), lambda n: (n, 0, 0)),
        ),
        compiler_params=pltpu.CompilerParams(
            dimension_semantics=("parallel",),
            vmem_limit_bytes=_vmem_limit_bytes(M, Cin, P, Pp, cdt.itemsize)),
        cost_estimate=cost,
    )(x, w1, b1, w2, b2)

    return jnp.transpose(out.reshape(N, H, W, P), (0, 3, 1, 2))     # NCHW


def basic_block_reference(x_nchw, params, eps=1e-5):
    """Pure-JAX NCHW reference mirroring the PyTorch forward (eval-mode BN)."""

    def conv(x, w):
        return lax.conv_general_dilated(
            x, w, window_strides=(1, 1), padding=((1, 1), (1, 1)),
            dimension_numbers=("NCHW", "OIHW", "NCHW"))

    def bn(x, g, b, rm, rv):
        inv = g / jnp.sqrt(rv + eps)
        return (x - rm[None, :, None, None]) * inv[None, :, None, None] \
            + b[None, :, None, None]

    out = jax.nn.relu(bn(conv(x_nchw, params["w1"]),
                         params["g1"], params["b1"],
                         params["rm1"], params["rv1"]))
    out = bn(conv(out, params["w2"]),
             params["g2"], params["b2"], params["rm2"], params["rv2"])
    return jax.nn.relu(out + x_nchw)


def init_params(key, inplanes, planes):
    ks = jax.random.split(key, 8)
    fan1 = inplanes * 9
    fan2 = planes * 9
    return {
        # conv weights in PyTorch OIHW layout
        "w1": jax.random.normal(ks[0], (planes, inplanes, 3, 3), jnp.float32)
              / jnp.sqrt(fan1),
        "w2": jax.random.normal(ks[1], (planes, planes, 3, 3), jnp.float32)
              / jnp.sqrt(fan2),
        # bn1
        "g1": 1.0 + 0.1 * jax.random.normal(ks[2], (planes,), jnp.float32),
        "b1": 0.1 * jax.random.normal(ks[3], (planes,), jnp.float32),
        "rm1": 0.1 * jax.random.normal(ks[4], (planes,), jnp.float32),
        "rv1": 1.0 + 0.1 * jnp.abs(jax.random.normal(ks[5], (planes,),
                                                     jnp.float32)),
        # bn2
        "g2": 1.0 + 0.1 * jax.random.normal(ks[6], (planes,), jnp.float32),
        "b2": 0.1 * jax.random.normal(ks[7], (planes,), jnp.float32),
        "rm2": jnp.zeros((planes,), jnp.float32),
        "rv2": jnp.ones((planes,), jnp.float32),
    }


if __name__ == "__main__":
    key = jax.random.PRNGKey(0)
    k_x, k_p = jax.random.split(key)

    N, C, H, W = 2, 4, 16, 16          # inplanes == planes (no downsample)
    x = jax.random.normal(k_x, (N, C, H, W), jnp.float32)
    params = init_params(k_p, inplanes=C, planes=C)

    ref = basic_block_reference(x, params)

    # Default path: bf16 MXU operands, f32 accumulation -> loose tolerance.
    out = jax.block_until_ready(basic_block_pallas(x, params))
    assert out.shape == ref.shape == (N, C, H, W)
    assert jnp.allclose(out, ref, atol=2e-1, rtol=1e-1), (
        "Pallas BasicBlock (bf16 operands) output mismatch vs reference")

    # f32 operand path: tight(er)-tolerance validation.
    out_f32 = jax.block_until_ready(
        basic_block_pallas(x, params, compute_dtype=jnp.float32))
    assert jnp.allclose(out_f32, ref, atol=1e-3, rtol=1e-3), (
        "Pallas BasicBlock (f32) output mismatch vs reference")

    print("KERNEL_OK")
</pallas_src>

<mosaic_0001>
module attributes {stable_mosaic.version = 11 : i64} {
  func.func @kernel(%arg0: i32, %arg1: memref<1x256x4xf32, #tpu.memory_space<vmem>>, %arg2: memref<12x384xbf16, #tpu.memory_space<vmem>>, %arg3: memref<1x128xf32, #tpu.memory_space<vmem>>, %arg4: memref<384x384xbf16, #tpu.memory_space<vmem>>, %arg5: memref<1x128xf32, #tpu.memory_space<vmem>>, %arg6: memref<1x256x4xf32, #tpu.memory_space<vmem>>) attributes {dimension_semantics = [#tpu.dimension_semantics<parallel>], iteration_bounds = array<i64: 2>, scalar_prefetch = 0 : i64, scratch_operands = 0 : i64, tpu.core_type = #tpu.core_type<tc>, window_params = [{transform_indices = @transform_0, window_bounds = array<i64: 1, 256, 4>}, {pipeline_mode = #tpu.pipeline_mode<synchronous>, transform_indices = @transform_1, window_bounds = array<i64: 12, 384>}, {pipeline_mode = #tpu.pipeline_mode<synchronous>, transform_indices = @transform_2, window_bounds = array<i64: 1, 128>}, {pipeline_mode = #tpu.pipeline_mode<synchronous>, transform_indices = @transform_3, window_bounds = array<i64: 384, 384>}, {pipeline_mode = #tpu.pipeline_mode<synchronous>, transform_indices = @transform_4, window_bounds = array<i64: 1, 128>}, {transform_indices = @transform_5, window_bounds = array<i64: 1, 256, 4>}]} {
    %c0 = arith.constant 0 : index
    %c0_0 = arith.constant 0 : index
    %c0_1 = arith.constant 0 : index
    %0 = vector.load %arg1[%c0, %c0_0, %c0_1] : memref<1x256x4xf32, #tpu.memory_space<vmem>>, vector<1x256x4xf32>
    %1 = vector.shape_cast %0 : vector<1x256x4xf32> to vector<256x4xf32>
    %2 = tpu.iota {dimensions = array<i32: 0>} : vector<256x1xi32>
    %c16_i32 = arith.constant 16 : i32
    %c0_i32 = arith.constant 0 : i32
    %3 = arith.cmpi eq, %c16_i32, %c0_i32 : i32
    %c1_i32 = arith.constant 1 : i32
    %4 = arith.select %3, %c1_i32, %c16_i32 : i32
    %5 = vector.broadcast %4 : i32 to vector<256x1xi32>
    %6 = arith.remsi %2, %5 : vector<256x1xi32>
    %c0_i32_2 = arith.constant 0 : i32
    %7 = vector.broadcast %c0_i32_2 : i32 to vector<256x1xi32>
    %8 = arith.cmpi ne, %6, %7 : vector<256x1xi32>
    %c0_i32_3 = arith.constant 0 : i32
    %9 = vector.broadcast %c0_i32_3 : i32 to vector<256x1xi32>
    %10 = arith.cmpi slt, %6, %9 : vector<256x1xi32>
    %c0_i32_4 = arith.constant 0 : i32
    %11 = arith.cmpi slt, %4, %c0_i32_4 : i32
    %12 = vector.broadcast %11 : i1 to vector<256x1xi1>
    %13 = vector.broadcast %12 : vector<256x1xi1> to vector<256x1xi1>
    %14 = arith.xori %10, %13 : vector<256x1xi1>
    %15 = arith.andi %14, %8 : vector<256x1xi1>
    %16 = vector.broadcast %4 : i32 to vector<256x1xi32>
    %17 = arith.addi %6, %16 : vector<256x1xi32>
    %18 = arith.select %15, %17, %6 : vector<256x1xi1>, vector<256x1xi32>
    %c16_i32_5 = arith.constant 16 : i32
    %19 = vector.broadcast %c16_i32_5 : i32 to vector<256x1xi32>
    %20 = arith.cmpi sge, %2, %19 : vector<256x1xi32>
    %c240_i32 = arith.constant 240 : i32
    %21 = vector.broadcast %c240_i32 : i32 to vector<256x1xi32>
    %22 = arith.cmpi slt, %2, %21 : vector<256x1xi32>
    %c1_i32_6 = arith.constant 1 : i32
    %23 = vector.broadcast %c1_i32_6 : i32 to vector<256x1xi32>
    %24 = arith.cmpi sge, %18, %23 : vector<256x1xi32>
    %c15_i32 = arith.constant 15 : i32
    %25 = vector.broadcast %c15_i32 : i32 to vector<256x1xi32>
    %26 = arith.cmpi slt, %18, %25 : vector<256x1xi32>
    %c16_i32_7 = arith.constant 16 : i32
    %27 = tpu.dynamic_rotate %1 by %c16_i32_7 dim 0 : vector<256x4xf32>, i32 -> vector<256x4xf32>
    %cst = arith.constant 0.000000e+00 : f32
    %28 = vector.shape_cast %20 : vector<256x1xi1> to vector<256x1xi1>
    %29 = vector.broadcast %28 : vector<256x1xi1> to vector<256x4xi1>
    %30 = vector.broadcast %cst : f32 to vector<256x4xf32>
    %31 = arith.select %29, %27, %30 : vector<256x4xi1>, vector<256x4xf32>
    %c240_i32_8 = arith.constant 240 : i32
    %32 = tpu.dynamic_rotate %1 by %c240_i32_8 dim 0 : vector<256x4xf32>, i32 -> vector<256x4xf32>
    %cst_9 = arith.constant 0.000000e+00 : f32
    %33 = vector.shape_cast %22 : vector<256x1xi1> to vector<256x1xi1>
    %34 = vector.broadcast %33 : vector<256x1xi1> to vector<256x4xi1>
    %35 = vector.broadcast %cst_9 : f32 to vector<256x4xf32>
    %36 = arith.select %34, %32, %35 : vector<256x4xi1>, vector<256x4xf32>
    %37 = tpu.concatenate %31, %1, %36 in 1 : vector<256x4xf32>, vector<256x4xf32>, vector<256x4xf32> -> vector<256x12xf32>
    %38 = arith.truncf %37 : vector<256x12xf32> to vector<256x12xbf16>
    %c0_10 = arith.constant 0 : index
    %c0_11 = arith.constant 0 : index
    %39 = vector.load %arg2[%c0_10, %c0_11] : memref<12x384xbf16, #tpu.memory_space<vmem>>, vector<12x384xbf16>
    %cst_12 = arith.constant dense<0.000000e+00> : vector<256x384xf32>
    %40 = tpu.matmul %38, %39, %cst_12 {dimension_numbers = #tpu.dot_dimension_numbers<[1], [0], [0], [1], [0, 0, 1, 1], [], []>} : vector<256x12xbf16>, vector<12x384xbf16>, vector<256x384xf32> -> vector<256x384xf32>
    %41 = vector.extract_strided_slice %40 {offsets = [0, 0], sizes = [256, 128], strides = [1, 1]} : vector<256x384xf32> to vector<256x128xf32>
    %42 = vector.extract_strided_slice %40 {offsets = [0, 128], sizes = [256, 128], strides = [1, 1]} : vector<256x384xf32> to vector<256x128xf32>
    %43 = vector.extract_strided_slice %40 {offsets = [0, 256], sizes = [256, 128], strides = [1, 1]} : vector<256x384xf32> to vector<256x128xf32>
    %c1_i32_13 = arith.constant 1 : i32
    %44 = tpu.dynamic_rotate %41 by %c1_i32_13 dim 0 : vector<256x128xf32>, i32 -> vector<256x128xf32>
    %cst_14 = arith.constant 0.000000e+00 : f32
    %45 = vector.shape_cast %24 : vector<256x1xi1> to vector<256x1xi1>
    %46 = vector.broadcast %45 : vector<256x1xi1> to vector<256x128xi1>
    %47 = vector.broadcast %cst_14 : f32 to vector<256x128xf32>
    %48 = arith.select %46, %44, %47 : vector<256x128xi1>, vector<256x128xf32>
    %c255_i32 = arith.constant 255 : i32
    %49 = tpu.dynamic_rotate %43 by %c255_i32 dim 0 : vector<256x128xf32>, i32 -> vector<256x128xf32>
    %cst_15 = arith.constant 0.000000e+00 : f32
    %50 = vector.shape_cast %26 : vector<256x1xi1> to vector<256x1xi1>
    %51 = vector.broadcast %50 : vector<256x1xi1> to vector<256x128xi1>
    %52 = vector.broadcast %cst_15 : f32 to vector<256x128xf32>
    %53 = arith.select %51, %49, %52 : vector<256x128xi1>, vector<256x128xf32>
    %54 = arith.addf %48, %42 : vector<256x128xf32>
    %55 = arith.addf %54, %53 : vector<256x128xf32>
    %c0_16 = arith.constant 0 : index
    %c0_17 = arith.constant 0 : index
    %56 = vector.load %arg3[%c0_16, %c0_17] : memref<1x128xf32, #tpu.memory_space<vmem>>, vector<1x128xf32>
    %57 = vector.broadcast %56 : vector<1x128xf32> to vector<256x128xf32>
    %58 = arith.addf %55, %57 : vector<256x128xf32>
    %cst_18 = arith.constant 0.000000e+00 : f32
    %59 = vector.broadcast %cst_18 : f32 to vector<256x128xf32>
    %60 = arith.maximumf %58, %59 : vector<256x128xf32>
    %c16_i32_19 = arith.constant 16 : i32
    %61 = tpu.dynamic_rotate %60 by %c16_i32_19 dim 0 : vector<256x128xf32>, i32 -> vector<256x128xf32>
    %cst_20 = arith.constant 0.000000e+00 : f32
    %62 = vector.shape_cast %20 : vector<256x1xi1> to vector<256x1xi1>
    %63 = vector.broadcast %62 : vector<256x1xi1> to vector<256x128xi1>
    %64 = vector.broadcast %cst_20 : f32 to vector<256x128xf32>
    %65 = arith.select %63, %61, %64 : vector<256x128xi1>, vector<256x128xf32>
    %c240_i32_21 = arith.constant 240 : i32
    %66 = tpu.dynamic_rotate %60 by %c240_i32_21 dim 0 : vector<256x128xf32>, i32 -> vector<256x128xf32>
    %cst_22 = arith.constant 0.000000e+00 : f32
    %67 = vector.shape_cast %22 : vector<256x1xi1> to vector<256x1xi1>
    %68 = vector.broadcast %67 : vector<256x1xi1> to vector<256x128xi1>
    %69 = vector.broadcast %cst_22 : f32 to vector<256x128xf32>
    %70 = arith.select %68, %66, %69 : vector<256x128xi1>, vector<256x128xf32>
    %71 = tpu.concatenate %65, %60, %70 in 1 : vector<256x128xf32>, vector<256x128xf32>, vector<256x128xf32> -> vector<256x384xf32>
    %72 = arith.truncf %71 : vector<256x384xf32> to vector<256x384xbf16>
    %c0_23 = arith.constant 0 : index
    %c0_24 = arith.constant 0 : index
    %73 = vector.load %arg4[%c0_23, %c0_24] : memref<384x384xbf16, #tpu.memory_space<vmem>>, vector<384x384xbf16>
    %cst_25 = arith.constant dense<0.000000e+00> : vector<256x384xf32>
    %74 = tpu.matmul %72, %73, %cst_25 {dimension_numbers = #tpu.dot_dimension_numbers<[1], [0], [0], [1], [0, 0, 1, 1], [], []>} : vector<256x384xbf16>, vector<384x384xbf16>, vector<256x384xf32> -> vector<256x384xf32>
    %75 = vector.extract_strided_slice %74 {offsets = [0, 0], sizes = [256, 128], strides = [1, 1]} : vector<256x384xf32> to vector<256x128xf32>
    %76 = vector.extract_strided_slice %74 {offsets = [0, 128], sizes = [256, 128], strides = [1, 1]} : vector<256x384xf32> to vector<256x128xf32>
    %77 = vector.extract_strided_slice %74 {offsets = [0, 256], sizes = [256, 128], strides = [1, 1]} : vector<256x384xf32> to vector<256x128xf32>
    %c1_i32_26 = arith.constant 1 : i32
    %78 = tpu.dynamic_rotate %75 by %c1_i32_26 dim 0 : vector<256x128xf32>, i32 -> vector<256x128xf32>
    %cst_27 = arith.constant 0.000000e+00 : f32
    %79 = vector.shape_cast %24 : vector<256x1xi1> to vector<256x1xi1>
    %80 = vector.broadcast %79 : vector<256x1xi1> to vector<256x128xi1>
    %81 = vector.broadcast %cst_27 : f32 to vector<256x128xf32>
    %82 = arith.select %80, %78, %81 : vector<256x128xi1>, vector<256x128xf32>
    %c255_i32_28 = arith.constant 255 : i32
    %83 = tpu.dynamic_rotate %77 by %c255_i32_28 dim 0 : vector<256x128xf32>, i32 -> vector<256x128xf32>
    %cst_29 = arith.constant 0.000000e+00 : f32
    %84 = vector.shape_cast %26 : vector<256x1xi1> to vector<256x1xi1>
    %85 = vector.broadcast %84 : vector<256x1xi1> to vector<256x128xi1>
    %86 = vector.broadcast %cst_29 : f32 to vector<256x128xf32>
    %87 = arith.select %85, %83, %86 : vector<256x128xi1>, vector<256x128xf32>
    %88 = arith.addf %82, %76 : vector<256x128xf32>
    %89 = arith.addf %88, %87 : vector<256x128xf32>
    %c0_30 = arith.constant 0 : index
    %c0_31 = arith.constant 0 : index
    %90 = vector.load %arg5[%c0_30, %c0_31] : memref<1x128xf32, #tpu.memory_space<vmem>>, vector<1x128xf32>
    %91 = vector.broadcast %90 : vector<1x128xf32> to vector<256x128xf32>
    %92 = arith.addf %89, %91 : vector<256x128xf32>
    %93 = vector.extract_strided_slice %92 {offsets = [0, 0], sizes = [256, 4], strides = [1, 1]} : vector<256x128xf32> to vector<256x4xf32>
    %94 = arith.addf %93, %1 : vector<256x4xf32>
    %cst_32 = arith.constant 0.000000e+00 : f32
    %95 = vector.broadcast %cst_32 : f32 to vector<256x4xf32>
    %96 = arith.maximumf %94, %95 : vector<256x4xf32>
    %c0_33 = arith.constant 0 : index
    %c0_34 = arith.constant 0 : index
    %c0_35 = arith.constant 0 : index
    %97 = vector.load %arg6[%c0_33, %c0_34, %c0_35] : memref<1x256x4xf32, #tpu.memory_space<vmem>>, vector<1x256x4xf32>
    %98 = vector.shape_cast %97 : vector<1x256x4xf32> to vector<256x4xf32>
    %99 = vector.shape_cast %96 : vector<256x4xf32> to vector<1x256x4xf32>
    tpu.vector_store %arg6[%c0_33, %c0_34, %c0_35], %99 {strides = array<i32>} : memref<1x256x4xf32, #tpu.memory_space<vmem>>, vector<1x256x4xf32>,
    return
  }
  func.func @transform_0(%arg0: i32) -> (i32, i32, i32) {
    %c0_i32 = arith.constant 0 : i32
    %c0_i32_0 = arith.constant 0 : i32
    %c0_i32_1 = arith.constant 0 : i32
    return %arg0, %c0_i32, %c0_i32_0 : i32, i32, i32
  }
  func.func @transform_1(%arg0: i32) -> (i32, i32) {
    %c0_i32 = arith.constant 0 : i32
    %c0_i32_0 = arith.constant 0 : i32
    %c0_i32_1 = arith.constant 0 : i32
    return %c0_i32, %c0_i32_0 : i32, i32
  }
  func.func @transform_2(%arg0: i32) -> (i32, i32) {
    %c0_i32 = arith.constant 0 : i32
    %c0_i32_0 = arith.constant 0 : i32
    %c0_i32_1 = arith.constant 0 : i32
    return %c0_i32, %c0_i32_0 : i32, i32
  }
  func.func @transform_3(%arg0: i32) -> (i32, i32) {
    %c0_i32 = arith.constant 0 : i32
    %c0_i32_0 = arith.constant 0 : i32
    %c0_i32_1 = arith.constant 0 : i32
    return %c0_i32, %c0_i32_0 : i32, i32
  }
  func.func @transform_4(%arg0: i32) -> (i32, i32) {
    %c0_i32 = arith.constant 0 : i32
    %c0_i32_0 = arith.constant 0 : i32
    %c0_i32_1 = arith.constant 0 : i32
    return %c0_i32, %c0_i32_0 : i32, i32
  }
  func.func @transform_5(%arg0: i32) -> (i32, i32, i32) {
    %c0_i32 = arith.constant 0 : i32
    %c0_i32_0 = arith.constant 0 : i32
    %c0_i32_1 = arith.constant 0 : i32
    return %arg0, %c0_i32, %c0_i32_0 : i32, i32, i32
  }
}

</mosaic_0001>

<llo_original>
// kernel: basic_block_pallas.1
$region0: #{basic_block_pallas.1}
  #allocation0 [shape = 'u32[]', space=smem, size = 0x4, offset = 0x4, fixed_abs, tag = 'smem constant byte address 0x4 - core index']
  #allocation1 [shape = 'u32[72,128]{1,0:T(1,128)}', space=vmem, size = 0x9000, scoped, tag = 'internal scratch']
  %s0 = inlined_call_operand.vmem [shape: f32[2,256,4], index: 0, kind: input, shape index: {}]
  %s1 = inlined_call_operand.vmem [shape: bf16[12,384], index: 1, kind: input, shape index: {}]
  %s2 = inlined_call_operand.vmem [shape: f32[1,128], index: 2, kind: input, shape index: {}]
  %s3 = inlined_call_operand.vmem [shape: bf16[384,384], index: 3, kind: input, shape index: {}]
  %s4 = inlined_call_operand.vmem [shape: f32[1,128], index: 4, kind: input, shape index: {}]
  %s5 = inlined_call_operand.vmem [shape: f32[2,256,4], index: 5, kind: output, shape index: {}]
  %s6 = sld [smem:[#allocation0]]
  $region53: #{basic_block_pallas.1} parent=0
    _
  %s8 = ssub.s32 1, %s6
  %s9 = scalar_select 0, %s8, %s6
  loop: start=0, step=1, limit=4
  $region2: #{basic_block_pallas.1} parent=0 // loop_pre_header
    _
  $region3: #{basic_block_pallas.1} parent=0 // loop_header
    %s11 = sphi 0, %s15
    %p12 = scmp.ge.s32.totalorder %s11, 4
    %s21 = sphi 0, %s23
    %s24 = sphi 0, %s21
    %s25 = sphi 0, %s24
    %s41 = sphi 0, %s25
    %s45 = sphi 0, %s45
    %s47 = sphi 0, %s45
    %s48 = sphi 0, %s47
    %s62 = sphi 0, %s48
    %s66 = sphi 0, %s66
    %s68 = sphi 0, %s66
    %s69 = sphi 0, %s68
    %s83 = sphi 0, %s69
    %s87 = sphi 0, %s87
    %s89 = sphi 0, %s87
    %s90 = sphi 0, %s89
    %s104 = sphi 0, %s90
    %s108 = sphi 0, %s108
    %s110 = sphi 0, %s108
    %s111 = sphi 0, %s110
    %s125 = sphi 0, %s111
    %s131 = sphi 0, %s133
    %s134 = sphi 0, %s131
    %s135 = sphi 0, %s134
    %s151 = sphi 0, %s135
  $region4: #{basic_block_pallas.1} parent=0 // loop_header_branch
    %14 = sbr.rel (%p12) target = $region8
  $region5: #{basic_block_pallas.1} parent=0 // loop_body
    %s16 = ssub.s32 %s11, 1
    %s17 = ssub.s32 %s11, 2
    %s18 = sadd.s32 %s11, 1
    %s19 = ssub.s32 %s11, %s18
    %p20 = scmp.eq.s32.totalorder %s19, 0
    %s22 = sadd.s32 %s21, 1
    %s23 = scalar_select %p20, %s21, %s22
    %p26 = pneg %p20
    %p27 = scmp.eq.s32.totalorder %s11, 1
    %p28 = por %p26, %p27
    %p29 = scmp.ne.s32.totalorder %s21, %s24
    %p30 = scmp.eq.s32.totalorder %s11, 0
    %p31 = por %p29, %p30
    %p32 = scmp.ne.s32.totalorder %s21, %s24
    %p33 = scmp.eq.s32.totalorder %s16, 1
    %p34 = por %p32, %p33
    %p35 = scmp.ne.s32.totalorder %s24, %s25
    %p36 = scmp.eq.s32.totalorder %s16, 0
    %p37 = por %p35, %p36
    %p38 = scmp.ne.s32.totalorder %s24, %s25
    %p39 = scmp.eq.s32.totalorder %s17, 1
    %p40 = por %p38, %p39
    %p42 = scmp.ne.s32.totalorder %s25, %s41
    %p43 = scmp.eq.s32.totalorder %s17, 0
    %p44 = por %p42, %p43
    %s46 = sadd.s32 %s45, 1
    %p49 = scmp.eq.s32.totalorder %s11, 1
    %p50 = scmp.ne.s32.totalorder %s45, %s47
    %p51 = scmp.eq.s32.totalorder %s11, 0
    %p52 = por %p50, %p51
    %p53 = scmp.ne.s32.totalorder %s45, %s47
    %p54 = scmp.eq.s32.totalorder %s16, 1
    %p55 = por %p53, %p54
    %p56 = scmp.ne.s32.totalorder %s47, %s48
    %p57 = scmp.eq.s32.totalorder %s16, 0
    %p58 = por %p56, %p57
    %p59 = scmp.ne.s32.totalorder %s47, %s48
    %p60 = scmp.eq.s32.totalorder %s17, 1
    %p61 = por %p59, %p60
    %p63 = scmp.ne.s32.totalorder %s48, %s62
    %p64 = scmp.eq.s32.totalorder %s17, 0
    %p65 = por %p63, %p64
    %s67 = sadd.s32 %s66, 1
    %p70 = scmp.eq.s32.totalorder %s11, 1
    %p71 = scmp.ne.s32.totalorder %s66, %s68
    %p72 = scmp.eq.s32.totalorder %s11, 0
    %p73 = por %p71, %p72
    %p74 = scmp.ne.s32.totalorder %s66, %s68
    %p75 = scmp.eq.s32.totalorder %s16, 1
    %p76 = por %p74, %p75
    %p77 = scmp.ne.s32.totalorder %s68, %s69
    %p78 = scmp.eq.s32.totalorder %s16, 0
    %p79 = por %p77, %p78
    %p80 = scmp.ne.s32.totalorder %s68, %s69
    %p81 = scmp.eq.s32.totalorder %s17, 1
    %p82 = por %p80, %p81
    %p84 = scmp.ne.s32.totalorder %s69, %s83
    %p85 = scmp.eq.s32.totalorder %s17, 0
    %p86 = por %p84, %p85
    %s88 = sadd.s32 %s87, 1
    %p91 = scmp.eq.s32.totalorder %s11, 1
    %p92 = scmp.ne.s32.totalorder %s87, %s89
    %p93 = scmp.eq.s32.totalorder %s11, 0
    %p94 = por %p92, %p93
    %p95 = scmp.ne.s32.totalorder %s87, %s89
    %p96 = scmp.eq.s32.totalorder %s16, 1
    %p97 = por %p95, %p96
    %p98 = scmp.ne.s32.totalorder %s89, %s90
    %p99 = scmp.eq.s32.totalorder %s16, 0
    %p100 = por %p98, %p99
    %p101 = scmp.ne.s32.totalorder %s89, %s90
    %p102 = scmp.eq.s32.totalorder %s17, 1
    %p103 = por %p101, %p102
    %p105 = scmp.ne.s32.totalorder %s90, %s104
    %p106 = scmp.eq.s32.totalorder %s17, 0
    %p107 = por %p105, %p106
    %s109 = sadd.s32 %s108, 1
    %p112 = scmp.eq.s32.totalorder %s11, 1
    %p113 = scmp.ne.s32.totalorder %s108, %s110
    %p114 = scmp.eq.s32.totalorder %s11, 0
    %p115 = por %p113, %p114
    %p116 = scmp.ne.s32.totalorder %s108, %s110
    %p117 = scmp.eq.s32.totalorder %s16, 1
    %p118 = por %p116, %p117
    %p119 = scmp.ne.s32.totalorder %s110, %s111
    %p120 = scmp.eq.s32.totalorder %s16, 0
    %p121 = por %p119, %p120
    %p122 = scmp.ne.s32.totalorder %s110, %s111
    %p123 = scmp.eq.s32.totalorder %s17, 1
    %p124 = por %p122, %p123
    %p126 = scmp.ne.s32.totalorder %s111, %s125
    %p127 = scmp.eq.s32.totalorder %s17, 0
    %p128 = por %p126, %p127
    %s129 = ssub.s32 %s11, %s18
    %p130 = scmp.eq.s32.totalorder %s129, 0
    %s132 = sadd.s32 %s131, 1
    %s133 = scalar_select %p130, %s131, %s132
    %p136 = pneg %p130
    %p137 = scmp.eq.s32.totalorder %s11, 1
    %p138 = por %p136, %p137
    %p139 = scmp.ne.s32.totalorder %s131, %s134
    %p140 = scmp.eq.s32.totalorder %s11, 0
    %p141 = por %p139, %p140
    %p142 = scmp.ne.s32.totalorder %s131, %s134
    %p143 = scmp.eq.s32.totalorder %s16, 1
    %p144 = por %p142, %p143
    %p145 = scmp.ne.s32.totalorder %s134, %s135
    %p146 = scmp.eq.s32.totalorder %s16, 0
    %p147 = por %p145, %p146
    %p148 = scmp.ne.s32.totalorder %s134, %s135
    %p149 = scmp.eq.s32.totalorder %s17, 1
    %p150 = por %p148, %p149
    %p152 = scmp.ne.s32.totalorder %s135, %s151
    %p153 = scmp.eq.s32.totalorder %s17, 0
    %p154 = por %p152, %p153
    %p155 = scmp.le.s32.totalorder 1, %s11
    %p156 = scmp.lt.s32.totalorder %s11, 3
    %p157 = pnand %p155, %p156
    %p158 = pneg %p157
    // Predicated region
    $region9: #{basic_block_pallas.1} parent=5 // pred_check
      _
    $region10: #{basic_block_pallas.1} parent=5 // pred_check_branch
      %160 = sbr.rel (%p157) target = $region12
    $region11: #{basic_block_pallas.1} parent=5 // pred_region
      %s161 = ssub.s32 %s11, 1
      // Predicated region
      $region13: #{basic_block_pallas.1} parent=11 // pred_check
        %p162 = pneg %p58
      $region14: #{basic_block_pallas.1} parent=11 // pred_check_branch
        %164 = sbr.rel (%p162) target = $region16
      $region15: #{basic_block_pallas.1} parent=11 // pred_region
        _
      $region16: #{basic_block_pallas.1} parent=11 // pred_fallthru
        _
      // Predicated region
      $region17: #{basic_block_pallas.1} parent=11 // pred_check
        %p165 = pneg %p79
      $region18: #{basic_block_pallas.1} parent=11 // pred_check_branch
        %167 = sbr.rel (%p165) target = $region20
      $region19: #{basic_block_pallas.1} parent=11 // pred_region
        _
      $region20: #{basic_block_pallas.1} parent=11 // pred_fallthru
        _
      // Predicated region
      $region21: #{basic_block_pallas.1} parent=11 // pred_check
        %p168 = pneg %p100
      $region22: #{basic_block_pallas.1} parent=11 // pred_check_branch
        %170 = sbr.rel (%p168) target = $region24
      $region23: #{basic_block_pallas.1} parent=11 // pred_region
        _
      $region24: #{basic_block_pallas.1} parent=11 // pred_fallthru
        _
      // Predicated region
      $region25: #{basic_block_pallas.1} parent=11 // pred_check
        %p171 = pneg %p121
      $region26: #{basic_block_pallas.1} parent=11 // pred_check_branch
        %173 = sbr.rel (%p171) target = $region28
      $region27: #{basic_block_pallas.1} parent=11 // pred_region
        _
      $region28: #{basic_block_pallas.1} parent=11 // pred_fallthru
        _
    $region12: #{basic_block_pallas.1} parent=5 // pred_fallthru
      _
    %p174 = scmp.lt.s32.totalorder %s11, 2
    // Predicated region
    $region29: #{basic_block_pallas.1} parent=5 // pred_check
      %p175 = pneg %p174
    $region30: #{basic_block_pallas.1} parent=5 // pred_check_branch
      %177 = sbr.rel (%p175) target = $region32
    $region31: #{basic_block_pallas.1} parent=5 // pred_region
      // Predicated region
      $region33: #{basic_block_pallas.1} parent=31 // pred_check
        %p178 = pneg %p31
      $region34: #{basic_block_pallas.1} parent=31 // pred_check_branch
        %180 = sbr.rel (%p178) target = $region36
      $region35: #{basic_block_pallas.1} parent=31 // pred_region
        %p181 = scmp.lt.s32.totalorder %s11, 1
        %s182 = scalar_select %p181, %s11, 1
        %s183 = smul.addr %s182, 32
        %s184 = smul.addr %s183, 8
        %s185 = scalar_lea.vmem %s0, %s184
      $region36: #{basic_block_pallas.1} parent=31 // pred_fallthru
        _
    $region32: #{basic_block_pallas.1} parent=5 // pred_fallthru
      _
    %p186 = scmp.le.s32.totalorder 1, %s11
    %p187 = scmp.lt.s32.totalorder %s11, 3
    %p188 = pnand %p186, %p187
    %p189 = pneg %p188
    // Predicated region
    $region37: #{basic_block_pallas.1} parent=5 // pred_check
      _
    $region38: #{basic_block_pallas.1} parent=5 // pred_check_branch
      %191 = sbr.rel (%p188) target = $region40
    $region39: #{basic_block_pallas.1} parent=5 // pred_region
      %s192 = ssub.s32 %s11, 1
      %p193 = scmp.lt.s32.totalorder %s16, 1
      %s194 = scalar_select %p193, %s16, 1
      %s195 = smul.addr %s194, 32
      %s196 = smul.addr %s195, 8
      %s197 = scalar_lea.vmem %s0, %s196
      %p198 = pneg %p37
      %p199 = pneg %p34
      %p200 = pneg %p58
      %p201 = pneg %p55
      %p202 = pneg %p79
      %p203 = pneg %p76
      %p204 = pneg %p100
      %p205 = pneg %p97
      %p206 = pneg %p121
      %p207 = pneg %p118
      %p208 = pneg %p147
      %p209 = pneg %p144
      %p210 = scmp.lt.s32.totalorder %s16, 1
      %s211 = scalar_select %p210, %s16, 1
      %s212 = smul.addr %s211, 32
      %s213 = smul.addr %s212, 8
      %s214 = scalar_lea.vmem %s5, %s213
      %p215 = scmp.lt.s32.totalorder %s16, 1
      %s216 = scalar_select %p215, %s16, 1
      %s217 = smul.addr %s216, 32
      %s218 = smul.addr %s217, 8
      %s219 = scalar_lea.vmem %s0, %s218
      %p220 = scmp.lt.s32.totalorder %s16, 1
      %s221 = scalar_select %p220, %s16, 1
      %s222 = smul.addr %s221, 32
      %s223 = smul.addr %s222, 8
      %s224 = scalar_lea.vmem %s5, %s223
      %v226 = vld [vmem:[%s219] sm:$0xff]
      %v227 = vld [vmem:[%s219 + $0x8] sm:$0xff]
      %v228 = vld [vmem:[%s219 + $0x10] sm:$0xff]
      %v229 = vld [vmem:[%s219 + $0x18] sm:$0xff]
      %v230 = vld [vmem:[%s219 + $0x20] sm:$0xff]
      %v231 = vld [vmem:[%s219 + $0x28] sm:$0xff]
      %v232 = vld [vmem:[%s219 + $0x30] sm:$0xff]
      %v233 = vld [vmem:[%s219 + $0x38] sm:$0xff]
      %v234 = vld [vmem:[%s219 + $0x40] sm:$0xff]
      %v235 = vld [vmem:[%s219 + $0x48] sm:$0xff]
      %v236 = vld [vmem:[%s219 + $0x50] sm:$0xff]
      %v237 = vld [vmem:[%s219 + $0x58] sm:$0xff]
      %v238 = vld [vmem:[%s219 + $0x60] sm:$0xff]
      %v239 = vld [vmem:[%s219 + $0x68] sm:$0xff]
      %v240 = vld [vmem:[%s219 + $0x70] sm:$0xff]
      %v241 = vld [vmem:[%s219 + $0x78] sm:$0xff]
      %v242 = vld [vmem:[%s219 + $0x80] sm:$0xff]
      %v243 = vld [vmem:[%s219 + $0x88] sm:$0xff]
      %v244 = vld [vmem:[%s219 + $0x90] sm:$0xff]
      %v245 = vld [vmem:[%s219 + $0x98] sm:$0xff]
      %v246 = vld [vmem:[%s219 + $0xa0] sm:$0xff]
      %v247 = vld [vmem:[%s219 + $0xa8] sm:$0xff]
      %v248 = vld [vmem:[%s219 + $0xb0] sm:$0xff]
      %v249 = vld [vmem:[%s219 + $0xb8] sm:$0xff]
      %v250 = vld [vmem:[%s219 + $0xc0] sm:$0xff]
      %v251 = vld [vmem:[%s219 + $0xc8] sm:$0xff]
      %v252 = vld [vmem:[%s219 + $0xd0] sm:$0xff]
      %v253 = vld [vmem:[%s219 + $0xd8] sm:$0xff]
      %v254 = vld [vmem:[%s219 + $0xe0] sm:$0xff]
      %v255 = vld [vmem:[%s219 + $0xe8] sm:$0xff]
      %v256 = vld [vmem:[%s219 + $0xf0] sm:$0xff]
      %v257 = vld [vmem:[%s219 + $0xf8] sm:$0xff]
      %v258 = vlaneseq
      %v259 = vshrl.u32 %v258, 7
      %v260 = vadd.s32 %v259, 8
      %v261 = vadd.s32 %v259, 16
      %v262 = vadd.s32 %v259, 24
      %v263 = vadd.s32 %v259, 32
      %v264 = vadd.s32 %v259, 40
      %v265 = vadd.s32 %v259, 48
      %v266 = vadd.s32 %v259, 56
      %v267 = vadd.s32 %v259, 64
      %v268 = vadd.s32 %v259, 72
      %v269 = vadd.s32 %v259, 80
      %v270 = vadd.s32 %v259, 88
      %v271 = vadd.s32 %v259, 96
      %v272 = vadd.s32 %v259, 104
      %v273 = vadd.s32 %v259, 112
      %v274 = vadd.s32 %v259, 120
      %v275 = vadd.s32 %v259, 128
      %v276 = vadd.s32 %v259, 136
      %v277 = vadd.s32 %v259, 144
      %v278 = vadd.s32 %v259, 152
      %v279 = vadd.s32 %v259, 160
      %v280 = vadd.s32 %v259, 168
      %v281 = vadd.s32 %v259, 176
      %v282 = vadd.s32 %v259, 184
      %v283 = vadd.s32 %v259, 192
      %v284 = vadd.s32 %v259, 200
      %v285 = vadd.s32 %v259, 208
      %v286 = vadd.s32 %v259, 216
      %v287 = vadd.s32 %v259, 224
      %v288 = vadd.s32 %v259, 232
      %v289 = vadd.s32 %v259, 240
      %v290 = vadd.s32 %v259, 248
      %vm291 = vcmp.lt.s32.totalorder %v259, 0
      %v292 = vsub.s32 0, %v259
      %v293 = vsel %vm291, %v292, %v259
      %v294 = vshrl.u32 %v293, 4
      %v295 = vand.u32 %v293, 15
      %v296 = vsub.s32 0, %v295
      %v297 = vsel %vm291, %v296, %v295
      %vm298 = vcmp.lt.s32.totalorder %v260, 0
      %v299 = vsub.s32 0, %v260
      %v300 = vsel %vm298, %v299, %v260
      %v301 = vshrl.u32 %v300, 4
      %v302 = vand.u32 %v300, 15
      %v303 = vsub.s32 0, %v302
      %v304 = vsel %vm298, %v303, %v302
      %vm305 = vcmp.lt.s32.totalorder %v261, 0
      %v306 = vsub.s32 0, %v261
      %v307 = vsel %vm305, %v306, %v261
      %v308 = vshrl.u32 %v307, 4
      %v309 = vand.u32 %v307, 15
      %v310 = vsub.s32 0, %v309
      %v311 = vsel %vm305, %v310, %v309
      %vm312 = vcmp.lt.s32.totalorder %v262, 0
      %v313 = vsub.s32 0, %v262
      %v314 = vsel %vm312, %v313, %v262
      %v315 = vshrl.u32 %v314, 4
      %v316 = vand.u32 %v314, 15
      %v317 = vsub.s32 0, %v316
      %v318 = vsel %vm312, %v317, %v316
      %vm319 = vcmp.lt.s32.totalorder %v263, 0
      %v320 = vsub.s32 0, %v263
      %v321 = vsel %vm319, %v320, %v263
      %v322 = vshrl.u32 %v321, 4
      %v323 = vand.u32 %v321, 15
      %v324 = vsub.s32 0, %v323
      %v325 = vsel %vm319, %v324, %v323
      %vm326 = vcmp.lt.s32.totalorder %v264, 0
      %v327 = vsub.s32 0, %v264
      %v328 = vsel %vm326, %v327, %v264
      %v329 = vshrl.u32 %v328, 4
      %v330 = vand.u32 %v328, 15
      %v331 = vsub.s32 0, %v330
      %v332 = vsel %vm326, %v331, %v330
      %vm333 = vcmp.lt.s32.totalorder %v265, 0
      %v334 = vsub.s32 0, %v265
      %v335 = vsel %vm333, %v334, %v265
      %v336 = vshrl.u32 %v335, 4
      %v337 = vand.u32 %v335, 15
      %v338 = vsub.s32 0, %v337
      %v339 = vsel %vm333, %v338, %v337
      %vm340 = vcmp.lt.s32.totalorder %v266, 0
      %v341 = vsub.s32 0, %v266
      %v342 = vsel %vm340, %v341, %v266
      %v343 = vshrl.u32 %v342, 4
      %v344 = vand.u32 %v342, 15
      %v345 = vsub.s32 0, %v344
      %v346 = vsel %vm340, %v345, %v344
      %vm347 = vcmp.lt.s32.totalorder %v267, 0
      %v348 = vsub.s32 0, %v267
      %v349 = vsel %vm347, %v348, %v267
      %v350 = vshrl.u32 %v349, 4
      %v351 = vand.u32 %v349, 15
      %v352 = vsub.s32 0, %v351
      %v353 = vsel %vm347, %v352, %v351
      %vm354 = vcmp.lt.s32.totalorder %v268, 0
      %v355 = vsub.s32 0, %v268
      %v356 = vsel %vm354, %v355, %v268
      %v357 = vshrl.u32 %v356, 4
      %v358 = vand.u32 %v356, 15
      %v359 = vsub.s32 0, %v358
      %v360 = vsel %vm354, %v359, %v358
      %vm361 = vcmp.lt.s32.totalorder %v269, 0
      %v362 = vsub.s32 0, %v269
      %v363 = vsel %vm361, %v362, %v269
      %v364 = vshrl.u32 %v363, 4
      %v365 = vand.u32 %v363, 15
      %v366 = vsub.s32 0, %v365
      %v367 = vsel %vm361, %v366, %v365
      %vm368 = vcmp.lt.s32.totalorder %v270, 0
      %v369 = vsub.s32 0, %v270
      %v370 = vsel %vm368, %v369, %v270
      %v371 = vshrl.u32 %v370, 4
      %v372 = vand.u32 %v370, 15
      %v373 = vsub.s32 0, %v372
      %v374 = vsel %vm368, %v373, %v372
      %vm375 = vcmp.lt.s32.totalorder %v271, 0
      %v376 = vsub.s32 0, %v271
      %v377 = vsel %vm375, %v376, %v271
      %v378 = vshrl.u32 %v377, 4
      %v379 = vand.u32 %v377, 15
      %v380 = vsub.s32 0, %v379
      %v381 = vsel %vm375, %v380, %v379
      %vm382 = vcmp.lt.s32.totalorder %v272, 0
      %v383 = vsub.s32 0, %v272
      %v384 = vsel %vm382, %v383, %v272
      %v385 = vshrl.u32 %v384, 4
      %v386 = vand.u32 %v384, 15
      %v387 = vsub.s32 0, %v386
      %v388 = vsel %vm382, %v387, %v386
      %vm389 = vcmp.lt.s32.totalorder %v273, 0
      %v390 = vsub.s32 0, %v273
      %v391 = vsel %vm389, %v390, %v273
      %v392 = vshrl.u32 %v391, 4
      %v393 = vand.u32 %v391, 15
      %v394 = vsub.s32 0, %v393
      %v395 = vsel %vm389, %v394, %v393
      %vm396 = vcmp.lt.s32.totalorder %v274, 0
      %v397 = vsub.s32 0, %v274
      %v398 = vsel %vm396, %v397, %v274
      %v399 = vshrl.u32 %v398, 4
      %v400 = vand.u32 %v398, 15
      %v401 = vsub.s32 0, %v400
      %v402 = vsel %vm396, %v401, %v400
      %vm403 = vcmp.lt.s32.totalorder %v275, 0
      %v404 = vsub.s32 0, %v275
      %v405 = vsel %vm403, %v404, %v275
      %v406 = vshrl.u32 %v405, 4
      %v407 = vand.u32 %v405, 15
      %v408 = vsub.s32 0, %v407
      %v409 = vsel %vm403, %v408, %v407
      %vm410 = vcmp.lt.s32.totalorder %v276, 0
      %v411 = vsub.s32 0, %v276
      %v412 = vsel %vm410, %v411, %v276
      %v413 = vshrl.u32 %v412, 4
      %v414 = vand.u32 %v412, 15
      %v415 = vsub.s32 0, %v414
      %v416 = vsel %vm410, %v415, %v414
      %vm417 = vcmp.lt.s32.totalorder %v277, 0
      %v418 = vsub.s32 0, %v277
      %v419 = vsel %vm417, %v418, %v277
      %v420 = vshrl.u32 %v419, 4
      %v421 = vand.u32 %v419, 15
      %v422 = vsub.s32 0, %v421
      %v423 = vsel %vm417, %v422, %v421
      %vm424 = vcmp.lt.s32.totalorder %v278, 0
      %v425 = vsub.s32 0, %v278
      %v426 = vsel %vm424, %v425, %v278
      %v427 = vshrl.u32 %v426, 4
      %v428 = vand.u32 %v426, 15
      %v429 = vsub.s32 0, %v428
      %v430 = vsel %vm424, %v429, %v428
      %vm431 = vcmp.lt.s32.totalorder %v279, 0
      %v432 = vsub.s32 0, %v279
      %v433 = vsel %vm431, %v432, %v279
      %v434 = vshrl.u32 %v433, 4
      %v435 = vand.u32 %v433, 15
      %v436 = vsub.s32 0, %v435
      %v437 = vsel %vm431, %v436, %v435
      %vm438 = vcmp.lt.s32.totalorder %v280, 0
      %v439 = vsub.s32 0, %v280
      %v440 = vsel %vm438, %v439, %v280
      %v441 = vshrl.u32 %v440, 4
      %v442 = vand.u32 %v440, 15
      %v443 = vsub.s32 0, %v442
      %v444 = vsel %vm438, %v443, %v442
      %vm445 = vcmp.lt.s32.totalorder %v281, 0
      %v446 = vsub.s32 0, %v281
      %v447 = vsel %vm445, %v446, %v281
      %v448 = vshrl.u32 %v447, 4
      %v449 = vand.u32 %v447, 15
      %v450 = vsub.s32 0, %v449
      %v451 = vsel %vm445, %v450, %v449
      %vm452 = vcmp.lt.s32.totalorder %v282, 0
      %v453 = vsub.s32 0, %v282
      %v454 = vsel %vm452, %v453, %v282
      %v455 = vshrl.u32 %v454, 4
      %v456 = vand.u32 %v454, 15
      %v457 = vsub.s32 0, %v456
      %v458 = vsel %vm452, %v457, %v456
      %vm459 = vcmp.lt.s32.totalorder %v283, 0
      %v460 = vsub.s32 0, %v283
      %v461 = vsel %vm459, %v460, %v283
      %v462 = vshrl.u32 %v461, 4
      %v463 = vand.u32 %v461, 15
      %v464 = vsub.s32 0, %v463
      %v465 = vsel %vm459, %v464, %v463
      %vm466 = vcmp.lt.s32.totalorder %v284, 0
      %v467 = vsub.s32 0, %v284
      %v468 = vsel %vm466, %v467, %v284
      %v469 = vshrl.u32 %v468, 4
      %v470 = vand.u32 %v468, 15
      %v471 = vsub.s32 0, %v470
      %v472 = vsel %vm466, %v471, %v470
      %vm473 = vcmp.lt.s32.totalorder %v285, 0
      %v474 = vsub.s32 0, %v285
      %v475 = vsel %vm473, %v474, %v285
      %v476 = vshrl.u32 %v475, 4
      %v477 = vand.u32 %v475, 15
      %v478 = vsub.s32 0, %v477
      %v479 = vsel %vm473, %v478, %v477
      %vm480 = vcmp.lt.s32.totalorder %v286, 0
      %v481 = vsub.s32 0, %v286
      %v482 = vsel %vm480, %v481, %v286
      %v483 = vshrl.u32 %v482, 4
      %v484 = vand.u32 %v482, 15
      %v485 = vsub.s32 0, %v484
      %v486 = vsel %vm480, %v485, %v484
      %vm487 = vcmp.lt.s32.totalorder %v287, 0
      %v488 = vsub.s32 0, %v287
      %v489 = vsel %vm487, %v488, %v287
      %v490 = vshrl.u32 %v489, 4
      %v491 = vand.u32 %v489, 15
      %v492 = vsub.s32 0, %v491
      %v493 = vsel %vm487, %v492, %v491
      %vm494 = vcmp.lt.s32.totalorder %v288, 0
      %v495 = vsub.s32 0, %v288
      %v496 = vsel %vm494, %v495, %v288
      %v497 = vshrl.u32 %v496, 4
      %v498 = vand.u32 %v496, 15
      %v499 = vsub.s32 0, %v498
      %v500 = vsel %vm494, %v499, %v498
      %vm501 = vcmp.lt.s32.totalorder %v289, 0
      %v502 = vsub.s32 0, %v289
      %v503 = vsel %vm501, %v502, %v289
      %v504 = vshrl.u32 %v503, 4
      %v505 = vand.u32 %v503, 15
      %v506 = vsub.s32 0, %v505
      %v507 = vsel %vm501, %v506, %v505
      %vm508 = vcmp.lt.s32.totalorder %v290, 0
      %v509 = vsub.s32 0, %v290
      %v510 = vsel %vm508, %v509, %v290
      %v511 = vshrl.u32 %v510, 4
      %v512 = vand.u32 %v510, 15
      %v513 = vsub.s32 0, %v512
      %v514 = vsel %vm508, %v513, %v512
      %vm515 = vcmp.ne.s32.totalorder %v297, 0
      %vm516 = vcmp.ne.s32.totalorder %v304, 0
      %vm517 = vcmp.ne.s32.totalorder %v311, 0
      %vm518 = vcmp.ne.s32.totalorder %v318, 0
      %vm519 = vcmp.ne.s32.totalorder %v325, 0
      %vm520 = vcmp.ne.s32.totalorder %v332, 0
      %vm521 = vcmp.ne.s32.totalorder %v339, 0
      %vm522 = vcmp.ne.s32.totalorder %v346, 0
      %vm523 = vcmp.ne.s32.totalorder %v353, 0
      %vm524 = vcmp.ne.s32.totalorder %v360, 0
      %vm525 = vcmp.ne.s32.totalorder %v367, 0
      %vm526 = vcmp.ne.s32.totalorder %v374, 0
      %vm527 = vcmp.ne.s32.totalorder %v381, 0
      %vm528 = vcmp.ne.s32.totalorder %v388, 0
      %vm529 = vcmp.ne.s32.totalorder %v395, 0
      %vm530 = vcmp.ne.s32.totalorder %v402, 0
      %vm531 = vcmp.ne.s32.totalorder %v409, 0
      %vm532 = vcmp.ne.s32.totalorder %v416, 0
      %vm533 = vcmp.ne.s32.totalorder %v423, 0
      %vm534 = vcmp.ne.s32.totalorder %v430, 0
      %vm535 = vcmp.ne.s32.totalorder %v437, 0
      %vm536 = vcmp.ne.s32.totalorder %v444, 0
      %vm537 = vcmp.ne.s32.totalorder %v451, 0
      %vm538 = vcmp.ne.s32.totalorder %v458, 0
      %vm539 = vcmp.ne.s32.totalorder %v465, 0
      %vm540 = vcmp.ne.s32.totalorder %v472, 0
      %vm541 = vcmp.ne.s32.totalorder %v479, 0
      %vm542 = vcmp.ne.s32.totalorder %v486, 0
      %vm543 = vcmp.ne.s32.totalorder %v493, 0
      %vm544 = vcmp.ne.s32.totalorder %v500, 0
      %vm545 = vcmp.ne.s32.totalorder %v507, 0
      %vm546 = vcmp.ne.s32.totalorder %v514, 0
      %vm547 = vcmp.lt.s32.totalorder %v297, 0
      %vm548 = vcmp.lt.s32.totalorder %v304, 0
      %vm549 = vcmp.lt.s32.totalorder %v311, 0
      %vm550 = vcmp.lt.s32.totalorder %v318, 0
      %vm551 = vcmp.lt.s32.totalorder %v325, 0
      %vm552 = vcmp.lt.s32.totalorder %v332, 0
      %vm553 = vcmp.lt.s32.totalorder %v339, 0
      %vm554 = vcmp.lt.s32.totalorder %v346, 0
      %vm555 = vcmp.lt.s32.totalorder %v353, 0
      %vm556 = vcmp.lt.s32.totalorder %v360, 0
      %vm557 = vcmp.lt.s32.totalorder %v367, 0
      %vm558 = vcmp.lt.s32.totalorder %v374, 0
      %vm559 = vcmp.lt.s32.totalorder %v381, 0
      %vm560 = vcmp.lt.s32.totalorder %v388, 0
      %vm561 = vcmp.lt.s32.totalorder %v395, 0
      %vm562 = vcmp.lt.s32.totalorder %v402, 0
      %vm563 = vcmp.lt.s32.totalorder %v409, 0
      %vm564 = vcmp.lt.s32.totalorder %v416, 0
      %vm565 = vcmp.lt.s32.totalorder %v423, 0
      %vm566 = vcmp.lt.s32.totalorder %v430, 0
      %vm567 = vcmp.lt.s32.totalorder %v437, 0
      %vm568 = vcmp.lt.s32.totalorder %v444, 0
      %vm569 = vcmp.lt.s32.totalorder %v451, 0
      %vm570 = vcmp.lt.s32.totalorder %v458, 0
      %vm571 = vcmp.lt.s32.totalorder %v465, 0
      %vm572 = vcmp.lt.s32.totalorder %v472, 0
      %vm573 = vcmp.lt.s32.totalorder %v479, 0
      %vm574 = vcmp.lt.s32.totalorder %v486, 0
      %vm575 = vcmp.lt.s32.totalorder %v493, 0
      %vm576 = vcmp.lt.s32.totalorder %v500, 0
      %vm577 = vcmp.lt.s32.totalorder %v507, 0
      %vm578 = vcmp.lt.s32.totalorder %v514, 0
      %vm579 = vmand %vm547, %vm515
      %vm580 = vmand %vm548, %vm516
      %vm581 = vmand %vm549, %vm517
      %vm582 = vmand %vm550, %vm518
      %vm583 = vmand %vm551, %vm519
      %vm584 = vmand %vm552, %vm520
      %vm585 = vmand %vm553, %vm521
      %vm586 = vmand %vm554, %vm522
      %vm587 = vmand %vm555, %vm523
      %vm588 = vmand %vm556, %vm524
      %vm589 = vmand %vm557, %vm525
      %vm590 = vmand %vm558, %vm526
      %vm591 = vmand %vm559, %vm527
      %vm592 = vmand %vm560, %vm528
      %vm593 = vmand %vm561, %vm529
      %vm594 = vmand %vm562, %vm530
      %vm595 = vmand %vm563, %vm531
      %vm596 = vmand %vm564, %vm532
      %vm597 = vmand %vm565, %vm533
      %vm598 = vmand %vm566, %vm534
      %vm599 = vmand %vm567, %vm535
      %vm600 = vmand %vm568, %vm536
      %vm601 = vmand %vm569, %vm537
      %vm602 = vmand %vm570, %vm538
      %vm603 = vmand %vm571, %vm539
      %vm604 = vmand %vm572, %vm540
      %vm605 = vmand %vm573, %vm541
      %vm606 = vmand %vm574, %vm542
      %vm607 = vmand %vm575, %vm543
      %vm608 = vmand %vm576, %vm544
      %vm609 = vmand %vm577, %vm545
      %vm610 = vmand %vm578, %vm546
      %v611 = vadd.s32 %v297, 16
      %v612 = vadd.s32 %v304, 16
      %v613 = vadd.s32 %v311, 16
      %v614 = vadd.s32 %v318, 16
      %v615 = vadd.s32 %v325, 16
      %v616 = vadd.s32 %v332, 16
      %v617 = vadd.s32 %v339, 16
      %v618 = vadd.s32 %v346, 16
      %v619 = vadd.s32 %v353, 16
      %v620 = vadd.s32 %v360, 16
      %v621 = vadd.s32 %v367, 16
      %v622 = vadd.s32 %v374, 16
      %v623 = vadd.s32 %v381, 16
      %v624 = vadd.s32 %v388, 16
      %v625 = vadd.s32 %v395, 16
      %v626 = vadd.s32 %v402, 16
      %v627 = vadd.s32 %v409, 16
      %v628 = vadd.s32 %v416, 16
      %v629 = vadd.s32 %v423, 16
      %v630 = vadd.s32 %v430, 16
      %v631 = vadd.s32 %v437, 16
      %v632 = vadd.s32 %v444, 16
      %v633 = vadd.s32 %v451, 16
      %v634 = vadd.s32 %v458, 16
      %v635 = vadd.s32 %v465, 16
      %v636 = vadd.s32 %v472, 16
      %v637 = vadd.s32 %v479, 16
      %v638 = vadd.s32 %v486, 16
      %v639 = vadd.s32 %v493, 16
      %v640 = vadd.s32 %v500, 16
      %v641 = vadd.s32 %v507, 16
      %v642 = vadd.s32 %v514, 16
      %v643 = vsel %vm579, %v611, %v297
      %v644 = vsel %vm580, %v612, %v304
      %v645 = vsel %vm581, %v613, %v311
      %v646 = vsel %vm582, %v614, %v318
      %v647 = vsel %vm583, %v615, %v325
      %v648 = vsel %vm584, %v616, %v332
      %v649 = vsel %vm585, %v617, %v339
      %v650 = vsel %vm586, %v618, %v346
      %v651 = vsel %vm587, %v619, %v353
      %v652 = vsel %vm588, %v620, %v360
      %v653 = vsel %vm589, %v621, %v367
      %v654 = vsel %vm590, %v622, %v374
      %v655 = vsel %vm591, %v623, %v381
      %v656 = vsel %vm592, %v624, %v388
      %v657 = vsel %vm593, %v625, %v395
      %v658 = vsel %vm594, %v626, %v402
      %v659 = vsel %vm595, %v627, %v409
      %v660 = vsel %vm596, %v628, %v416
      %v661 = vsel %vm597, %v629, %v423
      %v662 = vsel %vm598, %v630, %v430
      %v663 = vsel %vm599, %v631, %v437
      %v664 = vsel %vm600, %v632, %v444
      %v665 = vsel %vm601, %v633, %v451
      %v666 = vsel %vm602, %v634, %v458
      %v667 = vsel %vm603, %v635, %v465
      %v668 = vsel %vm604, %v636, %v472
      %v669 = vsel %vm605, %v637, %v479
      %v670 = vsel %vm606, %v638, %v486
      %v671 = vsel %vm607, %v639, %v493
      %v672 = vsel %vm608, %v640, %v500
      %v673 = vsel %vm609, %v641, %v507
      %v674 = vsel %vm610, %v642, %v514
      %vm675 = vcmp.ge.s32.totalorder %v259, 16
      %vm676 = vcmp.ge.s32.totalorder %v260, 16
      %vm677 = vcmp.ge.s32.totalorder %v261, 16
      %vm678 = vcmp.ge.s32.totalorder %v262, 16
      %vm679 = vcmp.ge.s32.totalorder %v263, 16
      %vm680 = vcmp.ge.s32.totalorder %v264, 16
      %vm681 = vcmp.ge.s32.totalorder %v265, 16
      %vm682 = vcmp.ge.s32.totalorder %v266, 16
      %vm683 = vcmp.ge.s32.totalorder %v267, 16
      %vm684 = vcmp.ge.s32.totalorder %v268, 16
      %vm685 = vcmp.ge.s32.totalorder %v269, 16
      %vm686 = vcmp.ge.s32.totalorder %v270, 16
      %vm687 = vcmp.ge.s32.totalorder %v271, 16
      %vm688 = vcmp.ge.s32.totalorder %v272, 16
      %vm689 = vcmp.ge.s32.totalorder %v273, 16
      %vm690 = vcmp.ge.s32.totalorder %v274, 16
      %vm691 = vcmp.ge.s32.totalorder %v275, 16
      %vm692 = vcmp.ge.s32.totalorder %v276, 16
      %vm693 = vcmp.ge.s32.totalorder %v277, 16
      %vm694 = vcmp.ge.s32.totalorder %v278, 16
      %vm695 = vcmp.ge.s32.totalorder %v279, 16
      %vm696 = vcmp.ge.s32.totalorder %v280, 16
      %vm697 = vcmp.ge.s32.totalorder %v281, 16
      %vm698 = vcmp.ge.s32.totalorder %v282, 16
      %vm699 = vcmp.ge.s32.totalorder %v283, 16
      %vm700 = vcmp.ge.s32.totalorder %v284, 16
      %vm701 = vcmp.ge.s32.totalorder %v285, 16
      %vm702 = vcmp.ge.s32.totalorder %v286, 16
      %vm703 = vcmp.ge.s32.totalorder %v287, 16
      %vm704 = vcmp.ge.s32.totalorder %v288, 16
      %vm705 = vcmp.ge.s32.totalorder %v289, 16
      %vm706 = vcmp.ge.s32.totalorder %v290, 16
      %vm707 = vcmp.lt.s32.totalorder %v259, 240
      %vm708 = vcmp.lt.s32.totalorder %v260, 240
      %vm709 = vcmp.lt.s32.totalorder %v261, 240
      %vm710 = vcmp.lt.s32.totalorder %v262, 240
      %vm711 = vcmp.lt.s32.totalorder %v263, 240
      %vm712 = vcmp.lt.s32.totalorder %v264, 240
      %vm713 = vcmp.lt.s32.totalorder %v265, 240
      %vm714 = vcmp.lt.s32.totalorder %v266, 240
      %vm715 = vcmp.lt.s32.totalorder %v267, 240
      %vm716 = vcmp.lt.s32.totalorder %v268, 240
      %vm717 = vcmp.lt.s32.totalorder %v269, 240
      %vm718 = vcmp.lt.s32.totalorder %v270, 240
      %vm719 = vcmp.lt.s32.totalorder %v271, 240
      %vm720 = vcmp.lt.s32.totalorder %v272, 240
      %vm721 = vcmp.lt.s32.totalorder %v273, 240
      %vm722 = vcmp.lt.s32.totalorder %v274, 240
      %vm723 = vcmp.lt.s32.totalorder %v275, 240
      %vm724 = vcmp.lt.s32.totalorder %v276, 240
      %vm725 = vcmp.lt.s32.totalorder %v277, 240
      %vm726 = vcmp.lt.s32.totalorder %v278, 240
      %vm727 = vcmp.lt.s32.totalorder %v279, 240
      %vm728 = vcmp.lt.s32.totalorder %v280, 240
      %vm729 = vcmp.lt.s32.totalorder %v281, 240
      %vm730 = vcmp.lt.s32.totalorder %v282, 240
      %vm731 = vcmp.lt.s32.totalorder %v283, 240
      %vm732 = vcmp.lt.s32.totalorder %v284, 240
      %vm733 = vcmp.lt.s32.totalorder %v285, 240
      %vm734 = vcmp.lt.s32.totalorder %v286, 240
      %vm735 = vcmp.lt.s32.totalorder %v287, 240
      %vm736 = vcmp.lt.s32.totalorder %v288, 240
      %vm737 = vcmp.lt.s32.totalorder %v289, 240
      %vm738 = vcmp.lt.s32.totalorder %v290, 240
      %vm739 = vcmp.ge.s32.totalorder %v643, 1
      %vm740 = vcmp.ge.s32.totalorder %v644, 1
      %vm741 = vcmp.ge.s32.totalorder %v645, 1
      %vm742 = vcmp.ge.s32.totalorder %v646, 1
      %vm743 = vcmp.ge.s32.totalorder %v647, 1
      %vm744 = vcmp.ge.s32.totalorder %v648, 1
      %vm745 = vcmp.ge.s32.totalorder %v649, 1
      %vm746 = vcmp.ge.s32.totalorder %v650, 1
      %vm747 = vcmp.ge.s32.totalorder %v651, 1
      %vm748 = vcmp.ge.s32.totalorder %v652, 1
      %vm749 = vcmp.ge.s32.totalorder %v653, 1
      %vm750 = vcmp.ge.s32.totalorder %v654, 1
      %vm751 = vcmp.ge.s32.totalorder %v655, 1
      %vm752 = vcmp.ge.s32.totalorder %v656, 1
      %vm753 = vcmp.ge.s32.totalorder %v657, 1
      %vm754 = vcmp.ge.s32.totalorder %v658, 1
      %vm755 = vcmp.ge.s32.totalorder %v659, 1
      %vm756 = vcmp.ge.s32.totalorder %v660, 1
      %vm757 = vcmp.ge.s32.totalorder %v661, 1
      %vm758 = vcmp.ge.s32.totalorder %v662, 1
      %vm759 = vcmp.ge.s32.totalorder %v663, 1
      %vm760 = vcmp.ge.s32.totalorder %v664, 1
      %vm761 = vcmp.ge.s32.totalorder %v665, 1
      %vm762 = vcmp.ge.s32.totalorder %v666, 1
      %vm763 = vcmp.ge.s32.totalorder %v667, 1
      %vm764 = vcmp.ge.s32.totalorder %v668, 1
      %vm765 = vcmp.ge.s32.totalorder %v669, 1
      %vm766 = vcmp.ge.s32.totalorder %v670, 1
      %vm767 = vcmp.ge.s32.totalorder %v671, 1
      %vm768 = vcmp.ge.s32.totalorder %v672, 1
      %vm769 = vcmp.ge.s32.totalorder %v673, 1
      %vm770 = vcmp.ge.s32.totalorder %v674, 1
      %vm771 = vcmp.lt.s32.totalorder %v643, 15
      %vm772 = vcmp.lt.s32.totalorder %v644, 15
      %vm773 = vcmp.lt.s32.totalorder %v645, 15
      %vm774 = vcmp.lt.s32.totalorder %v646, 15
      %vm775 = vcmp.lt.s32.totalorder %v647, 15
      %vm776 = vcmp.lt.s32.totalorder %v648, 15
      %vm777 = vcmp.lt.s32.totalorder %v649, 15
      %vm778 = vcmp.lt.s32.totalorder %v650, 15
      %vm779 = vcmp.lt.s32.totalorder %v651, 15
      %vm780 = vcmp.lt.s32.totalorder %v652, 15
      %vm781 = vcmp.lt.s32.totalorder %v653, 15
      %vm782 = vcmp.lt.s32.totalorder %v654, 15
      %vm783 = vcmp.lt.s32.totalorder %v655, 15
      %vm784 = vcmp.lt.s32.totalorder %v656, 15
      %vm785 = vcmp.lt.s32.totalorder %v657, 15
      %vm786 = vcmp.lt.s32.totalorder %v658, 15
      %vm787 = vcmp.lt.s32.totalorder %v659, 15
      %vm788 = vcmp.lt.s32.totalorder %v660, 15
      %vm789 = vcmp.lt.s32.totalorder %v661, 15
      %vm790 = vcmp.lt.s32.totalorder %v662, 15
      %vm791 = vcmp.lt.s32.totalorder %v663, 15
      %vm792 = vcmp.lt.s32.totalorder %v664, 15
      %vm793 = vcmp.lt.s32.totalorder %v665, 15
      %vm794 = vcmp.lt.s32.totalorder %v666, 15
      %vm795 = vcmp.lt.s32.totalorder %v667, 15
      %vm796 = vcmp.lt.s32.totalorder %v668, 15
      %vm797 = vcmp.lt.s32.totalorder %v669, 15
      %vm798 = vcmp.lt.s32.totalorder %v670, 15
      %vm799 = vcmp.lt.s32.totalorder %v671, 15
      %vm800 = vcmp.lt.s32.totalorder %v672, 15
      %vm801 = vcmp.lt.s32.totalorder %v673, 15
      %vm802 = vcmp.lt.s32.totalorder %v674, 15
      %v803 = vsel %vm675, 1, 0
      %v804 = vsel %vm676, 1, 0
      %v805 = vsel %vm677, 1, 0
      %v806 = vsel %vm678, 1, 0
      %v807 = vsel %vm679, 1, 0
      %v808 = vsel %vm680, 1, 0
      %v809 = vsel %vm681, 1, 0
      %v810 = vsel %vm682, 1, 0
      %v811 = vsel %vm683, 1, 0
      %v812 = vsel %vm684, 1, 0
      %v813 = vsel %vm685, 1, 0
      %v814 = vsel %vm686, 1, 0
      %v815 = vsel %vm687, 1, 0
      %v816 = vsel %vm688, 1, 0
      %v817 = vsel %vm689, 1, 0
      %v818 = vsel %vm690, 1, 0
      %v819 = vsel %vm691, 1, 0
      %v820 = vsel %vm692, 1, 0
      %v821 = vsel %vm693, 1, 0
      %v822 = vsel %vm694, 1, 0
      %v823 = vsel %vm695, 1, 0
      %v824 = vsel %vm696, 1, 0
      %v825 = vsel %vm697, 1, 0
      %v826 = vsel %vm698, 1, 0
      %v827 = vsel %vm699, 1, 0
      %v828 = vsel %vm700, 1, 0
      %v829 = vsel %vm701, 1, 0
      %v830 = vsel %vm702, 1, 0
      %v831 = vsel %vm703, 1, 0
      %v832 = vsel %vm704, 1, 0
      %v833 = vsel %vm705, 1, 0
      %v834 = vsel %vm706, 1, 0
      %vm835 = vcmp.eq.s32.totalorder %v803, 1
      %vm836 = vcmp.eq.s32.totalorder %v804, 1
      %vm837 = vcmp.eq.s32.totalorder %v805, 1
      %vm838 = vcmp.eq.s32.totalorder %v806, 1
      %vm839 = vcmp.eq.s32.totalorder %v807, 1
      %vm840 = vcmp.eq.s32.totalorder %v808, 1
      %vm841 = vcmp.eq.s32.totalorder %v809, 1
      %vm842 = vcmp.eq.s32.totalorder %v810, 1
      %vm843 = vcmp.eq.s32.totalorder %v811, 1
      %vm844 = vcmp.eq.s32.totalorder %v812, 1
      %vm845 = vcmp.eq.s32.totalorder %v813, 1
      %vm846 = vcmp.eq.s32.totalorder %v814, 1
      %vm847 = vcmp.eq.s32.totalorder %v815, 1
      %vm848 = vcmp.eq.s32.totalorder %v816, 1
      %vm849 = vcmp.eq.s32.totalorder %v817, 1
      %vm850 = vcmp.eq.s32.totalorder %v818, 1
      %vm851 = vcmp.eq.s32.totalorder %v819, 1
      %vm852 = vcmp.eq.s32.totalorder %v820, 1
      %vm853 = vcmp.eq.s32.totalorder %v821, 1
      %vm854 = vcmp.eq.s32.totalorder %v822, 1
      %vm855 = vcmp.eq.s32.totalorder %v823, 1
      %vm856 = vcmp.eq.s32.totalorder %v824, 1
      %vm857 = vcmp.eq.s32.totalorder %v825, 1
      %vm858 = vcmp.eq.s32.totalorder %v826, 1
      %vm859 = vcmp.eq.s32.totalorder %v827, 1
      %vm860 = vcmp.eq.s32.totalorder %v828, 1
      %vm861 = vcmp.eq.s32.totalorder %v829, 1
      %vm862 = vcmp.eq.s32.totalorder %v830, 1
      %vm863 = vcmp.eq.s32.totalorder %v831, 1
      %vm864 = vcmp.eq.s32.totalorder %v832, 1
      %vm865 = vcmp.eq.s32.totalorder %v833, 1
      %vm866 = vcmp.eq.s32.totalorder %v834, 1
      %v867 = vsel %vm835, %v256, 0.0
      %v868 = vsel %vm836, %v257, 0.0
      %v869 = vsel %vm837, %v226, 0.0
      %v870 = vsel %vm838, %v227, 0.0
      %v871 = vsel %vm839, %v228, 0.0
      %v872 = vsel %vm840, %v229, 0.0
      %v873 = vsel %vm841, %v230, 0.0
      %v874 = vsel %vm842, %v231, 0.0
      %v875 = vsel %vm843, %v232, 0.0
      %v876 = vsel %vm844, %v233, 0.0
      %v877 = vsel %vm845, %v234, 0.0
      %v878 = vsel %vm846, %v235, 0.0
      %v879 = vsel %vm847, %v236, 0.0
      %v880 = vsel %vm848, %v237, 0.0
      %v881 = vsel %vm849, %v238, 0.0
      %v882 = vsel %vm850, %v239, 0.0
      %v883 = vsel %vm851, %v240, 0.0
      %v884 = vsel %vm852, %v241, 0.0
      %v885 = vsel %vm853, %v242, 0.0
      %v886 = vsel %vm854, %v243, 0.0
      %v887 = vsel %vm855, %v244, 0.0
      %v888 = vsel %vm856, %v245, 0.0
      %v889 = vsel %vm857, %v246, 0.0
      %v890 = vsel %vm858, %v247, 0.0
      %v891 = vsel %vm859, %v248, 0.0
      %v892 = vsel %vm860, %v249, 0.0
      %v893 = vsel %vm861, %v250, 0.0
      %v894 = vsel %vm862, %v251, 0.0
      %v895 = vsel %vm863, %v252, 0.0
      %v896 = vsel %vm864, %v253, 0.0
      %v897 = vsel %vm865, %v254, 0.0
      %v898 = vsel %vm866, %v255, 0.0
      %v899 = vsel %vm707, 1, 0
      %v900 = vsel %vm708, 1, 0
      %v901 = vsel %vm709, 1, 0
      %v902 = vsel %vm710, 1, 0
      %v903 = vsel %vm711, 1, 0
      %v904 = vsel %vm712, 1, 0
      %v905 = vsel %vm713, 1, 0
      %v906 = vsel %vm714, 1, 0
      %v907 = vsel %vm715, 1, 0
      %v908 = vsel %vm716, 1, 0
      %v909 = vsel %vm717, 1, 0
      %v910 = vsel %vm718, 1, 0
      %v911 = vsel %vm719, 1, 0
      %v912 = vsel %vm720, 1, 0
      %v913 = vsel %vm721, 1, 0
      %v914 = vsel %vm722, 1, 0
      %v915 = vsel %vm723, 1, 0
      %v916 = vsel %vm724, 1, 0
      %v917 = vsel %vm725, 1, 0
      %v918 = vsel %vm726, 1, 0
      %v919 = vsel %vm727, 1, 0
      %v920 = vsel %vm728, 1, 0
      %v921 = vsel %vm729, 1, 0
      %v922 = vsel %vm730, 1, 0
      %v923 = vsel %vm731, 1, 0
      %v924 = vsel %vm732, 1, 0
      %v925 = vsel %vm733, 1, 0
      %v926 = vsel %vm734, 1, 0
      %v927 = vsel %vm735, 1, 0
      %v928 = vsel %vm736, 1, 0
      %v929 = vsel %vm737, 1, 0
      %v930 = vsel %vm738, 1, 0
      %vm931 = vcmp.eq.s32.totalorder %v899, 1
      %vm932 = vcmp.eq.s32.totalorder %v900, 1
      %vm933 = vcmp.eq.s32.totalorder %v901, 1
      %vm934 = vcmp.eq.s32.totalorder %v902, 1
      %vm935 = vcmp.eq.s32.totalorder %v903, 1
      %vm936 = vcmp.eq.s32.totalorder %v904, 1
      %vm937 = vcmp.eq.s32.totalorder %v905, 1
      %vm938 = vcmp.eq.s32.totalorder %v906, 1
      %vm939 = vcmp.eq.s32.totalorder %v907, 1
      %vm940 = vcmp.eq.s32.totalorder %v908, 1
      %vm941 = vcmp.eq.s32.totalorder %v909, 1
      %vm942 = vcmp.eq.s32.totalorder %v910, 1
      %vm943 = vcmp.eq.s32.totalorder %v911, 1
      %vm944 = vcmp.eq.s32.totalorder %v912, 1
      %vm945 = vcmp.eq.s32.totalorder %v913, 1
      %vm946 = vcmp.eq.s32.totalorder %v914, 1
      %vm947 = vcmp.eq.s32.totalorder %v915, 1
      %vm948 = vcmp.eq.s32.totalorder %v916, 1
      %vm949 = vcmp.eq.s32.totalorder %v917, 1
      %vm950 = vcmp.eq.s32.totalorder %v918, 1
      %vm951 = vcmp.eq.s32.totalorder %v919, 1
      %vm952 = vcmp.eq.s32.totalorder %v920, 1
      %vm953 = vcmp.eq.s32.totalorder %v921, 1
      %vm954 = vcmp.eq.s32.totalorder %v922, 1
      %vm955 = vcmp.eq.s32.totalorder %v923, 1
      %vm956 = vcmp.eq.s32.totalorder %v924, 1
      %vm957 = vcmp.eq.s32.totalorder %v925, 1
      %vm958 = vcmp.eq.s32.totalorder %v926, 1
      %vm959 = vcmp.eq.s32.totalorder %v927, 1
      %vm960 = vcmp.eq.s32.totalorder %v928, 1
      %vm961 = vcmp.eq.s32.totalorder %v929, 1
      %vm962 = vcmp.eq.s32.totalorder %v930, 1
      %v963 = vsel %vm931, %v228, 0.0
      %v964 = vsel %vm932, %v229, 0.0
      %v965 = vsel %vm933, %v230, 0.0
      %v966 = vsel %vm934, %v231, 0.0
      %v967 = vsel %vm935, %v232, 0.0
      %v968 = vsel %vm936, %v233, 0.0
      %v969 = vsel %vm937, %v234, 0.0
      %v970 = vsel %vm938, %v235, 0.0
      %v971 = vsel %vm939, %v236, 0.0
      %v972 = vsel %vm940, %v237, 0.0
      %v973 = vsel %vm941, %v238, 0.0
      %v974 = vsel %vm942, %v239, 0.0
      %v975 = vsel %vm943, %v240, 0.0
      %v976 = vsel %vm944, %v241, 0.0
      %v977 = vsel %vm945, %v242, 0.0
      %v978 = vsel %vm946, %v243, 0.0
      %v979 = vsel %vm947, %v244, 0.0
      %v980 = vsel %vm948, %v245, 0.0
      %v981 = vsel %vm949, %v246, 0.0
      %v982 = vsel %vm950, %v247, 0.0
      %v983 = vsel %vm951, %v248, 0.0
      %v984 = vsel %vm952, %v249, 0.0
      %v985 = vsel %vm953, %v250, 0.0
      %v986 = vsel %vm954, %v251, 0.0
      %v987 = vsel %vm955, %v252, 0.0
      %v988 = vsel %vm956, %v253, 0.0
      %v989 = vsel %vm957, %v254, 0.0
      %v990 = vsel %vm958, %v255, 0.0
      %v991 = vsel %vm959, %v256, 0.0
      %v992 = vsel %vm960, %v257, 0.0
      %v993 = vsel %vm961, %v226, 0.0
      %v994 = vsel %vm962, %v227, 0.0
      %1027 = vrot.lane.b32.xlu0 %v226, 4
      %v1028 = vpop.permute.xlu0 %1027
      %1029 = vrot.lane.b32.xlu0 %v227, 4
      %v1030 = vpop.permute.xlu0 %1029
      %1031 = vrot.lane.b32.xlu0 %v228, 4
      %v1032 = vpop.permute.xlu0 %1031
      %1033 = vrot.lane.b32.xlu0 %v229, 4
      %v1034 = vpop.permute.xlu0 %1033
      %1035 = vrot.lane.b32.xlu0 %v230, 4
      %v1036 = vpop.permute.xlu0 %1035
      %1037 = vrot.lane.b32.xlu0 %v231, 4
      %v1038 = vpop.permute.xlu0 %1037
      %1039 = vrot.lane.b32.xlu0 %v232, 4
      %v1040 = vpop.permute.xlu0 %1039
      %1041 = vrot.lane.b32.xlu0 %v233, 4
      %v1042 = vpop.permute.xlu0 %1041
      %1043 = vrot.lane.b32.xlu0 %v234, 4
      %v1044 = vpop.permute.xlu0 %1043
      %1045 = vrot.lane.b32.xlu0 %v235, 4
      %v1046 = vpop.permute.xlu0 %1045
      %1047 = vrot.lane.b32.xlu0 %v236, 4
      %v1048 = vpop.permute.xlu0 %1047
      %1049 = vrot.lane.b32.xlu0 %v237, 4
      %v1050 = vpop.permute.xlu0 %1049
      %1051 = vrot.lane.b32.xlu0 %v238, 4
      %v1052 = vpop.permute.xlu0 %1051
      %1053 = vrot.lane.b32.xlu0 %v239, 4
      %v1054 = vpop.permute.xlu0 %1053
      %1055 = vrot.lane.b32.xlu0 %v240, 4
      %v1056 = vpop.permute.xlu0 %1055
      %1057 = vrot.lane.b32.xlu0 %v241, 4
      %v1058 = vpop.permute.xlu0 %1057
      %1059 = vrot.lane.b32.xlu0 %v242, 4
      %v1060 = vpop.permute.xlu0 %1059
      %1061 = vrot.lane.b32.xlu0 %v243, 4
      %v1062 = vpop.permute.xlu0 %1061
      %1063 = vrot.lane.b32.xlu0 %v244, 4
      %v1064 = vpop.permute.xlu0 %1063
      %1065 = vrot.lane.b32.xlu0 %v245, 4
      %v1066 = vpop.permute.xlu0 %1065
      %1067 = vrot.lane.b32.xlu0 %v246, 4
      %v1068 = vpop.permute.xlu0 %1067
      %1069 = vrot.lane.b32.xlu0 %v247, 4
      %v1070 = vpop.permute.xlu0 %1069
      %1071 = vrot.lane.b32.xlu0 %v248, 4
      %v1072 = vpop.permute.xlu0 %1071
      %1073 = vrot.lane.b32.xlu0 %v249, 4
      %v1074 = vpop.permute.xlu0 %1073
      %1075 = vrot.lane.b32.xlu0 %v250, 4
      %v1076 = vpop.permute.xlu0 %1075
      %1077 = vrot.lane.b32.xlu0 %v251, 4
      %v1078 = vpop.permute.xlu0 %1077
      %1079 = vrot.lane.b32.xlu0 %v252, 4
      %v1080 = vpop.permute.xlu0 %1079
      %1081 = vrot.lane.b32.xlu0 %v253, 4
      %v1082 = vpop.permute.xlu0 %1081
      %1083 = vrot.lane.b32.xlu0 %v254, 4
      %v1084 = vpop.permute.xlu0 %1083
      %1085 = vrot.lane.b32.xlu0 %v255, 4
      %v1086 = vpop.permute.xlu0 %1085
      %1087 = vrot.lane.b32.xlu0 %v256, 4
      %v1088 = vpop.permute.xlu0 %1087
      %1089 = vrot.lane.b32.xlu0 %v257, 4
      %v1090 = vpop.permute.xlu0 %1089
      %1155 = vrot.lane.b32.xlu0 %v963, 8
      %v1156 = vpop.permute.xlu0 %1155
      %1157 = vrot.lane.b32.xlu0 %v964, 8
      %v1158 = vpop.permute.xlu0 %1157
      %1159 = vrot.lane.b32.xlu0 %v965, 8
      %v1160 = vpop.permute.xlu0 %1159
      %1161 = vrot.lane.b32.xlu0 %v966, 8
      %v1162 = vpop.permute.xlu0 %1161
      %1163 = vrot.lane.b32.xlu0 %v967, 8
      %v1164 = vpop.permute.xlu0 %1163
      %1165 = vrot.lane.b32.xlu0 %v968, 8
      %v1166 = vpop.permute.xlu0 %1165
      %1167 = vrot.lane.b32.xlu0 %v969, 8
      %v1168 = vpop.permute.xlu0 %1167
      %1169 = vrot.lane.b32.xlu0 %v970, 8
      %v1170 = vpop.permute.xlu0 %1169
      %1171 = vrot.lane.b32.xlu0 %v971, 8
      %v1172 = vpop.permute.xlu0 %1171
      %1173 = vrot.lane.b32.xlu0 %v972, 8
      %v1174 = vpop.permute.xlu0 %1173
      %1175 = vrot.lane.b32.xlu0 %v973, 8
      %v1176 = vpop.permute.xlu0 %1175
      %1177 = vrot.lane.b32.xlu0 %v974, 8
      %v1178 = vpop.permute.xlu0 %1177
      %1179 = vrot.lane.b32.xlu0 %v975, 8
      %v1180 = vpop.permute.xlu0 %1179
      %1181 = vrot.lane.b32.xlu0 %v976, 8
      %v1182 = vpop.permute.xlu0 %1181
      %1183 = vrot.lane.b32.xlu0 %v977, 8
      %v1184 = vpop.permute.xlu0 %1183
      %1185 = vrot.lane.b32.xlu0 %v978, 8
      %v1186 = vpop.permute.xlu0 %1185
      %1187 = vrot.lane.b32.xlu0 %v979, 8
      %v1188 = vpop.permute.xlu0 %1187
      %1189 = vrot.lane.b32.xlu0 %v980, 8
      %v1190 = vpop.permute.xlu0 %1189
      %1191 = vrot.lane.b32.xlu0 %v981, 8
      %v1192 = vpop.permute.xlu0 %1191
      %1193 = vrot.lane.b32.xlu0 %v982, 8
      %v1194 = vpop.permute.xlu0 %1193
      %1195 = vrot.lane.b32.xlu0 %v983, 8
      %v1196 = vpop.permute.xlu0 %1195
      %1197 = vrot.lane.b32.xlu0 %v984, 8
      %v1198 = vpop.permute.xlu0 %1197
      %1199 = vrot.lane.b32.xlu0 %v985, 8
      %v1200 = vpop.permute.xlu0 %1199
      %1201 = vrot.lane.b32.xlu0 %v986, 8
      %v1202 = vpop.permute.xlu0 %1201
      %1203 = vrot.lane.b32.xlu0 %v987, 8
      %v1204 = vpop.permute.xlu0 %1203
      %1205 = vrot.lane.b32.xlu0 %v988, 8
      %v1206 = vpop.permute.xlu0 %1205
      %1207 = vrot.lane.b32.xlu0 %v989, 8
      %v1208 = vpop.permute.xlu0 %1207
      %1209 = vrot.lane.b32.xlu0 %v990, 8
      %v1210 = vpop.permute.xlu0 %1209
      %1211 = vrot.lane.b32.xlu0 %v991, 8
      %v1212 = vpop.permute.xlu0 %1211
      %1213 = vrot.lane.b32.xlu0 %v992, 8
      %v1214 = vpop.permute.xlu0 %1213
      %1215 = vrot.lane.b32.xlu0 %v993, 8
      %v1216 = vpop.permute.xlu0 %1215
      %1217 = vrot.lane.b32.xlu0 %v994, 8
      %v1218 = vpop.permute.xlu0 %1217
      %vm1251 = vcmask 31744
      %v1252 = vsel %vm1251, %v867, %v1028
      %v1253 = vsel %vm1251, %v868, %v1030
      %v1254 = vsel %vm1251, %v869, %v1032
      %v1255 = vsel %vm1251, %v870, %v1034
      %v1256 = vsel %vm1251, %v871, %v1036
      %v1257 = vsel %vm1251, %v872, %v1038
      %v1258 = vsel %vm1251, %v873, %v1040
      %v1259 = vsel %vm1251, %v874, %v1042
      %v1260 = vsel %vm1251, %v875, %v1044
      %v1261 = vsel %vm1251, %v876, %v1046
      %v1262 = vsel %vm1251, %v877, %v1048
      %v1263 = vsel %vm1251, %v878, %v1050
      %v1264 = vsel %vm1251, %v879, %v1052
      %v1265 = vsel %vm1251, %v880, %v1054
      %v1266 = vsel %vm1251, %v881, %v1056
      %v1267 = vsel %vm1251, %v882, %v1058
      %v1268 = vsel %vm1251, %v883, %v1060
      %v1269 = vsel %vm1251, %v884, %v1062
      %v1270 = vsel %vm1251, %v885, %v1064
      %v1271 = vsel %vm1251, %v886, %v1066
      %v1272 = vsel %vm1251, %v887, %v1068
      %v1273 = vsel %vm1251, %v888, %v1070
      %v1274 = vsel %vm1251, %v889, %v1072
      %v1275 = vsel %vm1251, %v890, %v1074
      %v1276 = vsel %vm1251, %v891, %v1076
      %v1277 = vsel %vm1251, %v892, %v1078
      %v1278 = vsel %vm1251, %v893, %v1080
      %v1279 = vsel %vm1251, %v894, %v1082
      %v1280 = vsel %vm1251, %v895, %v1084
      %v1281 = vsel %vm1251, %v896, %v1086
      %v1282 = vsel %vm1251, %v897, %v1088
      %v1283 = vsel %vm1251, %v898, %v1090
      %vm1284 = vcmask 64512
      %v1285 = vsel %vm1284, %v1252, %v1156
      %v1286 = vsel %vm1284, %v1253, %v1158
      %v1287 = vsel %vm1284, %v1254, %v1160
      %v1288 = vsel %vm1284, %v1255, %v1162
      %v1289 = vsel %vm1284, %v1256, %v1164
      %v1290 = vsel %vm1284, %v1257, %v1166
      %v1291 = vsel %vm1284, %v1258, %v1168
      %v1292 = vsel %vm1284, %v1259, %v1170
      %v1293 = vsel %vm1284, %v1260, %v1172
      %v1294 = vsel %vm1284, %v1261, %v1174
      %v1295 = vsel %vm1284, %v1262, %v1176
      %v1296 = vsel %vm1284, %v1263, %v1178
      %v1297 = vsel %vm1284, %v1264, %v1180
      %v1298 = vsel %vm1284, %v1265, %v1182
      %v1299 = vsel %vm1284, %v1266, %v1184
      %v1300 = vsel %vm1284, %v1267, %v1186
      %v1301 = vsel %vm1284, %v1268, %v1188
      %v1302 = vsel %vm1284, %v1269, %v1190
      %v1303 = vsel %vm1284, %v1270, %v1192
      %v1304 = vsel %vm1284, %v1271, %v1194
      %v1305 = vsel %vm1284, %v1272, %v1196
      %v1306 = vsel %vm1284, %v1273, %v1198
      %v1307 = vsel %vm1284, %v1274, %v1200
      %v1308 = vsel %vm1284, %v1275, %v1202
      %v1309 = vsel %vm1284, %v1276, %v1204
      %v1310 = vsel %vm1284, %v1277, %v1206
      %v1311 = vsel %vm1284, %v1278, %v1208
      %v1312 = vsel %vm1284, %v1279, %v1210
      %v1313 = vsel %vm1284, %v1280, %v1212
      %v1314 = vsel %vm1284, %v1281, %v1214
      %v1315 = vsel %vm1284, %v1282, %v1216
      %v1316 = vsel %vm1284, %v1283, %v1218
      %v1317 = vpack.c.bf16 %v1286, %v1285
      %v1318 = vpack.c.bf16 %v1288, %v1287
      %v1319 = vpack.c.bf16 %v1290, %v1289
      %v1320 = vpack.c.bf16 %v1292, %v1291
      %v1321 = vpack.c.bf16 %v1294, %v1293
      %v1322 = vpack.c.bf16 %v1296, %v1295
      %v1323 = vpack.c.bf16 %v1298, %v1297
      %v1324 = vpack.c.bf16 %v1300, %v1299
      %v1325 = vpack.c.bf16 %v1302, %v1301
      %v1326 = vpack.c.bf16 %v1304, %v1303
      %v1327 = vpack.c.bf16 %v1306, %v1305
      %v1328 = vpack.c.bf16 %v1308, %v1307
      %v1329 = vpack.c.bf16 %v1310, %v1309
      %v1330 = vpack.c.bf16 %v1312, %v1311
      %v1331 = vpack.c.bf16 %v1314, %v1313
      %v1332 = vpack.c.bf16 %v1316, %v1315
      %v1333 = vld [vmem:[%s1] sm:$0xff]
      %v1334 = vld [vmem:[%s1 + $0x8] sm:$0xf]
      %v1335 = vld [vmem:[%s1 + $0xc] sm:$0x33]
      %v1336 = vld [vmem:[%s1 + $0x14] sm:$0x3]
      %v1341 = vunpack.c.l.b16 %v1333
      %v1342 = vunpack.c.h.b16 %v1333
      %v1343 = vunpack.c.l.b16 %v1334
      %v1344 = vunpack.c.l.b16 %v1335
      %v1345 = vunpack.c.h.b16 %v1335
      %v1346 = vunpack.c.l.b16 %v1336
      %v1347 = vpack.c.b16 %v1344, %v1341
      %v1348 = vpack.c.b16 %v1345, %v1342
      %v1349 = vpack.c.b16 %v1346, %v1343
      %vm1350 = vcmask 97280
      %v1352 = vsel %vm1350, %v1317, 0
      %v1355 = vsel %vm1350, %v1318, 0
      %v1358 = vsel %vm1350, %v1319, 0
      %v1361 = vsel %vm1350, %v1320, 0
      %v1364 = vsel %vm1350, %v1321, 0
      %v1367 = vsel %vm1350, %v1322, 0
      %v1370 = vsel %vm1350, %v1323, 0
      %v1373 = vsel %vm1350, %v1324, 0
      %v1376 = vsel %vm1350, %v1325, 0
      %v1379 = vsel %vm1350, %v1326, 0
      %v1382 = vsel %vm1350, %v1327, 0
      %v1385 = vsel %vm1350, %v1328, 0
      %v1388 = vsel %vm1350, %v1329, 0
      %v1391 = vsel %vm1350, %v1330, 0
      %v1394 = vsel %vm1350, %v1331, 0
      %v1397 = vsel %vm1350, %v1332, 0
      %vm1399 = vcmask 1045504
      %v1401 = vsel %vm1399, %v1347, 0
      %v1404 = vsel %vm1399, %v1348, 0
      %v1407 = vsel %vm1399, %v1349, 0
      %1409 = vmatpush.bf16.msra.mxu0 0
      %1410 = vmatpush.bf16.msra.mxu0 0
      %1411 = vmatpush.bf16.msra.mxu0 0
      %1412 = vmatpush.bf16.msra.mxu0 0
      %1413 = vmatpush.bf16.msra.mxu0 0
      %1414 = vmatpush.bf16.msra.mxu0 0
      %1415 = vmatpush.bf16.msra.mxu0 0
      %1416 = vmatpush.bf16.msra.mxu0 %v1401
      %1417 = vmatmul.bf16.gmra.mxu0 %v1352
      %v1418 = vpop.f32.mrf.mxu0
      %v1419 = vadd.f32 0.0, %v1418
      %v1420 = vpop.f32.mrf.mxu0
      %v1421 = vadd.f32 0.0, %v1420
      %1422 = vmatmul.bf16.gmra.mxu0 %v1355
      %v1423 = vpop.f32.mrf.mxu0
      %v1424 = vadd.f32 0.0, %v1423
      %v1425 = vpop.f32.mrf.mxu0
      %v1426 = vadd.f32 0.0, %v1425
      %1427 = vmatmul.bf16.gmra.mxu0 %v1358
      %v1428 = vpop.f32.mrf.mxu0
      %v1429 = vadd.f32 0.0, %v1428
      %v1430 = vpop.f32.mrf.mxu0
      %v1431 = vadd.f32 0.0, %v1430
      %1432 = vmatmul.bf16.gmra.mxu0 %v1361
      %v1433 = vpop.f32.mrf.mxu0
      %v1434 = vadd.f32 0.0, %v1433
      %v1435 = vpop.f32.mrf.mxu0
      %v1436 = vadd.f32 0.0, %v1435
      %1437 = vmatmul.bf16.gmra.mxu0 %v1364
      %v1438 = vpop.f32.mrf.mxu0
      %v1439 = vadd.f32 0.0, %v1438
      %v1440 = vpop.f32.mrf.mxu0
      %v1441 = vadd.f32 0.0, %v1440
      %1442 = vmatmul.bf16.gmra.mxu0 %v1367
      %v1443 = vpop.f32.mrf.mxu0
      %v1444 = vadd.f32 0.0, %v1443
      %v1445 = vpop.f32.mrf.mxu0
      %v1446 = vadd.f32 0.0, %v1445
      %1447 = vmatmul.bf16.gmra.mxu0 %v1370
      %v1448 = vpop.f32.mrf.mxu0
      %v1449 = vadd.f32 0.0, %v1448
      %v1450 = vpop.f32.mrf.mxu0
      %v1451 = vadd.f32 0.0, %v1450
      %1452 = vmatmul.bf16.gmra.mxu0 %v1373
      %v1453 = vpop.f32.mrf.mxu0
      %v1454 = vadd.f32 0.0, %v1453
      %v1455 = vpop.f32.mrf.mxu0
      %v1456 = vadd.f32 0.0, %v1455
      %1457 = vmatmul.bf16.gmra.mxu0 %v1376
      %v1458 = vpop.f32.mrf.mxu0
      %v1459 = vadd.f32 0.0, %v1458
      %v1460 = vpop.f32.mrf.mxu0
      %v1461 = vadd.f32 0.0, %v1460
      %1462 = vmatmul.bf16.gmra.mxu0 %v1379
      %v1463 = vpop.f32.mrf.mxu0
      %v1464 = vadd.f32 0.0, %v1463
      %v1465 = vpop.f32.mrf.mxu0
      %v1466 = vadd.f32 0.0, %v1465
      %1467 = vmatmul.bf16.gmra.mxu0 %v1382
      %v1468 = vpop.f32.mrf.mxu0
      %v1469 = vadd.f32 0.0, %v1468
      %v1470 = vpop.f32.mrf.mxu0
      %v1471 = vadd.f32 0.0, %v1470
      %1472 = vmatmul.bf16.gmra.mxu0 %v1385
      %v1473 = vpop.f32.mrf.mxu0
      %v1474 = vadd.f32 0.0, %v1473
      %v1475 = vpop.f32.mrf.mxu0
      %v1476 = vadd.f32 0.0, %v1475
      %1477 = vmatmul.bf16.gmra.mxu0 %v1388
      %v1478 = vpop.f32.mrf.mxu0
      %v1479 = vadd.f32 0.0, %v1478
      %v1480 = vpop.f32.mrf.mxu0
      %v1481 = vadd.f32 0.0, %v1480
      %1482 = vmatmul.bf16.gmra.mxu0 %v1391
      %v1483 = vpop.f32.mrf.mxu0
      %v1484 = vadd.f32 0.0, %v1483
      %v1485 = vpop.f32.mrf.mxu0
      %v1486 = vadd.f32 0.0, %v1485
      %1487 = vmatmul.bf16.gmra.mxu0 %v1394
      %v1488 = vpop.f32.mrf.mxu0
      %v1489 = vadd.f32 0.0, %v1488
      %v1490 = vpop.f32.mrf.mxu0
      %v1491 = vadd.f32 0.0, %v1490
      %1492 = vmatmul.bf16.gmra.mxu0 %v1397
      %v1493 = vpop.f32.mrf.mxu0
      %v1494 = vadd.f32 0.0, %v1493
      %v1495 = vpop.f32.mrf.mxu0
      %v1496 = vadd.f32 0.0, %v1495
      %1497 = vdwg.mxu0
      %1498 = vmatpush.bf16.msra.mxu0 0
      %1499 = vmatpush.bf16.msra.mxu0 0
      %1500 = vmatpush.bf16.msra.mxu0 0
      %1501 = vmatpush.bf16.msra.mxu0 0
      %1502 = vmatpush.bf16.msra.mxu0 0
      %1503 = vmatpush.bf16.msra.mxu0 0
      %1504 = vmatpush.bf16.msra.mxu0 0
      %1505 = vmatpush.bf16.msra.mxu0 %v1404
      %1506 = vmatmul.bf16.gmra.mxu0 %v1352
      %v1507 = vpop.f32.mrf.mxu0
      %v1508 = vadd.f32 0.0, %v1507
      %v1509 = vpop.f32.mrf.mxu0
      %v1510 = vadd.f32 0.0, %v1509
      %1511 = vmatmul.bf16.gmra.mxu0 %v1355
      %v1512 = vpop.f32.mrf.mxu0
      %v1513 = vadd.f32 0.0, %v1512
      %v1514 = vpop.f32.mrf.mxu0
      %v1515 = vadd.f32 0.0, %v1514
      %1516 = vmatmul.bf16.gmra.mxu0 %v1358
      %v1517 = vpop.f32.mrf.mxu0
      %v1518 = vadd.f32 0.0, %v1517
      %v1519 = vpop.f32.mrf.mxu0
      %v1520 = vadd.f32 0.0, %v1519
      %1521 = vmatmul.bf16.gmra.mxu0 %v1361
      %v1522 = vpop.f32.mrf.mxu0
      %v1523 = vadd.f32 0.0, %v1522
      %v1524 = vpop.f32.mrf.mxu0
      %v1525 = vadd.f32 0.0, %v1524
      %1526 = vmatmul.bf16.gmra.mxu0 %v1364
      %v1527 = vpop.f32.mrf.mxu0
      %v1528 = vadd.f32 0.0, %v1527
      %v1529 = vpop.f32.mrf.mxu0
      %v1530 = vadd.f32 0.0, %v1529
      %1531 = vmatmul.bf16.gmra.mxu0 %v1367
      %v1532 = vpop.f32.mrf.mxu0
      %v1533 = vadd.f32 0.0, %v1532
      %v1534 = vpop.f32.mrf.mxu0
      %v1535 = vadd.f32 0.0, %v1534
      %1536 = vmatmul.bf16.gmra.mxu0 %v1370
      %v1537 = vpop.f32.mrf.mxu0
      %v1538 = vadd.f32 0.0, %v1537
      %v1539 = vpop.f32.mrf.mxu0
      %v1540 = vadd.f32 0.0, %v1539
      %1541 = vmatmul.bf16.gmra.mxu0 %v1373
      %v1542 = vpop.f32.mrf.mxu0
      %v1543 = vadd.f32 0.0, %v1542
      %v1544 = vpop.f32.mrf.mxu0
      %v1545 = vadd.f32 0.0, %v1544
      %1546 = vmatmul.bf16.gmra.mxu0 %v1376
      %v1547 = vpop.f32.mrf.mxu0
      %v1548 = vadd.f32 0.0, %v1547
      %v1549 = vpop.f32.mrf.mxu0
      %v1550 = vadd.f32 0.0, %v1549
      %1551 = vmatmul.bf16.gmra.mxu0 %v1379
      %v1552 = vpop.f32.mrf.mxu0
      %v1553 = vadd.f32 0.0, %v1552
      %v1554 = vpop.f32.mrf.mxu0
      %v1555 = vadd.f32 0.0, %v1554
      %1556 = vmatmul.bf16.gmra.mxu0 %v1382
      %v1557 = vpop.f32.mrf.mxu0
      %v1558 = vadd.f32 0.0, %v1557
      %v1559 = vpop.f32.mrf.mxu0
      %v1560 = vadd.f32 0.0, %v1559
      %1561 = vmatmul.bf16.gmra.mxu0 %v1385
      %v1562 = vpop.f32.mrf.mxu0
      %v1563 = vadd.f32 0.0, %v1562
      %v1564 = vpop.f32.mrf.mxu0
      %v1565 = vadd.f32 0.0, %v1564
      %1566 = vmatmul.bf16.gmra.mxu0 %v1388
      %v1567 = vpop.f32.mrf.mxu0
      %v1568 = vadd.f32 0.0, %v1567
      %v1569 = vpop.f32.mrf.mxu0
      %v1570 = vadd.f32 0.0, %v1569
      %1571 = vmatmul.bf16.gmra.mxu0 %v1391
      %v1572 = vpop.f32.mrf.mxu0
      %v1573 = vadd.f32 0.0, %v1572
      %v1574 = vpop.f32.mrf.mxu0
      %v1575 = vadd.f32 0.0, %v1574
      %1576 = vmatmul.bf16.gmra.mxu0 %v1394
      %v1577 = vpop.f32.mrf.mxu0
      %v1578 = vadd.f32 0.0, %v1577
      %v1579 = vpop.f32.mrf.mxu0
      %v1580 = vadd.f32 0.0, %v1579
      %1581 = vmatmul.bf16.gmra.mxu0 %v1397
      %v1582 = vpop.f32.mrf.mxu0
      %v1583 = vadd.f32 0.0, %v1582
      %v1584 = vpop.f32.mrf.mxu0
      %v1585 = vadd.f32 0.0, %v1584
      %1586 = vdwg.mxu0
      %1587 = vmatpush.bf16.msra.mxu0 0
      %1588 = vmatpush.bf16.msra.mxu0 0
      %1589 = vmatpush.bf16.msra.mxu0 0
      %1590 = vmatpush.bf16.msra.mxu0 0
      %1591 = vmatpush.bf16.msra.mxu0 0
      %1592 = vmatpush.bf16.msra.mxu0 0
      %1593 = vmatpush.bf16.msra.mxu0 0
      %1594 = vmatpush.bf16.msra.mxu0 %v1407
      %1595 = vmatmul.bf16.gmra.mxu0 %v1352
      %v1596 = vpop.f32.mrf.mxu0
      %v1597 = vadd.f32 0.0, %v1596
      %v1598 = vpop.f32.mrf.mxu0
      %v1599 = vadd.f32 0.0, %v1598
      %1600 = vmatmul.bf16.gmra.mxu0 %v1355
      %v1601 = vpop.f32.mrf.mxu0
      %v1602 = vadd.f32 0.0, %v1601
      %v1603 = vpop.f32.mrf.mxu0
      %v1604 = vadd.f32 0.0, %v1603
      %1605 = vmatmul.bf16.gmra.mxu0 %v1358
      %v1606 = vpop.f32.mrf.mxu0
      %v1607 = vadd.f32 0.0, %v1606
      %v1608 = vpop.f32.mrf.mxu0
      %v1609 = vadd.f32 0.0, %v1608
      %1610 = vmatmul.bf16.gmra.mxu0 %v1361
      %v1611 = vpop.f32.mrf.mxu0
      %v1612 = vadd.f32 0.0, %v1611
      %v1613 = vpop.f32.mrf.mxu0
      %v1614 = vadd.f32 0.0, %v1613
      %1615 = vmatmul.bf16.gmra.mxu0 %v1364
      %v1616 = vpop.f32.mrf.mxu0
      %v1617 = vadd.f32 0.0, %v1616
      %v1618 = vpop.f32.mrf.mxu0
      %v1619 = vadd.f32 0.0, %v1618
      %1620 = vmatmul.bf16.gmra.mxu0 %v1367
      %v1621 = vpop.f32.mrf.mxu0
      %v1622 = vadd.f32 0.0, %v1621
      %v1623 = vpop.f32.mrf.mxu0
      %v1624 = vadd.f32 0.0, %v1623
      %1625 = vmatmul.bf16.gmra.mxu0 %v1370
      %v1626 = vpop.f32.mrf.mxu0
      %v1627 = vadd.f32 0.0, %v1626
      %v1628 = vpop.f32.mrf.mxu0
      %v1629 = vadd.f32 0.0, %v1628
      %1630 = vmatmul.bf16.gmra.mxu0 %v1373
      %v1631 = vpop.f32.mrf.mxu0
      %v1632 = vadd.f32 0.0, %v1631
      %v1633 = vpop.f32.mrf.mxu0
      %v1634 = vadd.f32 0.0, %v1633
      %1635 = vmatmul.bf16.gmra.mxu0 %v1376
      %v1636 = vpop.f32.mrf.mxu0
      %v1637 = vadd.f32 0.0, %v1636
      %v1638 = vpop.f32.mrf.mxu0
      %v1639 = vadd.f32 0.0, %v1638
      %1640 = vmatmul.bf16.gmra.mxu0 %v1379
      %v1641 = vpop.f32.mrf.mxu0
      %v1642 = vadd.f32 0.0, %v1641
      %v1643 = vpop.f32.mrf.mxu0
      %v1644 = vadd.f32 0.0, %v1643
      %1645 = vmatmul.bf16.gmra.mxu0 %v1382
      %v1646 = vpop.f32.mrf.mxu0
      %v1647 = vadd.f32 0.0, %v1646
      %v1648 = vpop.f32.mrf.mxu0
      %v1649 = vadd.f32 0.0, %v1648
      %1650 = vmatmul.bf16.gmra.mxu0 %v1385
      %v1651 = vpop.f32.mrf.mxu0
      %v1652 = vadd.f32 0.0, %v1651
      %v1653 = vpop.f32.mrf.mxu0
      %v1654 = vadd.f32 0.0, %v1653
      %1655 = vmatmul.bf16.gmra.mxu0 %v1388
      %v1656 = vpop.f32.mrf.mxu0
      %v1657 = vadd.f32 0.0, %v1656
      %v1658 = vpop.f32.mrf.mxu0
      %v1659 = vadd.f32 0.0, %v1658
      %1660 = vmatmul.bf16.gmra.mxu0 %v1391
      %v1661 = vpop.f32.mrf.mxu0
      %v1662 = vadd.f32 0.0, %v1661
      %v1663 = vpop.f32.mrf.mxu0
      %v1664 = vadd.f32 0.0, %v1663
      %1665 = vmatmul.bf16.gmra.mxu0 %v1394
      %v1666 = vpop.f32.mrf.mxu0
      %v1667 = vadd.f32 0.0, %v1666
      %v1668 = vpop.f32.mrf.mxu0
      %v1669 = vadd.f32 0.0, %v1668
      %1670 = vmatmul.bf16.gmra.mxu0 %v1397
      %v1671 = vpop.f32.mrf.mxu0
      %v1672 = vadd.f32 0.0, %v1671
      %v1673 = vpop.f32.mrf.mxu0
      %v1674 = vadd.f32 0.0, %v1673
      %1675 = vdwg.mxu0
      %v1676 = vrot.slane %v1419, 7
      %v1677 = vrot.slane %v1421, 7
      %v1678 = vrot.slane %v1424, 7
      %v1679 = vrot.slane %v1426, 7
      %v1680 = vrot.slane %v1429, 7
      %v1681 = vrot.slane %v1431, 7
      %v1682 = vrot.slane %v1434, 7
      %v1683 = vrot.slane %v1436, 7
      %v1684 = vrot.slane %v1439, 7
      %v1685 = vrot.slane %v1441, 7
      %v1686 = vrot.slane %v1444, 7
      %v1687 = vrot.slane %v1446, 7
      %v1688 = vrot.slane %v1449, 7
      %v1689 = vrot.slane %v1451, 7
      %v1690 = vrot.slane %v1454, 7
      %v1691 = vrot.slane %v1456, 7
      %v1692 = vrot.slane %v1459, 7
      %v1693 = vrot.slane %v1461, 7
      %v1694 = vrot.slane %v1464, 7
      %v1695 = vrot.slane %v1466, 7
      %v1696 = vrot.slane %v1469, 7
      %v1697 = vrot.slane %v1471, 7
      %v1698 = vrot.slane %v1474, 7
      %v1699 = vrot.slane %v1476, 7
      %v1700 = vrot.slane %v1479, 7
      %v1701 = vrot.slane %v1481, 7
      %v1702 = vrot.slane %v1484, 7
      %v1703 = vrot.slane %v1486, 7
      %v1704 = vrot.slane %v1489, 7
      %v1705 = vrot.slane %v1491, 7
      %v1706 = vrot.slane %v1494, 7
      %v1707 = vrot.slane %v1496, 7
      %vm1708 = vcmp.lt.s32.totalorder %v259, 1
      %v1709 = vsel %vm1708, %v1706, %v1707
      %v1710 = vsel %vm1708, %v1705, %v1706
      %v1711 = vsel %vm1708, %v1704, %v1705
      %v1712 = vsel %vm1708, %v1703, %v1704
      %v1713 = vsel %vm1708, %v1702, %v1703
      %v1714 = vsel %vm1708, %v1701, %v1702
      %v1715 = vsel %vm1708, %v1700, %v1701
      %v1716 = vsel %vm1708, %v1699, %v1700
      %v1717 = vsel %vm1708, %v1698, %v1699
      %v1718 = vsel %vm1708, %v1697, %v1698
      %v1719 = vsel %vm1708, %v1696, %v1697
      %v1720 = vsel %vm1708, %v1695, %v1696
      %v1721 = vsel %vm1708, %v1694, %v1695
      %v1722 = vsel %vm1708, %v1693, %v1694
      %v1723 = vsel %vm1708, %v1692, %v1693
      %v1724 = vsel %vm1708, %v1691, %v1692
      %v1725 = vsel %vm1708, %v1690, %v1691
      %v1726 = vsel %vm1708, %v1689, %v1690
      %v1727 = vsel %vm1708, %v1688, %v1689
      %v1728 = vsel %vm1708, %v1687, %v1688
      %v1729 = vsel %vm1708, %v1686, %v1687
      %v1730 = vsel %vm1708, %v1685, %v1686
      %v1731 = vsel %vm1708, %v1684, %v1685
      %v1732 = vsel %vm1708, %v1683, %v1684
      %v1733 = vsel %vm1708, %v1682, %v1683
      %v1734 = vsel %vm1708, %v1681, %v1682
      %v1735 = vsel %vm1708, %v1680, %v1681
      %v1736 = vsel %vm1708, %v1679, %v1680
      %v1737 = vsel %vm1708, %v1678, %v1679
      %v1738 = vsel %vm1708, %v1677, %v1678
      %v1739 = vsel %vm1708, %v1676, %v1677
      %v1740 = vsel %vm1708, %v1707, %v1676
      %v1741 = vsel %vm739, 1, 0
      %v1742 = vsel %vm740, 1, 0
      %v1743 = vsel %vm741, 1, 0
      %v1744 = vsel %vm742, 1, 0
      %v1745 = vsel %vm743, 1, 0
      %v1746 = vsel %vm744, 1, 0
      %v1747 = vsel %vm745, 1, 0
      %v1748 = vsel %vm746, 1, 0
      %v1749 = vsel %vm747, 1, 0
      %v1750 = vsel %vm748, 1, 0
      %v1751 = vsel %vm749, 1, 0
      %v1752 = vsel %vm750, 1, 0
      %v1753 = vsel %vm751, 1, 0
      %v1754 = vsel %vm752, 1, 0
      %v1755 = vsel %vm753, 1, 0
      %v1756 = vsel %vm754, 1, 0
      %v1757 = vsel %vm755, 1, 0
      %v1758 = vsel %vm756, 1, 0
      %v1759 = vsel %vm757, 1, 0
      %v1760 = vsel %vm758, 1, 0
      %v1761 = vsel %vm759, 1, 0
      %v1762 = vsel %vm760, 1, 0
      %v1763 = vsel %vm761, 1, 0
      %v1764 = vsel %vm762, 1, 0
      %v1765 = vsel %vm763, 1, 0
      %v1766 = vsel %vm764, 1, 0
      %v1767 = vsel %vm765, 1, 0
      %v1768 = vsel %vm766, 1, 0
      %v1769 = vsel %vm767, 1, 0
      %v1770 = vsel %vm768, 1, 0
      %v1771 = vsel %vm769, 1, 0
      %v1772 = vsel %vm770, 1, 0
      %vm1773 = vcmp.eq.s32.totalorder %v1741, 1
      %vm1774 = vcmp.eq.s32.totalorder %v1742, 1
      %vm1775 = vcmp.eq.s32.totalorder %v1743, 1
      %vm1776 = vcmp.eq.s32.totalorder %v1744, 1
      %vm1777 = vcmp.eq.s32.totalorder %v1745, 1
      %vm1778 = vcmp.eq.s32.totalorder %v1746, 1
      %vm1779 = vcmp.eq.s32.totalorder %v1747, 1
      %vm1780 = vcmp.eq.s32.totalorder %v1748, 1
      %vm1781 = vcmp.eq.s32.totalorder %v1749, 1
      %vm1782 = vcmp.eq.s32.totalorder %v1750, 1
      %vm1783 = vcmp.eq.s32.totalorder %v1751, 1
      %vm1784 = vcmp.eq.s32.totalorder %v1752, 1
      %vm1785 = vcmp.eq.s32.totalorder %v1753, 1
      %vm1786 = vcmp.eq.s32.totalorder %v1754, 1
      %vm1787 = vcmp.eq.s32.totalorder %v1755, 1
      %vm1788 = vcmp.eq.s32.totalorder %v1756, 1
      %vm1789 = vcmp.eq.s32.totalorder %v1757, 1
      %vm1790 = vcmp.eq.s32.totalorder %v1758, 1
      %vm1791 = vcmp.eq.s32.totalorder %v1759, 1
      %vm1792 = vcmp.eq.s32.totalorder %v1760, 1
      %vm1793 = vcmp.eq.s32.totalorder %v1761, 1
      %vm1794 = vcmp.eq.s32.totalorder %v1762, 1
      %vm1795 = vcmp.eq.s32.totalorder %v1763, 1
      %vm1796 = vcmp.eq.s32.totalorder %v1764, 1
      %vm1797 = vcmp.eq.s32.totalorder %v1765, 1
      %vm1798 = vcmp.eq.s32.totalorder %v1766, 1
      %vm1799 = vcmp.eq.s32.totalorder %v1767, 1
      %vm1800 = vcmp.eq.s32.totalorder %v1768, 1
      %vm1801 = vcmp.eq.s32.totalorder %v1769, 1
      %vm1802 = vcmp.eq.s32.totalorder %v1770, 1
      %vm1803 = vcmp.eq.s32.totalorder %v1771, 1
      %vm1804 = vcmp.eq.s32.totalorder %v1772, 1
      %v1805 = vsel %vm1773, %v1740, 0.0
      %v1806 = vsel %vm1774, %v1739, 0.0
      %v1807 = vsel %vm1775, %v1738, 0.0
      %v1808 = vsel %vm1776, %v1737, 0.0
      %v1809 = vsel %vm1777, %v1736, 0.0
      %v1810 = vsel %vm1778, %v1735, 0.0
      %v1811 = vsel %vm1779, %v1734, 0.0
      %v1812 = vsel %vm1780, %v1733, 0.0
      %v1813 = vsel %vm1781, %v1732, 0.0
      %v1814 = vsel %vm1782, %v1731, 0.0
      %v1815 = vsel %vm1783, %v1730, 0.0
      %v1816 = vsel %vm1784, %v1729, 0.0
      %v1817 = vsel %vm1785, %v1728, 0.0
      %v1818 = vsel %vm1786, %v1727, 0.0
      %v1819 = vsel %vm1787, %v1726, 0.0
      %v1820 = vsel %vm1788, %v1725, 0.0
      %v1821 = vsel %vm1789, %v1724, 0.0
      %v1822 = vsel %vm1790, %v1723, 0.0
      %v1823 = vsel %vm1791, %v1722, 0.0
      %v1824 = vsel %vm1792, %v1721, 0.0
      %v1825 = vsel %vm1793, %v1720, 0.0
      %v1826 = vsel %vm1794, %v1719, 0.0
      %v1827 = vsel %vm1795, %v1718, 0.0
      %v1828 = vsel %vm1796, %v1717, 0.0
      %v1829 = vsel %vm1797, %v1716, 0.0
      %v1830 = vsel %vm1798, %v1715, 0.0
      %v1831 = vsel %vm1799, %v1714, 0.0
      %v1832 = vsel %vm1800, %v1713, 0.0
      %v1833 = vsel %vm1801, %v1712, 0.0
      %v1834 = vsel %vm1802, %v1711, 0.0
      %v1835 = vsel %vm1803, %v1710, 0.0
      %v1836 = vsel %vm1804, %v1709, 0.0
      %v1837 = vrot.slane %v1597, 1
      %v1838 = vrot.slane %v1599, 1
      %v1839 = vrot.slane %v1602, 1
      %v1840 = vrot.slane %v1604, 1
      %v1841 = vrot.slane %v1607, 1
      %v1842 = vrot.slane %v1609, 1
      %v1843 = vrot.slane %v1612, 1
      %v1844 = vrot.slane %v1614, 1
      %v1845 = vrot.slane %v1617, 1
      %v1846 = vrot.slane %v1619, 1
      %v1847 = vrot.slane %v1622, 1
      %v1848 = vrot.slane %v1624, 1
      %v1849 = vrot.slane %v1627, 1
      %v1850 = vrot.slane %v1629, 1
      %v1851 = vrot.slane %v1632, 1
      %v1852 = vrot.slane %v1634, 1
      %v1853 = vrot.slane %v1637, 1
      %v1854 = vrot.slane %v1639, 1
      %v1855 = vrot.slane %v1642, 1
      %v1856 = vrot.slane %v1644, 1
      %v1857 = vrot.slane %v1647, 1
      %v1858 = vrot.slane %v1649, 1
      %v1859 = vrot.slane %v1652, 1
      %v1860 = vrot.slane %v1654, 1
      %v1861 = vrot.slane %v1657, 1
      %v1862 = vrot.slane %v1659, 1
      %v1863 = vrot.slane %v1662, 1
      %v1864 = vrot.slane %v1664, 1
      %v1865 = vrot.slane %v1667, 1
      %v1866 = vrot.slane %v1669, 1
      %v1867 = vrot.slane %v1672, 1
      %v1868 = vrot.slane %v1674, 1
      %vm1869 = vcmp.lt.s32.totalorder %v259, 7
      %v1870 = vsel %vm1869, %v1867, %v1868
      %v1871 = vsel %vm1869, %v1866, %v1867
      %v1872 = vsel %vm1869, %v1865, %v1866
      %v1873 = vsel %vm1869, %v1864, %v1865
      %v1874 = vsel %vm1869, %v1863, %v1864
      %v1875 = vsel %vm1869, %v1862, %v1863
      %v1876 = vsel %vm1869, %v1861, %v1862
      %v1877 = vsel %vm1869, %v1860, %v1861
      %v1878 = vsel %vm1869, %v1859, %v1860
      %v1879 = vsel %vm1869, %v1858, %v1859
      %v1880 = vsel %vm1869, %v1857, %v1858
      %v1881 = vsel %vm1869, %v1856, %v1857
      %v1882 = vsel %vm1869, %v1855, %v1856
      %v1883 = vsel %vm1869, %v1854, %v1855
      %v1884 = vsel %vm1869, %v1853, %v1854
      %v1885 = vsel %vm1869, %v1852, %v1853
      %v1886 = vsel %vm1869, %v1851, %v1852
      %v1887 = vsel %vm1869, %v1850, %v1851
      %v1888 = vsel %vm1869, %v1849, %v1850
      %v1889 = vsel %vm1869, %v1848, %v1849
      %v1890 = vsel %vm1869, %v1847, %v1848
      %v1891 = vsel %vm1869, %v1846, %v1847
      %v1892 = vsel %vm1869, %v1845, %v1846
      %v1893 = vsel %vm1869, %v1844, %v1845
      %v1894 = vsel %vm1869, %v1843, %v1844
      %v1895 = vsel %vm1869, %v1842, %v1843
      %v1896 = vsel %vm1869, %v1841, %v1842
      %v1897 = vsel %vm1869, %v1840, %v1841
      %v1898 = vsel %vm1869, %v1839, %v1840
      %v1899 = vsel %vm1869, %v1838, %v1839
      %v1900 = vsel %vm1869, %v1837, %v1838
      %v1901 = vsel %vm1869, %v1868, %v1837
      %v1902 = vsel %vm771, 1, 0
      %v1903 = vsel %vm772, 1, 0
      %v1904 = vsel %vm773, 1, 0
      %v1905 = vsel %vm774, 1, 0
      %v1906 = vsel %vm775, 1, 0
      %v1907 = vsel %vm776, 1, 0
      %v1908 = vsel %vm777, 1, 0
      %v1909 = vsel %vm778, 1, 0
      %v1910 = vsel %vm779, 1, 0
      %v1911 = vsel %vm780, 1, 0
      %v1912 = vsel %vm781, 1, 0
      %v1913 = vsel %vm782, 1, 0
      %v1914 = vsel %vm783, 1, 0
      %v1915 = vsel %vm784, 1, 0
      %v1916 = vsel %vm785, 1, 0
      %v1917 = vsel %vm786, 1, 0
      %v1918 = vsel %vm787, 1, 0
      %v1919 = vsel %vm788, 1, 0
      %v1920 = vsel %vm789, 1, 0
      %v1921 = vsel %vm790, 1, 0
      %v1922 = vsel %vm791, 1, 0
      %v1923 = vsel %vm792, 1, 0
      %v1924 = vsel %vm793, 1, 0
      %v1925 = vsel %vm794, 1, 0
      %v1926 = vsel %vm795, 1, 0
      %v1927 = vsel %vm796, 1, 0
      %v1928 = vsel %vm797, 1, 0
      %v1929 = vsel %vm798, 1, 0
      %v1930 = vsel %vm799, 1, 0
      %v1931 = vsel %vm800, 1, 0
      %v1932 = vsel %vm801, 1, 0
      %v1933 = vsel %vm802, 1, 0
      %vm1934 = vcmp.eq.s32.totalorder %v1902, 1
      %vm1935 = vcmp.eq.s32.totalorder %v1903, 1
      %vm1936 = vcmp.eq.s32.totalorder %v1904, 1
      %vm1937 = vcmp.eq.s32.totalorder %v1905, 1
      %vm1938 = vcmp.eq.s32.totalorder %v1906, 1
      %vm1939 = vcmp.eq.s32.totalorder %v1907, 1
      %vm1940 = vcmp.eq.s32.totalorder %v1908, 1
      %vm1941 = vcmp.eq.s32.totalorder %v1909, 1
      %vm1942 = vcmp.eq.s32.totalorder %v1910, 1
      %vm1943 = vcmp.eq.s32.totalorder %v1911, 1
      %vm1944 = vcmp.eq.s32.totalorder %v1912, 1
      %vm1945 = vcmp.eq.s32.totalorder %v1913, 1
      %vm1946 = vcmp.eq.s32.totalorder %v1914, 1
      %vm1947 = vcmp.eq.s32.totalorder %v1915, 1
      %vm1948 = vcmp.eq.s32.totalorder %v1916, 1
      %vm1949 = vcmp.eq.s32.totalorder %v1917, 1
      %vm1950 = vcmp.eq.s32.totalorder %v1918, 1
      %vm1951 = vcmp.eq.s32.totalorder %v1919, 1
      %vm1952 = vcmp.eq.s32.totalorder %v1920, 1
      %vm1953 = vcmp.eq.s32.totalorder %v1921, 1
      %vm1954 = vcmp.eq.s32.totalorder %v1922, 1
      %vm1955 = vcmp.eq.s32.totalorder %v1923, 1
      %vm1956 = vcmp.eq.s32.totalorder %v1924, 1
      %vm1957 = vcmp.eq.s32.totalorder %v1925, 1
      %vm1958 = vcmp.eq.s32.totalorder %v1926, 1
      %vm1959 = vcmp.eq.s32.totalorder %v1927, 1
      %vm1960 = vcmp.eq.s32.totalorder %v1928, 1
      %vm1961 = vcmp.eq.s32.totalorder %v1929, 1
      %vm1962 = vcmp.eq.s32.totalorder %v1930, 1
      %vm1963 = vcmp.eq.s32.totalorder %v1931, 1
      %vm1964 = vcmp.eq.s32.totalorder %v1932, 1
      %vm1965 = vcmp.eq.s32.totalorder %v1933, 1
      %v1966 = vsel %vm1934, %v1900, 0.0
      %v1967 = vsel %vm1935, %v1899, 0.0
      %v1968 = vsel %vm1936, %v1898, 0.0
      %v1969 = vsel %vm1937, %v1897, 0.0
      %v1970 = vsel %vm1938, %v1896, 0.0
      %v1971 = vsel %vm1939, %v1895, 0.0
      %v1972 = vsel %vm1940, %v1894, 0.0
      %v1973 = vsel %vm1941, %v1893, 0.0
      %v1974 = vsel %vm1942, %v1892, 0.0
      %v1975 = vsel %vm1943, %v1891, 0.0
      %v1976 = vsel %vm1944, %v1890, 0.0
      %v1977 = vsel %vm1945, %v1889, 0.0
      %v1978 = vsel %vm1946, %v1888, 0.0
      %v1979 = vsel %vm1947, %v1887, 0.0
      %v1980 = vsel %vm1948, %v1886, 0.0
      %v1981 = vsel %vm1949, %v1885, 0.0
      %v1982 = vsel %vm1950, %v1884, 0.0
      %v1983 = vsel %vm1951, %v1883, 0.0
      %v1984 = vsel %vm1952, %v1882, 0.0
      %v1985 = vsel %vm1953, %v1881, 0.0
      %v1986 = vsel %vm1954, %v1880, 0.0
      %v1987 = vsel %vm1955, %v1879, 0.0
      %v1988 = vsel %vm1956, %v1878, 0.0
      %v1989 = vsel %vm1957, %v1877, 0.0
      %v1990 = vsel %vm1958, %v1876, 0.0
      %v1991 = vsel %vm1959, %v1875, 0.0
      %v1992 = vsel %vm1960, %v1874, 0.0
      %v1993 = vsel %vm1961, %v1873, 0.0
      %v1994 = vsel %vm1962, %v1872, 0.0
      %v1995 = vsel %vm1963, %v1871, 0.0
      %v1996 = vsel %vm1964, %v1870, 0.0
      %v1997 = vsel %vm1965, %v1901, 0.0
      %v1998 = vadd.f32 %v1805, %v1508
      %v1999 = vadd.f32 %v1806, %v1510
      %v2000 = vadd.f32 %v1807, %v1513
      %v2001 = vadd.f32 %v1808, %v1515
      %v2002 = vadd.f32 %v1809, %v1518
      %v2003 = vadd.f32 %v1810, %v1520
      %v2004 = vadd.f32 %v1811, %v1523
      %v2005 = vadd.f32 %v1812, %v1525
      %v2006 = vadd.f32 %v1813, %v1528
      %v2007 = vadd.f32 %v1814, %v1530
      %v2008 = vadd.f32 %v1815, %v1533
      %v2009 = vadd.f32 %v1816, %v1535
      %v2010 = vadd.f32 %v1817, %v1538
      %v2011 = vadd.f32 %v1818, %v1540
      %v2012 = vadd.f32 %v1819, %v1543
      %v2013 = vadd.f32 %v1820, %v1545
      %v2014 = vadd.f32 %v1821, %v1548
      %v2015 = vadd.f32 %v1822, %v1550
      %v2016 = vadd.f32 %v1823, %v1553
      %v2017 = vadd.f32 %v1824, %v1555
      %v2018 = vadd.f32 %v1825, %v1558
      %v2019 = vadd.f32 %v1826, %v1560
      %v2020 = vadd.f32 %v1827, %v1563
      %v2021 = vadd.f32 %v1828, %v1565
      %v2022 = vadd.f32 %v1829, %v1568
      %v2023 = vadd.f32 %v1830, %v1570
      %v2024 = vadd.f32 %v1831, %v1573
      %v2025 = vadd.f32 %v1832, %v1575
      %v2026 = vadd.f32 %v1833, %v1578
      %v2027 = vadd.f32 %v1834, %v1580
      %v2028 = vadd.f32 %v1835, %v1583
      %v2029 = vadd.f32 %v1836, %v1585
      %v2030 = vadd.f32 %v1998, %v1966
      %v2031 = vadd.f32 %v1999, %v1967
      %v2032 = vadd.f32 %v2000, %v1968
      %v2033 = vadd.f32 %v2001, %v1969
      %v2034 = vadd.f32 %v2002, %v1970
      %v2035 = vadd.f32 %v2003, %v1971
      %v2036 = vadd.f32 %v2004, %v1972
      %v2037 = vadd.f32 %v2005, %v1973
      %v2038 = vadd.f32 %v2006, %v1974
      %v2039 = vadd.f32 %v2007, %v1975
      %v2040 = vadd.f32 %v2008, %v1976
      %v2041 = vadd.f32 %v2009, %v1977
      %v2042 = vadd.f32 %v2010, %v1978
      %v2043 = vadd.f32 %v2011, %v1979
      %v2044 = vadd.f32 %v2012, %v1980
      %v2045 = vadd.f32 %v2013, %v1981
      %v2046 = vadd.f32 %v2014, %v1982
      %v2047 = vadd.f32 %v2015, %v1983
      %v2048 = vadd.f32 %v2016, %v1984
      %v2049 = vadd.f32 %v2017, %v1985
      %v2050 = vadd.f32 %v2018, %v1986
      %v2051 = vadd.f32 %v2019, %v1987
      %v2052 = vadd.f32 %v2020, %v1988
      %v2053 = vadd.f32 %v2021, %v1989
      %v2054 = vadd.f32 %v2022, %v1990
      %v2055 = vadd.f32 %v2023, %v1991
      %v2056 = vadd.f32 %v2024, %v1992
      %v2057 = vadd.f32 %v2025, %v1993
      %v2058 = vadd.f32 %v2026, %v1994
      %v2059 = vadd.f32 %v2027, %v1995
      %v2060 = vadd.f32 %v2028, %v1996
      %v2061 = vadd.f32 %v2029, %v1997
      %v2062 = vld [vmem:[%s2] sm:$0x1]
      %v2064 = vperm.slane %v2062, 0
      %v2066 = vadd.f32 %v2030, %v2064
      %v2067 = vadd.f32 %v2031, %v2064
      %v2068 = vadd.f32 %v2032, %v2064
      %v2069 = vadd.f32 %v2033, %v2064
      %v2070 = vadd.f32 %v2034, %v2064
      %v2071 = vadd.f32 %v2035, %v2064
      %v2072 = vadd.f32 %v2036, %v2064
      %v2073 = vadd.f32 %v2037, %v2064
      %v2074 = vadd.f32 %v2038, %v2064
      %v2075 = vadd.f32 %v2039, %v2064
      %v2076 = vadd.f32 %v2040, %v2064
      %v2077 = vadd.f32 %v2041, %v2064
      %v2078 = vadd.f32 %v2042, %v2064
      %v2079 = vadd.f32 %v2043, %v2064
      %v2080 = vadd.f32 %v2044, %v2064
      %v2081 = vadd.f32 %v2045, %v2064
      %v2082 = vadd.f32 %v2046, %v2064
      %v2083 = vadd.f32 %v2047, %v2064
      %v2084 = vadd.f32 %v2048, %v2064
      %v2085 = vadd.f32 %v2049, %v2064
      %v2086 = vadd.f32 %v2050, %v2064
      %v2087 = vadd.f32 %v2051, %v2064
      %v2088 = vadd.f32 %v2052, %v2064
      %v2089 = vadd.f32 %v2053, %v2064
      %v2090 = vadd.f32 %v2054, %v2064
      %v2091 = vadd.f32 %v2055, %v2064
      %v2092 = vadd.f32 %v2056, %v2064
      %v2093 = vadd.f32 %v2057, %v2064
      %v2094 = vadd.f32 %v2058, %v2064
      %v2095 = vadd.f32 %v2059, %v2064
      %v2096 = vadd.f32 %v2060, %v2064
      %v2097 = vadd.f32 %v2061, %v2064
      %v2098 = vmax.f32 %v2066, 0.0
      %v2099 = vmax.f32 %v2067, 0.0
      %v2100 = vmax.f32 %v2068, 0.0
      %v2101 = vmax.f32 %v2069, 0.0
      %v2102 = vmax.f32 %v2070, 0.0
      %v2103 = vmax.f32 %v2071, 0.0
      %v2104 = vmax.f32 %v2072, 0.0
      %v2105 = vmax.f32 %v2073, 0.0
      %v2106 = vmax.f32 %v2074, 0.0
      %v2107 = vmax.f32 %v2075, 0.0
      %v2108 = vmax.f32 %v2076, 0.0
      %v2109 = vmax.f32 %v2077, 0.0
      %v2110 = vmax.f32 %v2078, 0.0
      %v2111 = vmax.f32 %v2079, 0.0
      %v2112 = vmax.f32 %v2080, 0.0
      %v2113 = vmax.f32 %v2081, 0.0
      %v2114 = vmax.f32 %v2082, 0.0
      %v2115 = vmax.f32 %v2083, 0.0
      %v2116 = vmax.f32 %v2084, 0.0
      %v2117 = vmax.f32 %v2085, 0.0
      %v2118 = vmax.f32 %v2086, 0.0
      %v2119 = vmax.f32 %v2087, 0.0
      %v2120 = vmax.f32 %v2088, 0.0
      %v2121 = vmax.f32 %v2089, 0.0
      %v2122 = vmax.f32 %v2090, 0.0
      %v2123 = vmax.f32 %v2091, 0.0
      %v2124 = vmax.f32 %v2092, 0.0
      %v2125 = vmax.f32 %v2093, 0.0
      %v2126 = vmax.f32 %v2094, 0.0
      %v2127 = vmax.f32 %v2095, 0.0
      %v2128 = vmax.f32 %v2096, 0.0
      %v2129 = vmax.f32 %v2097, 0.0
      %v2130 = vsel %vm835, %v2128, 0.0
      %v2131 = vsel %vm836, %v2129, 0.0
      %v2132 = vsel %vm837, %v2098, 0.0
      %v2133 = vsel %vm838, %v2099, 0.0
      %v2134 = vsel %vm839, %v2100, 0.0
      %v2135 = vsel %vm840, %v2101, 0.0
      %v2136 = vsel %vm841, %v2102, 0.0
      %v2137 = vsel %vm842, %v2103, 0.0
      %v2138 = vsel %vm843, %v2104, 0.0
      %v2139 = vsel %vm844, %v2105, 0.0
      %v2140 = vsel %vm845, %v2106, 0.0
      %v2141 = vsel %vm846, %v2107, 0.0
      %v2142 = vsel %vm847, %v2108, 0.0
      %v2143 = vsel %vm848, %v2109, 0.0
      %v2144 = vsel %vm849, %v2110, 0.0
      %v2145 = vsel %vm850, %v2111, 0.0
      %v2146 = vsel %vm851, %v2112, 0.0
      %v2147 = vsel %vm852, %v2113, 0.0
      %v2148 = vsel %vm853, %v2114, 0.0
      %v2149 = vsel %vm854, %v2115, 0.0
      %v2150 = vsel %vm855, %v2116, 0.0
      %v2151 = vsel %vm856, %v2117, 0.0
      %v2152 = vsel %vm857, %v2118, 0.0
      %v2153 = vsel %vm858, %v2119, 0.0
      %v2154 = vsel %vm859, %v2120, 0.0
      %v2155 = vsel %vm860, %v2121, 0.0
      %v2156 = vsel %vm861, %v2122, 0.0
      %v2157 = vsel %vm862, %v2123, 0.0
      %v2158 = vsel %vm863, %v2124, 0.0
      %v2159 = vsel %vm864, %v2125, 0.0
      %v2160 = vsel %vm865, %v2126, 0.0
      %v2161 = vsel %vm866, %v2127, 0.0
      %v2162 = vsel %vm931, %v2100, 0.0
      %v2163 = vsel %vm932, %v2101, 0.0
      %v2164 = vsel %vm933, %v2102, 0.0
      %v2165 = vsel %vm934, %v2103, 0.0
      %v2166 = vsel %vm935, %v2104, 0.0
      %v2167 = vsel %vm936, %v2105, 0.0
      %v2168 = vsel %vm937, %v2106, 0.0
      %v2169 = vsel %vm938, %v2107, 0.0
      %v2170 = vsel %vm939, %v2108, 0.0
      %v2171 = vsel %vm940, %v2109, 0.0
      %v2172 = vsel %vm941, %v2110, 0.0
      %v2173 = vsel %vm942, %v2111, 0.0
      %v2174 = vsel %vm943, %v2112, 0.0
      %v2175 = vsel %vm944, %v2113, 0.0
      %v2176 = vsel %vm945, %v2114, 0.0
      %v2177 = vsel %vm946, %v2115, 0.0
      %v2178 = vsel %vm947, %v2116, 0.0
      %v2179 = vsel %vm948, %v2117, 0.0
      %v2180 = vsel %vm949, %v2118, 0.0
      %v2181 = vsel %vm950, %v2119, 0.0
      %v2182 = vsel %vm951, %v2120, 0.0
      %v2183 = vsel %vm952, %v2121, 0.0
      %v2184 = vsel %vm953, %v2122, 0.0
      %v2185 = vsel %vm954, %v2123, 0.0
      %v2186 = vsel %vm955, %v2124, 0.0
      %v2187 = vsel %vm956, %v2125, 0.0
      %v2188 = vsel %vm957, %v2126, 0.0
      %v2189 = vsel %vm958, %v2127, 0.0
      %v2190 = vsel %vm959, %v2128, 0.0
      %v2191 = vsel %vm960, %v2129, 0.0
      %v2192 = vsel %vm961, %v2098, 0.0
      %v2193 = vsel %vm962, %v2099, 0.0
      %v2194 = vpack.c.bf16 %v2131, %v2130
      %v2195 = vpack.c.bf16 %v2099, %v2098
      %v2196 = vpack.c.bf16 %v2163, %v2162
      %v2197 = vpack.c.bf16 %v2133, %v2132
      %v2198 = vpack.c.bf16 %v2101, %v2100
      %v2199 = vpack.c.bf16 %v2165, %v2164
      %v2200 = vpack.c.bf16 %v2135, %v2134
      %v2201 = vpack.c.bf16 %v2103, %v2102
      %v2202 = vpack.c.bf16 %v2167, %v2166
      %v2203 = vpack.c.bf16 %v2137, %v2136
      %v2204 = vpack.c.bf16 %v2105, %v2104
      %v2205 = vpack.c.bf16 %v2169, %v2168
      %v2206 = vpack.c.bf16 %v2139, %v2138
      %v2207 = vpack.c.bf16 %v2107, %v2106
      %v2208 = vpack.c.bf16 %v2171, %v2170
      %v2209 = vpack.c.bf16 %v2141, %v2140
      %v2210 = vpack.c.bf16 %v2109, %v2108
      %v2211 = vpack.c.bf16 %v2173, %v2172
      %v2212 = vpack.c.bf16 %v2143, %v2142
      %v2213 = vpack.c.bf16 %v2111, %v2110
      %v2214 = vpack.c.bf16 %v2175, %v2174
      %v2215 = vpack.c.bf16 %v2145, %v2144
      %v2216 = vpack.c.bf16 %v2113, %v2112
      %v2217 = vpack.c.bf16 %v2177, %v2176
      %v2218 = vpack.c.bf16 %v2147, %v2146
      %v2219 = vpack.c.bf16 %v2115, %v2114
      %v2220 = vpack.c.bf16 %v2179, %v2178
      %v2221 = vpack.c.bf16 %v2149, %v2148
      %v2222 = vpack.c.bf16 %v2117, %v2116
      %v2223 = vpack.c.bf16 %v2181, %v2180
      %v2224 = vpack.c.bf16 %v2151, %v2150
      %v2225 = vpack.c.bf16 %v2119, %v2118
      %v2226 = vpack.c.bf16 %v2183, %v2182
      %v2227 = vpack.c.bf16 %v2153, %v2152
      %v2228 = vpack.c.bf16 %v2121, %v2120
      %v2229 = vpack.c.bf16 %v2185, %v2184
      %v2230 = vpack.c.bf16 %v2155, %v2154
      %v2231 = vpack.c.bf16 %v2123, %v2122
      %v2232 = vpack.c.bf16 %v2187, %v2186
      %v2233 = vpack.c.bf16 %v2157, %v2156
      %v2234 = vpack.c.bf16 %v2125, %v2124
      %v2235 = vpack.c.bf16 %v2189, %v2188
      %v2236 = vpack.c.bf16 %v2159, %v2158
      %v2237 = vpack.c.bf16 %v2127, %v2126
      %v2238 = vpack.c.bf16 %v2191, %v2190
      %v2239 = vpack.c.bf16 %v2161, %v2160
      %v2240 = vpack.c.bf16 %v2129, %v2128
      %v2241 = vpack.c.bf16 %v2193, %v2192
      %v2242 = vld [vmem:[%s3] sm:$0xff]
      %v2243 = vld [vmem:[%s3 + $0x8] sm:$0xf]
      %v2244 = vld [vmem:[%s3 + $0xc] sm:$0xff]
      %v2245 = vld [vmem:[%s3 + $0x14] sm:$0xf]
      %v2246 = vld [vmem:[%s3 + $0x18] sm:$0xff]
      %v2247 = vld [vmem:[%s3 + $0x20] sm:$0xf]
      %v2248 = vld [vmem:[%s3 + $0x24] sm:$0xff]
      %v2249 = vld [vmem:[%s3 + $0x2c] sm:$0xf]
      %v2250 = vld [vmem:[%s3 + $0x30] sm:$0xff]
      %v2251 = vld [vmem:[%s3 + $0x38] sm:$0xf]
      %v2252 = vld [vmem:[%s3 + $0x3c] sm:$0xff]
      %v2253 = vld [vmem:[%s3 + $0x44] sm:$0xf]
      %v2254 = vld [vmem:[%s3 + $0x48] sm:$0xff]
      %v2255 = vld [vmem:[%s3 + $0x50] sm:$0xf]
      %v2256 = vld [vmem:[%s3 + $0x54] sm:$0xff]
      %v2257 = vld [vmem:[%s3 + $0x5c] sm:$0xf]
      %v2258 = vld [vmem:[%s3 + $0x60] sm:$0xff]
      %v2259 = vld [vmem:[%s3 + $0x68] sm:$0xf]
      %v2260 = vld [vmem:[%s3 + $0x6c] sm:$0xff]
      %v2261 = vld [vmem:[%s3 + $0x74] sm:$0xf]
      %v2262 = vld [vmem:[%s3 + $0x78] sm:$0xff]
      %v2263 = vld [vmem:[%s3 + $0x80] sm:$0xf]
      %v2264 = vld [vmem:[%s3 + $0x84] sm:$0xff]
      %v2265 = vld [vmem:[%s3 + $0x8c] sm:$0xf]
      %v2266 = vld [vmem:[%s3 + $0x90] sm:$0xff]
      %v2267 = vld [vmem:[%s3 + $0x98] sm:$0xf]
      %v2268 = vld [vmem:[%s3 + $0x9c] sm:$0xff]
      %v2269 = vld [vmem:[%s3 + $0xa4] sm:$0xf]
      %v2270 = vld [vmem:[%s3 + $0xa8] sm:$0xff]
      %v2271 = vld [vmem:[%s3 + $0xb0] sm:$0xf]
      %v2272 = vld [vmem:[%s3 + $0xb4] sm:$0xff]
      %v2273 = vld [vmem:[%s3 + $0xbc] sm:$0xf]
      %v2274 = vld [vmem:[%s3 + $0xc0] sm:$0xff]
      %v2275 = vld [vmem:[%s3 + $0xc8] sm:$0xf]
      %v2276 = vld [vmem:[%s3 + $0xcc] sm:$0xff]
      %v2277 = vld [vmem:[%s3 + $0xd4] sm:$0xf]
      %v2278 = vld [vmem:[%s3 + $0xd8] sm:$0xff]
      %v2279 = vld [vmem:[%s3 + $0xe0] sm:$0xf]
      %v2280 = vld [vmem:[%s3 + $0xe4] sm:$0xff]
      %v2281 = vld [vmem:[%s3 + $0xec] sm:$0xf]
      %v2282 = vld [vmem:[%s3 + $0xf0] sm:$0xff]
      %v2283 = vld [vmem:[%s3 + $0xf8] sm:$0xf]
      %v2284 = vld [vmem:[%s3 + $0xfc] sm:$0xff]
      %v2285 = vld [vmem:[%s3 + $0x104] sm:$0xf]
      %v2286 = vld [vmem:[%s3 + $0x108] sm:$0xff]
      %v2287 = vld [vmem:[%s3 + $0x110] sm:$0xf]
      %v2288 = vld [vmem:[%s3 + $0x114] sm:$0xff]
      %v2289 = vld [vmem:[%s3 + $0x11c] sm:$0xf]
      %v2290 = vld [vmem:[%s3 + $0x120] sm:$0xff]
      %v2291 = vld [vmem:[%s3 + $0x128] sm:$0xf]
      %v2292 = vld [vmem:[%s3 + $0x12c] sm:$0xff]
      %v2293 = vld [vmem:[%s3 + $0x134] sm:$0xf]
      %v2294 = vld [vmem:[%s3 + $0x138] sm:$0xff]
      %v2295 = vld [vmem:[%s3 + $0x140] sm:$0xf]
      %v2296 = vld [vmem:[%s3 + $0x144] sm:$0xff]
      %v2297 = vld [vmem:[%s3 + $0x14c] sm:$0xf]
      %v2298 = vld [vmem:[%s3 + $0x150] sm:$0xff]
      %v2299 = vld [vmem:[%s3 + $0x158] sm:$0xf]
      %v2300 = vld [vmem:[%s3 + $0x15c] sm:$0xff]
      %v2301 = vld [vmem:[%s3 + $0x164] sm:$0xf]
      %v2302 = vld [vmem:[%s3 + $0x168] sm:$0xff]
      %v2303 = vld [vmem:[%s3 + $0x170] sm:$0xf]
      %v2304 = vld [vmem:[%s3 + $0x174] sm:$0xff]
      %v2305 = vld [vmem:[%s3 + $0x17c] sm:$0xf]
      %v2306 = vld [vmem:[%s3 + $0x180] sm:$0xff]
      %v2307 = vld [vmem:[%s3 + $0x188] sm:$0xf]
      %v2308 = vld [vmem:[%s3 + $0x18c] sm:$0xff]
      %v2309 = vld [vmem:[%s3 + $0x194] sm:$0xf]
      %v2310 = vld [vmem:[%s3 + $0x198] sm:$0xff]
      %v2311 = vld [vmem:[%s3 + $0x1a0] sm:$0xf]
      %v2312 = vld [vmem:[%s3 + $0x1a4] sm:$0xff]
      %v2313 = vld [vmem:[%s3 + $0x1ac] sm:$0xf]
      %v2314 = vld [vmem:[%s3 + $0x1b0] sm:$0xff]
      %v2315 = vld [vmem:[%s3 + $0x1b8] sm:$0xf]
      %v2316 = vld [vmem:[%s3 + $0x1bc] sm:$0xff]
      %v2317 = vld [vmem:[%s3 + $0x1c4] sm:$0xf]
      %v2318 = vld [vmem:[%s3 + $0x1c8] sm:$0xff]
      %v2319 = vld [vmem:[%s3 + $0x1d0] sm:$0xf]
      %v2320 = vld [vmem:[%s3 + $0x1d4] sm:$0xff]
      %v2321 = vld [vmem:[%s3 + $0x1dc] sm:$0xf]
      %v2322 = vld [vmem:[%s3 + $0x1e0] sm:$0xff]
      %v2323 = vld [vmem:[%s3 + $0x1e8] sm:$0xf]
      %v2324 = vld [vmem:[%s3 + $0x1ec] sm:$0xff]
      %v2325 = vld [vmem:[%s3 + $0x1f4] sm:$0xf]
      %v2326 = vld [vmem:[%s3 + $0x1f8] sm:$0xff]
      %v2327 = vld [vmem:[%s3 + $0x200] sm:$0xf]
      %v2328 = vld [vmem:[%s3 + $0x204] sm:$0xff]
      %v2329 = vld [vmem:[%s3 + $0x20c] sm:$0xf]
      %v2330 = vld [vmem:[%s3 + $0x210] sm:$0xff]
      %v2331 = vld [vmem:[%s3 + $0x218] sm:$0xf]
      %v2332 = vld [vmem:[%s3 + $0x21c] sm:$0xff]
      %v2333 = vld [vmem:[%s3 + $0x224] sm:$0xf]
      %v2334 = vld [vmem:[%s3 + $0x228] sm:$0xff]
      %v2335 = vld [vmem:[%s3 + $0x230] sm:$0xf]
      %v2336 = vld [vmem:[%s3 + $0x234] sm:$0xff]
      %v2337 = vld [vmem:[%s3 + $0x23c] sm:$0xf]
      %v2434 = vunpack.c.l.b16 %v2242
      %v2435 = vunpack.c.h.b16 %v2242
      %v2436 = vunpack.c.l.b16 %v2243
      %v2437 = vunpack.c.l.b16 %v2244
      %v2438 = vunpack.c.h.b16 %v2244
      %v2439 = vunpack.c.l.b16 %v2245
      %v2440 = vunpack.c.l.b16 %v2246
      %v2441 = vunpack.c.h.b16 %v2246
      %v2442 = vunpack.c.l.b16 %v2247
      %v2443 = vunpack.c.l.b16 %v2248
      %v2444 = vunpack.c.h.b16 %v2248
      %v2445 = vunpack.c.l.b16 %v2249
      %v2446 = vunpack.c.l.b16 %v2250
      %v2447 = vunpack.c.h.b16 %v2250
      %v2448 = vunpack.c.l.b16 %v2251
      %v2449 = vunpack.c.l.b16 %v2252
      %v2450 = vunpack.c.h.b16 %v2252
      %v2451 = vunpack.c.l.b16 %v2253
      %v2452 = vunpack.c.l.b16 %v2254
      %v2453 = vunpack.c.h.b16 %v2254
      %v2454 = vunpack.c.l.b16 %v2255
      %v2455 = vunpack.c.l.b16 %v2256
      %v2456 = vunpack.c.h.b16 %v2256
      %v2457 = vunpack.c.l.b16 %v2257
      %v2458 = vunpack.c.l.b16 %v2258
      %v2459 = vunpack.c.h.b16 %v2258
      %v2460 = vunpack.c.l.b16 %v2259
      %v2461 = vunpack.c.l.b16 %v2260
      %v2462 = vunpack.c.h.b16 %v2260
      %v2463 = vunpack.c.l.b16 %v2261
      %v2464 = vunpack.c.l.b16 %v2262
      %v2465 = vunpack.c.h.b16 %v2262
      %v2466 = vunpack.c.l.b16 %v2263
      %v2467 = vunpack.c.l.b16 %v2264
      %v2468 = vunpack.c.h.b16 %v2264
      %v2469 = vunpack.c.l.b16 %v2265
      %v2470 = vunpack.c.l.b16 %v2266
      %v2471 = vunpack.c.h.b16 %v2266
      %v2472 = vunpack.c.l.b16 %v2267
      %v2473 = vunpack.c.l.b16 %v2268
      %v2474 = vunpack.c.h.b16 %v2268
      %v2475 = vunpack.c.l.b16 %v2269
      %v2476 = vunpack.c.l.b16 %v2270
      %v2477 = vunpack.c.h.b16 %v2270
      %v2478 = vunpack.c.l.b16 %v2271
      %v2479 = vunpack.c.l.b16 %v2272
      %v2480 = vunpack.c.h.b16 %v2272
      %v2481 = vunpack.c.l.b16 %v2273
      %v2482 = vunpack.c.l.b16 %v2274
      %v2483 = vunpack.c.h.b16 %v2274
      %v2484 = vunpack.c.l.b16 %v2275
      %v2485 = vunpack.c.l.b16 %v2276
      %v2486 = vunpack.c.h.b16 %v2276
      %v2487 = vunpack.c.l.b16 %v2277
      %v2488 = vunpack.c.l.b16 %v2278
      %v2489 = vunpack.c.h.b16 %v2278
      %v2490 = vunpack.c.l.b16 %v2279
      %v2491 = vunpack.c.l.b16 %v2280
      %v2492 = vunpack.c.h.b16 %v2280
      %v2493 = vunpack.c.l.b16 %v2281
      %v2494 = vunpack.c.l.b16 %v2282
      %v2495 = vunpack.c.h.b16 %v2282
      %v2496 = vunpack.c.l.b16 %v2283
      %v2497 = vunpack.c.l.b16 %v2284
      %v2498 = vunpack.c.h.b16 %v2284
      %v2499 = vunpack.c.l.b16 %v2285
      %v2500 = vunpack.c.l.b16 %v2286
      %v2501 = vunpack.c.h.b16 %v2286
      %v2502 = vunpack.c.l.b16 %v2287
      %v2503 = vunpack.c.l.b16 %v2288
      %v2504 = vunpack.c.h.b16 %v2288
      %v2505 = vunpack.c.l.b16 %v2289
      %v2506 = vunpack.c.l.b16 %v2290
      %v2507 = vunpack.c.h.b16 %v2290
      %v2508 = vunpack.c.l.b16 %v2291
      %v2509 = vunpack.c.l.b16 %v2292
      %v2510 = vunpack.c.h.b16 %v2292
      %v2511 = vunpack.c.l.b16 %v2293
      %v2512 = vunpack.c.l.b16 %v2294
      %v2513 = vunpack.c.h.b16 %v2294
      %v2514 = vunpack.c.l.b16 %v2295
      %v2515 = vunpack.c.l.b16 %v2296
      %v2516 = vunpack.c.h.b16 %v2296
      %v2517 = vunpack.c.l.b16 %v2297
      %v2518 = vunpack.c.l.b16 %v2298
      %v2519 = vunpack.c.h.b16 %v2298
      %v2520 = vunpack.c.l.b16 %v2299
      %v2521 = vunpack.c.l.b16 %v2300
      %v2522 = vunpack.c.h.b16 %v2300
      %v2523 = vunpack.c.l.b16 %v2301
      %v2524 = vunpack.c.l.b16 %v2302
      %v2525 = vunpack.c.h.b16 %v2302
      %v2526 = vunpack.c.l.b16 %v2303
      %v2527 = vunpack.c.l.b16 %v2304
      %v2528 = vunpack.c.h.b16 %v2304
      %v2529 = vunpack.c.l.b16 %v2305
      %v2530 = vunpack.c.l.b16 %v2306
      %v2531 = vunpack.c.h.b16 %v2306
      %v2532 = vunpack.c.l.b16 %v2307
      %v2533 = vunpack.c.l.b16 %v2308
      %v2534 = vunpack.c.h.b16 %v2308
      %v2535 = vunpack.c.l.b16 %v2309
      %v2536 = vunpack.c.l.b16 %v2310
      %v2537 = vunpack.c.h.b16 %v2310
      %v2538 = vunpack.c.l.b16 %v2311
      %v2539 = vunpack.c.l.b16 %v2312
      %v2540 = vunpack.c.h.b16 %v2312
      %v2541 = vunpack.c.l.b16 %v2313
      %v2542 = vunpack.c.l.b16 %v2314
      %v2543 = vunpack.c.h.b16 %v2314
      %v2544 = vunpack.c.l.b16 %v2315
      %v2545 = vunpack.c.l.b16 %v2316
      %v2546 = vunpack.c.h.b16 %v2316
      %v2547 = vunpack.c.l.b16 %v2317
      %v2548 = vunpack.c.l.b16 %v2318
      %v2549 = vunpack.c.h.b16 %v2318
      %v2550 = vunpack.c.l.b16 %v2319
      %v2551 = vunpack.c.l.b16 %v2320
      %v2552 = vunpack.c.h.b16 %v2320
      %v2553 = vunpack.c.l.b16 %v2321
      %v2554 = vunpack.c.l.b16 %v2322
      %v2555 = vunpack.c.h.b16 %v2322
      %v2556 = vunpack.c.l.b16 %v2323
      %v2557 = vunpack.c.l.b16 %v2324
      %v2558 = vunpack.c.h.b16 %v2324
      %v2559 = vunpack.c.l.b16 %v2325
      %v2560 = vunpack.c.l.b16 %v2326
      %v2561 = vunpack.c.h.b16 %v2326
      %v2562 = vunpack.c.l.b16 %v2327
      %v2563 = vunpack.c.l.b16 %v2328
      %v2564 = vunpack.c.h.b16 %v2328
      %v2565 = vunpack.c.l.b16 %v2329
      %v2566 = vunpack.c.l.b16 %v2330
      %v2567 = vunpack.c.h.b16 %v2330
      %v2568 = vunpack.c.l.b16 %v2331
      %v2569 = vunpack.c.l.b16 %v2332
      %v2570 = vunpack.c.h.b16 %v2332
      %v2571 = vunpack.c.l.b16 %v2333
      %v2572 = vunpack.c.l.b16 %v2334
      %v2573 = vunpack.c.h.b16 %v2334
      %v2574 = vunpack.c.l.b16 %v2335
      %v2575 = vunpack.c.l.b16 %v2336
      %v2576 = vunpack.c.h.b16 %v2336
      %v2577 = vunpack.c.l.b16 %v2337
      %v2578 = vpack.c.b16 %v2437, %v2434
      %v2579 = vpack.c.b16 %v2438, %v2435
      %v2580 = vpack.c.b16 %v2439, %v2436
      %v2581 = vpack.c.b16 %v2443, %v2440
      %v2582 = vpack.c.b16 %v2444, %v2441
      %v2583 = vpack.c.b16 %v2445, %v2442
      %v2584 = vpack.c.b16 %v2449, %v2446
      %v2585 = vpack.c.b16 %v2450, %v2447
      %v2586 = vpack.c.b16 %v2451, %v2448
      %v2587 = vpack.c.b16 %v2455, %v2452
      %v2588 = vpack.c.b16 %v2456, %v2453
      %v2589 = vpack.c.b16 %v2457, %v2454
      %v2590 = vpack.c.b16 %v2461, %v2458
      %v2591 = vpack.c.b16 %v2462, %v2459
      %v2592 = vpack.c.b16 %v2463, %v2460
      %v2593 = vpack.c.b16 %v2467, %v2464
      %v2594 = vpack.c.b16 %v2468, %v2465
      %v2595 = vpack.c.b16 %v2469, %v2466
      %v2596 = vpack.c.b16 %v2473, %v2470
      %v2597 = vpack.c.b16 %v2474, %v2471
      %v2598 = vpack.c.b16 %v2475, %v2472
      %v2599 = vpack.c.b16 %v2479, %v2476
      %v2600 = vpack.c.b16 %v2480, %v2477
      %v2601 = vpack.c.b16 %v2481, %v2478
      %v2602 = vpack.c.b16 %v2485, %v2482
      %v2603 = vpack.c.b16 %v2486, %v2483
      %v2604 = vpack.c.b16 %v2487, %v2484
      %v2605 = vpack.c.b16 %v2491, %v2488
      %v2606 = vpack.c.b16 %v2492, %v2489
      %v2607 = vpack.c.b16 %v2493, %v2490
      %v2608 = vpack.c.b16 %v2497, %v2494
      %v2609 = vpack.c.b16 %v2498, %v2495
      %v2610 = vpack.c.b16 %v2499, %v2496
      %v2611 = vpack.c.b16 %v2503, %v2500
      %v2612 = vpack.c.b16 %v2504, %v2501
      %v2613 = vpack.c.b16 %v2505, %v2502
      %v2614 = vpack.c.b16 %v2509, %v2506
      %v2615 = vpack.c.b16 %v2510, %v2507
      %v2616 = vpack.c.b16 %v2511, %v2508
      %v2617 = vpack.c.b16 %v2515, %v2512
      %v2618 = vpack.c.b16 %v2516, %v2513
      %v2619 = vpack.c.b16 %v2517, %v2514
      %v2620 = vpack.c.b16 %v2521, %v2518
      %v2621 = vpack.c.b16 %v2522, %v2519
      %v2622 = vpack.c.b16 %v2523, %v2520
      %v2623 = vpack.c.b16 %v2527, %v2524
      %v2624 = vpack.c.b16 %v2528, %v2525
      %v2625 = vpack.c.b16 %v2529, %v2526
      %v2626 = vpack.c.b16 %v2533, %v2530
      %v2627 = vpack.c.b16 %v2534, %v2531
      %v2628 = vpack.c.b16 %v2535, %v2532
      %v2629 = vpack.c.b16 %v2539, %v2536
      %v2630 = vpack.c.b16 %v2540, %v2537
      %v2631 = vpack.c.b16 %v2541, %v2538
      %v2632 = vpack.c.b16 %v2545, %v2542
      %v2633 = vpack.c.b16 %v2546, %v2543
      %v2634 = vpack.c.b16 %v2547, %v2544
      %v2635 = vpack.c.b16 %v2551, %v2548
      %v2636 = vpack.c.b16 %v2552, %v2549
      %v2637 = vpack.c.b16 %v2553, %v2550
      %v2638 = vpack.c.b16 %v2557, %v2554
      %v2639 = vpack.c.b16 %v2558, %v2555
      %v2640 = vpack.c.b16 %v2559, %v2556
      %v2641 = vpack.c.b16 %v2563, %v2560
      %v2642 = vpack.c.b16 %v2564, %v2561
      %v2643 = vpack.c.b16 %v2565, %v2562
      %v2644 = vpack.c.b16 %v2569, %v2566
      %v2645 = vpack.c.b16 %v2570, %v2567
      %v2646 = vpack.c.b16 %v2571, %v2568
      %v2647 = vpack.c.b16 %v2575, %v2572
      %v2648 = vpack.c.b16 %v2576, %v2573
      %v2649 = vpack.c.b16 %v2577, %v2574
      %2722 = vmatpush.bf16.msra.mxu0 %v2599
      %2723 = vmatpush.bf16.msra.mxu0 %v2596
      %2724 = vmatpush.bf16.msra.mxu0 %v2593
      %2725 = vmatpush.bf16.msra.mxu0 %v2590
      %2726 = vmatpush.bf16.msra.mxu0 %v2587
      %2727 = vmatpush.bf16.msra.mxu0 %v2584
      %2728 = vmatpush.bf16.msra.mxu0 %v2581
      %2729 = vmatpush.bf16.msra.mxu0 %v2578
      %2730 = vmatmul.bf16.gmra.mxu0 %v2194
      %v2731 = vpop.f32.mrf.mxu0
      %v2732 = vadd.f32 0.0, %v2731
      %v2733 = vpop.f32.mrf.mxu0
      %v2734 = vadd.f32 0.0, %v2733
      %2735 = vmatmul.bf16.gmra.mxu0 %v2197
      %v2736 = vpop.f32.mrf.mxu0
      %v2737 = vadd.f32 0.0, %v2736
      %v2738 = vpop.f32.mrf.mxu0
      %v2739 = vadd.f32 0.0, %v2738
      %2740 = vmatmul.bf16.gmra.mxu0 %v2200
      %v2741 = vpop.f32.mrf.mxu0
      %v2742 = vadd.f32 0.0, %v2741
      %v2743 = vpop.f32.mrf.mxu0
      %v2744 = vadd.f32 0.0, %v2743
      %2745 = vmatmul.bf16.gmra.mxu0 %v2203
      %v2746 = vpop.f32.mrf.mxu0
      %v2747 = vadd.f32 0.0, %v2746
      %v2748 = vpop.f32.mrf.mxu0
      %v2749 = vadd.f32 0.0, %v2748
      %2750 = vmatmul.bf16.gmra.mxu0 %v2206
      %v2751 = vpop.f32.mrf.mxu0
      %v2752 = vadd.f32 0.0, %v2751
      %v2753 = vpop.f32.mrf.mxu0
      %v2754 = vadd.f32 0.0, %v2753
      %2755 = vmatmul.bf16.gmra.mxu0 %v2209
      %v2756 = vpop.f32.mrf.mxu0
      %v2757 = vadd.f32 0.0, %v2756
      %v2758 = vpop.f32.mrf.mxu0
      %v2759 = vadd.f32 0.0, %v2758
      %2760 = vmatmul.bf16.gmra.mxu0 %v2212
      %v2761 = vpop.f32.mrf.mxu0
      %v2762 = vadd.f32 0.0, %v2761
      %v2763 = vpop.f32.mrf.mxu0
      %v2764 = vadd.f32 0.0, %v2763
      %2765 = vmatmul.bf16.gmra.mxu0 %v2215
      %v2766 = vpop.f32.mrf.mxu0
      %v2767 = vadd.f32 0.0, %v2766
      %v2768 = vpop.f32.mrf.mxu0
      %v2769 = vadd.f32 0.0, %v2768
      %2770 = vmatmul.bf16.gmra.mxu0 %v2218
      %v2771 = vpop.f32.mrf.mxu0
      %v2772 = vadd.f32 0.0, %v2771
      %v2773 = vpop.f32.mrf.mxu0
      %v2774 = vadd.f32 0.0, %v2773
      %2775 = vmatmul.bf16.gmra.mxu0 %v2221
      %v2776 = vpop.f32.mrf.mxu0
      %v2777 = vadd.f32 0.0, %v2776
      %v2778 = vpop.f32.mrf.mxu0
      %v2779 = vadd.f32 0.0, %v2778
      %2780 = vmatmul.bf16.gmra.mxu0 %v2224
      %v2781 = vpop.f32.mrf.mxu0
      %v2782 = vadd.f32 0.0, %v2781
      %v2783 = vpop.f32.mrf.mxu0
      %v2784 = vadd.f32 0.0, %v2783
      %2785 = vmatmul.bf16.gmra.mxu0 %v2227
      %v2786 = vpop.f32.mrf.mxu0
      %v2787 = vadd.f32 0.0, %v2786
      %v2788 = vpop.f32.mrf.mxu0
      %v2789 = vadd.f32 0.0, %v2788
      %2790 = vmatmul.bf16.gmra.mxu0 %v2230
      %v2791 = vpop.f32.mrf.mxu0
      %v2792 = vadd.f32 0.0, %v2791
      %v2793 = vpop.f32.mrf.mxu0
      %v2794 = vadd.f32 0.0, %v2793
      %2795 = vmatmul.bf16.gmra.mxu0 %v2233
      %v2796 = vpop.f32.mrf.mxu0
      %v2797 = vadd.f32 0.0, %v2796
      %v2798 = vpop.f32.mrf.mxu0
      %v2799 = vadd.f32 0.0, %v2798
      %2800 = vmatmul.bf16.gmra.mxu0 %v2236
      %v2801 = vpop.f32.mrf.mxu0
      %v2802 = vadd.f32 0.0, %v2801
      %v2803 = vpop.f32.mrf.mxu0
      %v2804 = vadd.f32 0.0, %v2803
      %2805 = vmatmul.bf16.gmra.mxu0 %v2239
      %v2806 = vpop.f32.mrf.mxu0
      %v2807 = vadd.f32 0.0, %v2806
      %v2808 = vpop.f32.mrf.mxu0
      %v2809 = vadd.f32 0.0, %v2808
      %2810 = vdwg.mxu0
      %2811 = vmatpush.bf16.msra.mxu0 %v2623
      %2812 = vmatpush.bf16.msra.mxu0 %v2620
      %2813 = vmatpush.bf16.msra.mxu0 %v2617
      %2814 = vmatpush.bf16.msra.mxu0 %v2614
      %2815 = vmatpush.bf16.msra.mxu0 %v2611
      %2816 = vmatpush.bf16.msra.mxu0 %v2608
      %2817 = vmatpush.bf16.msra.mxu0 %v2605
      %2818 = vmatpush.bf16.msra.mxu0 %v2602
      %2819 = vmatmul.bf16.gmra.mxu0 %v2195
      %v2820 = vpop.f32.mrf.mxu0
      %v2821 = vadd.f32 %v2732, %v2820
      %v2822 = vpop.f32.mrf.mxu0
      %v2823 = vadd.f32 %v2734, %v2822
      %2824 = vmatmul.bf16.gmra.mxu0 %v2198
      %v2825 = vpop.f32.mrf.mxu0
      %v2826 = vadd.f32 %v2737, %v2825
      %v2827 = vpop.f32.mrf.mxu0
      %v2828 = vadd.f32 %v2739, %v2827
      %2829 = vmatmul.bf16.gmra.mxu0 %v2201
      %v2830 = vpop.f32.mrf.mxu0
      %v2831 = vadd.f32 %v2742, %v2830
      %v2832 = vpop.f32.mrf.mxu0
      %v2833 = vadd.f32 %v2744, %v2832
      %2834 = vmatmul.bf16.gmra.mxu0 %v2204
      %v2835 = vpop.f32.mrf.mxu0
      %v2836 = vadd.f32 %v2747, %v2835
      %v2837 = vpop.f32.mrf.mxu0
      %v2838 = vadd.f32 %v2749, %v2837
      %2839 = vmatmul.bf16.gmra.mxu0 %v2207
      %v2840 = vpop.f32.mrf.mxu0
      %v2841 = vadd.f32 %v2752, %v2840
      %v2842 = vpop.f32.mrf.mxu0
      %v2843 = vadd.f32 %v2754, %v2842
      %2844 = vmatmul.bf16.gmra.mxu0 %v2210
      %v2845 = vpop.f32.mrf.mxu0
      %v2846 = vadd.f32 %v2757, %v2845
      %v2847 = vpop.f32.mrf.mxu0
      %v2848 = vadd.f32 %v2759, %v2847
      %2849 = vmatmul.bf16.gmra.mxu0 %v2213
      %v2850 = vpop.f32.mrf.mxu0
      %v2851 = vadd.f32 %v2762, %v2850
      %v2852 = vpop.f32.mrf.mxu0
      %v2853 = vadd.f32 %v2764, %v2852
      %2854 = vmatmul.bf16.gmra.mxu0 %v2216
      %v2855 = vpop.f32.mrf.mxu0
      %v2856 = vadd.f32 %v2767, %v2855
      %v2857 = vpop.f32.mrf.mxu0
      %v2858 = vadd.f32 %v2769, %v2857
      %2859 = vmatmul.bf16.gmra.mxu0 %v2219
      %v2860 = vpop.f32.mrf.mxu0
      %v2861 = vadd.f32 %v2772, %v2860
      %v2862 = vpop.f32.mrf.mxu0
      %v2863 = vadd.f32 %v2774, %v2862
      %2864 = vmatmul.bf16.gmra.mxu0 %v2222
      %v2865 = vpop.f32.mrf.mxu0
      %v2866 = vadd.f32 %v2777, %v2865
      %v2867 = vpop.f32.mrf.mxu0
      %v2868 = vadd.f32 %v2779, %v2867
      %2869 = vmatmul.bf16.gmra.mxu0 %v2225
      %v2870 = vpop.f32.mrf.mxu0
      %v2871 = vadd.f32 %v2782, %v2870
      %v2872 = vpop.f32.mrf.mxu0
      %v2873 = vadd.f32 %v2784, %v2872
      %2874 = vmatmul.bf16.gmra.mxu0 %v2228
      %v2875 = vpop.f32.mrf.mxu0
      %v2876 = vadd.f32 %v2787, %v2875
      %v2877 = vpop.f32.mrf.mxu0
      %v2878 = vadd.f32 %v2789, %v2877
      %2879 = vmatmul.bf16.gmra.mxu0 %v2231
      %v2880 = vpop.f32.mrf.mxu0
      %v2881 = vadd.f32 %v2792, %v2880
      %v2882 = vpop.f32.mrf.mxu0
      %v2883 = vadd.f32 %v2794, %v2882
      %2884 = vmatmul.bf16.gmra.mxu0 %v2234
      %v2885 = vpop.f32.mrf.mxu0
      %v2886 = vadd.f32 %v2797, %v2885
      %v2887 = vpop.f32.mrf.mxu0
      %v2888 = vadd.f32 %v2799, %v2887
      %2889 = vmatmul.bf16.gmra.mxu0 %v2237
      %v2890 = vpop.f32.mrf.mxu0
      %v2891 = vadd.f32 %v2802, %v2890
      %v2892 = vpop.f32.mrf.mxu0
      %v2893 = vadd.f32 %v2804, %v2892
      %2894 = vmatmul.bf16.gmra.mxu0 %v2240
      %v2895 = vpop.f32.mrf.mxu0
      %v2896 = vadd.f32 %v2807, %v2895
      %v2897 = vpop.f32.mrf.mxu0
      %v2898 = vadd.f32 %v2809, %v2897
      %2899 = vdwg.mxu0
      %2900 = vmatpush.bf16.msra.mxu0 %v2647
      %2901 = vmatpush.bf16.msra.mxu0 %v2644
      %2902 = vmatpush.bf16.msra.mxu0 %v2641
      %2903 = vmatpush.bf16.msra.mxu0 %v2638
      %2904 = vmatpush.bf16.msra.mxu0 %v2635
      %2905 = vmatpush.bf16.msra.mxu0 %v2632
      %2906 = vmatpush.bf16.msra.mxu0 %v2629
      %2907 = vmatpush.bf16.msra.mxu0 %v2626
      %2908 = vmatmul.bf16.gmra.mxu0 %v2196
      %v2909 = vpop.f32.mrf.mxu0
      %v2910 = vadd.f32 %v2821, %v2909
      %v2911 = vpop.f32.mrf.mxu0
      %v2912 = vadd.f32 %v2823, %v2911
      %2913 = vmatmul.bf16.gmra.mxu0 %v2199
      %v2914 = vpop.f32.mrf.mxu0
      %v2915 = vadd.f32 %v2826, %v2914
      %v2916 = vpop.f32.mrf.mxu0
      %v2917 = vadd.f32 %v2828, %v2916
      %2918 = vmatmul.bf16.gmra.mxu0 %v2202
      %v2919 = vpop.f32.mrf.mxu0
      %v2920 = vadd.f32 %v2831, %v2919
      %v2921 = vpop.f32.mrf.mxu0
      %v2922 = vadd.f32 %v2833, %v2921
      %2923 = vmatmul.bf16.gmra.mxu0 %v2205
      %v2924 = vpop.f32.mrf.mxu0
      %v2925 = vadd.f32 %v2836, %v2924
      %v2926 = vpop.f32.mrf.mxu0
      %v2927 = vadd.f32 %v2838, %v2926
      %2928 = vmatmul.bf16.gmra.mxu0 %v2208
      %v2929 = vpop.f32.mrf.mxu0
      %v2930 = vadd.f32 %v2841, %v2929
      %v2931 = vpop.f32.mrf.mxu0
      %v2932 = vadd.f32 %v2843, %v2931
      %2933 = vmatmul.bf16.gmra.mxu0 %v2211
      %v2934 = vpop.f32.mrf.mxu0
      %v2935 = vadd.f32 %v2846, %v2934
      %v2936 = vpop.f32.mrf.mxu0
      %v2937 = vadd.f32 %v2848, %v2936
      %2938 = vmatmul.bf16.gmra.mxu0 %v2214
      %v2939 = vpop.f32.mrf.mxu0
      %v2940 = vadd.f32 %v2851, %v2939
      %v2941 = vpop.f32.mrf.mxu0
      %v2942 = vadd.f32 %v2853, %v2941
      %2943 = vmatmul.bf16.gmra.mxu0 %v2217
      %v2944 = vpop.f32.mrf.mxu0
      %v2945 = vadd.f32 %v2856, %v2944
      %v2946 = vpop.f32.mrf.mxu0
      %v2947 = vadd.f32 %v2858, %v2946
      %2948 = vmatmul.bf16.gmra.mxu0 %v2220
      %v2949 = vpop.f32.mrf.mxu0
      %v2950 = vadd.f32 %v2861, %v2949
      %v2951 = vpop.f32.mrf.mxu0
      %v2952 = vadd.f32 %v2863, %v2951
      %2953 = vmatmul.bf16.gmra.mxu0 %v2223
      %v2954 = vpop.f32.mrf.mxu0
      %v2955 = vadd.f32 %v2866, %v2954
      %v2956 = vpop.f32.mrf.mxu0
      %v2957 = vadd.f32 %v2868, %v2956
      %2958 = vmatmul.bf16.gmra.mxu0 %v2226
      %v2959 = vpop.f32.mrf.mxu0
      %v2960 = vadd.f32 %v2871, %v2959
      %v2961 = vpop.f32.mrf.mxu0
      %v2962 = vadd.f32 %v2873, %v2961
      %2963 = vmatmul.bf16.gmra.mxu0 %v2229
      %v2964 = vpop.f32.mrf.mxu0
      %v2965 = vadd.f32 %v2876, %v2964
      %v2966 = vpop.f32.mrf.mxu0
      %v2967 = vadd.f32 %v2878, %v2966
      %2968 = vmatmul.bf16.gmra.mxu0 %v2232
      %v2969 = vpop.f32.mrf.mxu0
      %v2970 = vadd.f32 %v2881, %v2969
      %v2971 = vpop.f32.mrf.mxu0
      %v2972 = vadd.f32 %v2883, %v2971
      %2973 = vmatmul.bf16.gmra.mxu0 %v2235
      %v2974 = vpop.f32.mrf.mxu0
      %v2975 = vadd.f32 %v2886, %v2974
      %v2976 = vpop.f32.mrf.mxu0
      %v2977 = vadd.f32 %v2888, %v2976
      %2978 = vmatmul.bf16.gmra.mxu0 %v2238
      %v2979 = vpop.f32.mrf.mxu0
      %v2980 = vadd.f32 %v2891, %v2979
      %v2981 = vpop.f32.mrf.mxu0
      %v2982 = vadd.f32 %v2893, %v2981
      %2983 = vmatmul.bf16.gmra.mxu0 %v2241
      %v2984 = vpop.f32.mrf.mxu0
      %v2985 = vadd.f32 %v2896, %v2984
      %v2986 = vpop.f32.mrf.mxu0
      %v2987 = vadd.f32 %v2898, %v2986
      %2988 = vdwg.mxu0
      %2989 = vmatpush.bf16.msra.mxu0 %v2600
      %2990 = vmatpush.bf16.msra.mxu0 %v2597
      %2991 = vmatpush.bf16.msra.mxu0 %v2594
      %2992 = vmatpush.bf16.msra.mxu0 %v2591
      %2993 = vmatpush.bf16.msra.mxu0 %v2588
      %2994 = vmatpush.bf16.msra.mxu0 %v2585
      %2995 = vmatpush.bf16.msra.mxu0 %v2582
      %2996 = vmatpush.bf16.msra.mxu0 %v2579
      %2997 = vmatmul.bf16.gmra.mxu0 %v2194
      %v2998 = vpop.f32.mrf.mxu0
      %v2999 = vadd.f32 0.0, %v2998
      %v3000 = vpop.f32.mrf.mxu0
      %v3001 = vadd.f32 0.0, %v3000
      %3002 = vmatmul.bf16.gmra.mxu0 %v2197
      %v3003 = vpop.f32.mrf.mxu0
      %v3004 = vadd.f32 0.0, %v3003
      %v3005 = vpop.f32.mrf.mxu0
      %v3006 = vadd.f32 0.0, %v3005
      %3007 = vmatmul.bf16.gmra.mxu0 %v2200
      %v3008 = vpop.f32.mrf.mxu0
      %v3009 = vadd.f32 0.0, %v3008
      %v3010 = vpop.f32.mrf.mxu0
      %v3011 = vadd.f32 0.0, %v3010
      %3012 = vmatmul.bf16.gmra.mxu0 %v2203
      %v3013 = vpop.f32.mrf.mxu0
      %v3014 = vadd.f32 0.0, %v3013
      %v3015 = vpop.f32.mrf.mxu0
      %v3016 = vadd.f32 0.0, %v3015
      %3017 = vmatmul.bf16.gmra.mxu0 %v2206
      %v3018 = vpop.f32.mrf.mxu0
      %v3019 = vadd.f32 0.0, %v3018
      %v3020 = vpop.f32.mrf.mxu0
      %v3021 = vadd.f32 0.0, %v3020
      %3022 = vmatmul.bf16.gmra.mxu0 %v2209
      %v3023 = vpop.f32.mrf.mxu0
      %v3024 = vadd.f32 0.0, %v3023
      %v3025 = vpop.f32.mrf.mxu0
      %v3026 = vadd.f32 0.0, %v3025
      %3027 = vmatmul.bf16.gmra.mxu0 %v2212
      %v3028 = vpop.f32.mrf.mxu0
      %v3029 = vadd.f32 0.0, %v3028
      %v3030 = vpop.f32.mrf.mxu0
      %v3031 = vadd.f32 0.0, %v3030
      %3032 = vmatmul.bf16.gmra.mxu0 %v2215
      %v3033 = vpop.f32.mrf.mxu0
      %v3034 = vadd.f32 0.0, %v3033
      %v3035 = vpop.f32.mrf.mxu0
      %v3036 = vadd.f32 0.0, %v3035
      %3037 = vmatmul.bf16.gmra.mxu0 %v2218
      %v3038 = vpop.f32.mrf.mxu0
      %v3039 = vadd.f32 0.0, %v3038
      %v3040 = vpop.f32.mrf.mxu0
      %v3041 = vadd.f32 0.0, %v3040
      %3042 = vmatmul.bf16.gmra.mxu0 %v2221
      %v3043 = vpop.f32.mrf.mxu0
      %v3044 = vadd.f32 0.0, %v3043
      %v3045 = vpop.f32.mrf.mxu0
      %v3046 = vadd.f32 0.0, %v3045
      %3047 = vmatmul.bf16.gmra.mxu0 %v2224
      %v3048 = vpop.f32.mrf.mxu0
      %v3049 = vadd.f32 0.0, %v3048
      %v3050 = vpop.f32.mrf.mxu0
      %v3051 = vadd.f32 0.0, %v3050
      %3052 = vmatmul.bf16.gmra.mxu0 %v2227
      %v3053 = vpop.f32.mrf.mxu0
      %v3054 = vadd.f32 0.0, %v3053
      %v3055 = vpop.f32.mrf.mxu0
      %v3056 = vadd.f32 0.0, %v3055
      %3057 = vmatmul.bf16.gmra.mxu0 %v2230
      %v3058 = vpop.f32.mrf.mxu0
      %v3059 = vadd.f32 0.0, %v3058
      %v3060 = vpop.f32.mrf.mxu0
      %v3061 = vadd.f32 0.0, %v3060
      %3062 = vmatmul.bf16.gmra.mxu0 %v2233
      %v3063 = vpop.f32.mrf.mxu0
      %v3064 = vadd.f32 0.0, %v3063
      %v3065 = vpop.f32.mrf.mxu0
      %v3066 = vadd.f32 0.0, %v3065
      %3067 = vmatmul.bf16.gmra.mxu0 %v2236
      %v3068 = vpop.f32.mrf.mxu0
      %v3069 = vadd.f32 0.0, %v3068
      %v3070 = vpop.f32.mrf.mxu0
      %v3071 = vadd.f32 0.0, %v3070
      %3072 = vmatmul.bf16.gmra.mxu0 %v2239
      %v3073 = vpop.f32.mrf.mxu0
      %v3074 = vadd.f32 0.0, %v3073
      %v3075 = vpop.f32.mrf.mxu0
      %v3076 = vadd.f32 0.0, %v3075
      %3077 = vdwg.mxu0
      %3078 = vmatpush.bf16.msra.mxu0 %v2624
      %3079 = vmatpush.bf16.msra.mxu0 %v2621
      %3080 = vmatpush.bf16.msra.mxu0 %v2618
      %3081 = vmatpush.bf16.msra.mxu0 %v2615
      %3082 = vmatpush.bf16.msra.mxu0 %v2612
      %3083 = vmatpush.bf16.msra.mxu0 %v2609
      %3084 = vmatpush.bf16.msra.mxu0 %v2606
      %3085 = vmatpush.bf16.msra.mxu0 %v2603
      %3086 = vmatmul.bf16.gmra.mxu0 %v2195
      %v3087 = vpop.f32.mrf.mxu0
      %v3088 = vadd.f32 %v2999, %v3087
      %v3089 = vpop.f32.mrf.mxu0
      %v3090 = vadd.f32 %v3001, %v3089
      %3091 = vmatmul.bf16.gmra.mxu0 %v2198
      %v3092 = vpop.f32.mrf.mxu0
      %v3093 = vadd.f32 %v3004, %v3092
      %v3094 = vpop.f32.mrf.mxu0
      %v3095 = vadd.f32 %v3006, %v3094
      %3096 = vmatmul.bf16.gmra.mxu0 %v2201
      %v3097 = vpop.f32.mrf.mxu0
      %v3098 = vadd.f32 %v3009, %v3097
      %v3099 = vpop.f32.mrf.mxu0
      %v3100 = vadd.f32 %v3011, %v3099
      %3101 = vmatmul.bf16.gmra.mxu0 %v2204
      %v3102 = vpop.f32.mrf.mxu0
      %v3103 = vadd.f32 %v3014, %v3102
      %v3104 = vpop.f32.mrf.mxu0
      %v3105 = vadd.f32 %v3016, %v3104
      %3106 = vmatmul.bf16.gmra.mxu0 %v2207
      %v3107 = vpop.f32.mrf.mxu0
      %v3108 = vadd.f32 %v3019, %v3107
      %v3109 = vpop.f32.mrf.mxu0
      %v3110 = vadd.f32 %v3021, %v3109
      %3111 = vmatmul.bf16.gmra.mxu0 %v2210
      %v3112 = vpop.f32.mrf.mxu0
      %v3113 = vadd.f32 %v3024, %v3112
      %v3114 = vpop.f32.mrf.mxu0
      %v3115 = vadd.f32 %v3026, %v3114
      %3116 = vmatmul.bf16.gmra.mxu0 %v2213
      %v3117 = vpop.f32.mrf.mxu0
      %v3118 = vadd.f32 %v3029, %v3117
      %v3119 = vpop.f32.mrf.mxu0
      %v3120 = vadd.f32 %v3031, %v3119
      %3121 = vmatmul.bf16.gmra.mxu0 %v2216
      %v3122 = vpop.f32.mrf.mxu0
      %v3123 = vadd.f32 %v3034, %v3122
      %v3124 = vpop.f32.mrf.mxu0
      %v3125 = vadd.f32 %v3036, %v3124
      %3126 = vmatmul.bf16.gmra.mxu0 %v2219
      %v3127 = vpop.f32.mrf.mxu0
      %v3128 = vadd.f32 %v3039, %v3127
      %v3129 = vpop.f32.mrf.mxu0
      %v3130 = vadd.f32 %v3041, %v3129
      %3131 = vmatmul.bf16.gmra.mxu0 %v2222
      %v3132 = vpop.f32.mrf.mxu0
      %v3133 = vadd.f32 %v3044, %v3132
      %v3134 = vpop.f32.mrf.mxu0
      %v3135 = vadd.f32 %v3046, %v3134
      %3136 = vmatmul.bf16.gmra.mxu0 %v2225
      %v3137 = vpop.f32.mrf.mxu0
      %v3138 = vadd.f32 %v3049, %v3137
      %v3139 = vpop.f32.mrf.mxu0
      %v3140 = vadd.f32 %v3051, %v3139
      %3141 = vmatmul.bf16.gmra.mxu0 %v2228
      %v3142 = vpop.f32.mrf.mxu0
      %v3143 = vadd.f32 %v3054, %v3142
      %v3144 = vpop.f32.mrf.mxu0
      %v3145 = vadd.f32 %v3056, %v3144
      %3146 = vmatmul.bf16.gmra.mxu0 %v2231
      %v3147 = vpop.f32.mrf.mxu0
      %v3148 = vadd.f32 %v3059, %v3147
      %v3149 = vpop.f32.mrf.mxu0
      %v3150 = vadd.f32 %v3061, %v3149
      %3151 = vmatmul.bf16.gmra.mxu0 %v2234
      %v3152 = vpop.f32.mrf.mxu0
      %v3153 = vadd.f32 %v3064, %v3152
      %v3154 = vpop.f32.mrf.mxu0
      %v3155 = vadd.f32 %v3066, %v3154
      %3156 = vmatmul.bf16.gmra.mxu0 %v2237
      %v3157 = vpop.f32.mrf.mxu0
      %v3158 = vadd.f32 %v3069, %v3157
      %v3159 = vpop.f32.mrf.mxu0
      %v3160 = vadd.f32 %v3071, %v3159
      %3161 = vmatmul.bf16.gmra.mxu0 %v2240
      %v3162 = vpop.f32.mrf.mxu0
      %v3163 = vadd.f32 %v3074, %v3162
      %v3164 = vpop.f32.mrf.mxu0
      %v3165 = vadd.f32 %v3076, %v3164
      %3166 = vdwg.mxu0
      %3167 = vmatpush.bf16.msra.mxu0 %v2648
      %3168 = vmatpush.bf16.msra.mxu0 %v2645
      %3169 = vmatpush.bf16.msra.mxu0 %v2642
      %3170 = vmatpush.bf16.msra.mxu0 %v2639
      %3171 = vmatpush.bf16.msra.mxu0 %v2636
      %3172 = vmatpush.bf16.msra.mxu0 %v2633
      %3173 = vmatpush.bf16.msra.mxu0 %v2630
      %3174 = vmatpush.bf16.msra.mxu0 %v2627
      %3175 = vmatmul.bf16.gmra.mxu0 %v2196
      %v3176 = vpop.f32.mrf.mxu0
      %v3177 = vadd.f32 %v3088, %v3176
      %v3178 = vpop.f32.mrf.mxu0
      %v3179 = vadd.f32 %v3090, %v3178
      %3180 = vmatmul.bf16.gmra.mxu0 %v2199
      %v3181 = vpop.f32.mrf.mxu0
      %v3182 = vadd.f32 %v3093, %v3181
      %v3183 = vpop.f32.mrf.mxu0
      %v3184 = vadd.f32 %v3095, %v3183
      %3185 = vmatmul.bf16.gmra.mxu0 %v2202
      %v3186 = vpop.f32.mrf.mxu0
      %v3187 = vadd.f32 %v3098, %v3186
      %v3188 = vpop.f32.mrf.mxu0
      %v3189 = vadd.f32 %v3100, %v3188
      %3190 = vmatmul.bf16.gmra.mxu0 %v2205
      %v3191 = vpop.f32.mrf.mxu0
      %v3192 = vadd.f32 %v3103, %v3191
      %v3193 = vpop.f32.mrf.mxu0
      %v3194 = vadd.f32 %v3105, %v3193
      %3195 = vmatmul.bf16.gmra.mxu0 %v2208
      %v3196 = vpop.f32.mrf.mxu0
      %v3197 = vadd.f32 %v3108, %v3196
      %v3198 = vpop.f32.mrf.mxu0
      %v3199 = vadd.f32 %v3110, %v3198
      %3200 = vmatmul.bf16.gmra.mxu0 %v2211
      %v3201 = vpop.f32.mrf.mxu0
      %v3202 = vadd.f32 %v3113, %v3201
      %v3203 = vpop.f32.mrf.mxu0
      %v3204 = vadd.f32 %v3115, %v3203
      %3205 = vmatmul.bf16.gmra.mxu0 %v2214
      %v3206 = vpop.f32.mrf.mxu0
      %v3207 = vadd.f32 %v3118, %v3206
      %v3208 = vpop.f32.mrf.mxu0
      %v3209 = vadd.f32 %v3120, %v3208
      %3210 = vmatmul.bf16.gmra.mxu0 %v2217
      %v3211 = vpop.f32.mrf.mxu0
      %v3212 = vadd.f32 %v3123, %v3211
      %v3213 = vpop.f32.mrf.mxu0
      %v3214 = vadd.f32 %v3125, %v3213
      %3215 = vmatmul.bf16.gmra.mxu0 %v2220
      %v3216 = vpop.f32.mrf.mxu0
      %v3217 = vadd.f32 %v3128, %v3216
      %v3218 = vpop.f32.mrf.mxu0
      %v3219 = vadd.f32 %v3130, %v3218
      %3220 = vmatmul.bf16.gmra.mxu0 %v2223
      %v3221 = vpop.f32.mrf.mxu0
      %v3222 = vadd.f32 %v3133, %v3221
      %v3223 = vpop.f32.mrf.mxu0
      %v3224 = vadd.f32 %v3135, %v3223
      %3225 = vmatmul.bf16.gmra.mxu0 %v2226
      %v3226 = vpop.f32.mrf.mxu0
      %v3227 = vadd.f32 %v3138, %v3226
      %v3228 = vpop.f32.mrf.mxu0
      %v3229 = vadd.f32 %v3140, %v3228
      %3230 = vmatmul.bf16.gmra.mxu0 %v2229
      %v3231 = vpop.f32.mrf.mxu0
      %v3232 = vadd.f32 %v3143, %v3231
      %v3233 = vpop.f32.mrf.mxu0
      %v3234 = vadd.f32 %v3145, %v3233
      %3235 = vmatmul.bf16.gmra.mxu0 %v2232
      %v3236 = vpop.f32.mrf.mxu0
      %v3237 = vadd.f32 %v3148, %v3236
      %v3238 = vpop.f32.mrf.mxu0
      %v3239 = vadd.f32 %v3150, %v3238
      %3240 = vmatmul.bf16.gmra.mxu0 %v2235
      %v3241 = vpop.f32.mrf.mxu0
      %v3242 = vadd.f32 %v3153, %v3241
      %v3243 = vpop.f32.mrf.mxu0
      %v3244 = vadd.f32 %v3155, %v3243
      %3245 = vmatmul.bf16.gmra.mxu0 %v2238
      %v3246 = vpop.f32.mrf.mxu0
      %v3247 = vadd.f32 %v3158, %v3246
      %v3248 = vpop.f32.mrf.mxu0
      %v3249 = vadd.f32 %v3160, %v3248
      %3250 = vmatmul.bf16.gmra.mxu0 %v2241
      %v3251 = vpop.f32.mrf.mxu0
      %v3252 = vadd.f32 %v3163, %v3251
      %v3253 = vpop.f32.mrf.mxu0
      %v3254 = vadd.f32 %v3165, %v3253
      %3255 = vdwg.mxu0
      %3256 = vmatpush.bf16.msra.mxu0 %v2601
      %3257 = vmatpush.bf16.msra.mxu0 %v2598
      %3258 = vmatpush.bf16.msra.mxu0 %v2595
      %3259 = vmatpush.bf16.msra.mxu0 %v2592
      %3260 = vmatpush.bf16.msra.mxu0 %v2589
      %3261 = vmatpush.bf16.msra.mxu0 %v2586
      %3262 = vmatpush.bf16.msra.mxu0 %v2583
      %3263 = vmatpush.bf16.msra.mxu0 %v2580
      %3264 = vmatmul.bf16.gmra.mxu0 %v2194
      %v3265 = vpop.f32.mrf.mxu0
      %v3266 = vadd.f32 0.0, %v3265
      %v3267 = vpop.f32.mrf.mxu0
      %v3268 = vadd.f32 0.0, %v3267
      %3269 = vmatmul.bf16.gmra.mxu0 %v2197
      %v3270 = vpop.f32.mrf.mxu0
      %v3271 = vadd.f32 0.0, %v3270
      %v3272 = vpop.f32.mrf.mxu0
      %v3273 = vadd.f32 0.0, %v3272
      %3274 = vmatmul.bf16.gmra.mxu0 %v2200
      %v3275 = vpop.f32.mrf.mxu0
      %v3276 = vadd.f32 0.0, %v3275
      %v3277 = vpop.f32.mrf.mxu0
      %v3278 = vadd.f32 0.0, %v3277
      %3279 = vmatmul.bf16.gmra.mxu0 %v2203
      %v3280 = vpop.f32.mrf.mxu0
      %v3281 = vadd.f32 0.0, %v3280
      %v3282 = vpop.f32.mrf.mxu0
      %v3283 = vadd.f32 0.0, %v3282
      %3284 = vmatmul.bf16.gmra.mxu0 %v2206
      %v3285 = vpop.f32.mrf.mxu0
      %v3286 = vadd.f32 0.0, %v3285
      %v3287 = vpop.f32.mrf.mxu0
      %v3288 = vadd.f32 0.0, %v3287
      %3289 = vmatmul.bf16.gmra.mxu0 %v2209
      %v3290 = vpop.f32.mrf.mxu0
      %v3291 = vadd.f32 0.0, %v3290
      %v3292 = vpop.f32.mrf.mxu0
      %v3293 = vadd.f32 0.0, %v3292
      %3294 = vmatmul.bf16.gmra.mxu0 %v2212
      %v3295 = vpop.f32.mrf.mxu0
      %v3296 = vadd.f32 0.0, %v3295
      %v3297 = vpop.f32.mrf.mxu0
      %v3298 = vadd.f32 0.0, %v3297
      %3299 = vmatmul.bf16.gmra.mxu0 %v2215
      %v3300 = vpop.f32.mrf.mxu0
      %v3301 = vadd.f32 0.0, %v3300
      %v3302 = vpop.f32.mrf.mxu0
      %v3303 = vadd.f32 0.0, %v3302
      %3304 = vmatmul.bf16.gmra.mxu0 %v2218
      %v3305 = vpop.f32.mrf.mxu0
      %v3306 = vadd.f32 0.0, %v3305
      %v3307 = vpop.f32.mrf.mxu0
      %v3308 = vadd.f32 0.0, %v3307
      %3309 = vmatmul.bf16.gmra.mxu0 %v2221
      %v3310 = vpop.f32.mrf.mxu0
      %v3311 = vadd.f32 0.0, %v3310
      %v3312 = vpop.f32.mrf.mxu0
      %v3313 = vadd.f32 0.0, %v3312
      %3314 = vmatmul.bf16.gmra.mxu0 %v2224
      %v3315 = vpop.f32.mrf.mxu0
      %v3316 = vadd.f32 0.0, %v3315
      %v3317 = vpop.f32.mrf.mxu0
      %v3318 = vadd.f32 0.0, %v3317
      %3319 = vmatmul.bf16.gmra.mxu0 %v2227
      %v3320 = vpop.f32.mrf.mxu0
      %v3321 = vadd.f32 0.0, %v3320
      %v3322 = vpop.f32.mrf.mxu0
      %v3323 = vadd.f32 0.0, %v3322
      %3324 = vmatmul.bf16.gmra.mxu0 %v2230
      %v3325 = vpop.f32.mrf.mxu0
      %v3326 = vadd.f32 0.0, %v3325
      %v3327 = vpop.f32.mrf.mxu0
      %v3328 = vadd.f32 0.0, %v3327
      %3329 = vmatmul.bf16.gmra.mxu0 %v2233
      %v3330 = vpop.f32.mrf.mxu0
      %v3331 = vadd.f32 0.0, %v3330
      %v3332 = vpop.f32.mrf.mxu0
      %v3333 = vadd.f32 0.0, %v3332
      %3334 = vmatmul.bf16.gmra.mxu0 %v2236
      %v3335 = vpop.f32.mrf.mxu0
      %v3336 = vadd.f32 0.0, %v3335
      %v3337 = vpop.f32.mrf.mxu0
      %v3338 = vadd.f32 0.0, %v3337
      %3339 = vmatmul.bf16.gmra.mxu0 %v2239
      %v3340 = vpop.f32.mrf.mxu0
      %v3341 = vadd.f32 0.0, %v3340
      %v3342 = vpop.f32.mrf.mxu0
      %v3343 = vadd.f32 0.0, %v3342
      %3344 = vdwg.mxu0
      %3345 = vmatpush.bf16.msra.mxu0 %v2625
      %3346 = vmatpush.bf16.msra.mxu0 %v2622
      %3347 = vmatpush.bf16.msra.mxu0 %v2619
      %3348 = vmatpush.bf16.msra.mxu0 %v2616
      %3349 = vmatpush.bf16.msra.mxu0 %v2613
      %3350 = vmatpush.bf16.msra.mxu0 %v2610
      %3351 = vmatpush.bf16.msra.mxu0 %v2607
      %3352 = vmatpush.bf16.msra.mxu0 %v2604
      %3353 = vmatmul.bf16.gmra.mxu0 %v2195
      %v3354 = vpop.f32.mrf.mxu0
      %v3355 = vadd.f32 %v3266, %v3354
      %v3356 = vpop.f32.mrf.mxu0
      %v3357 = vadd.f32 %v3268, %v3356
      %3358 = vmatmul.bf16.gmra.mxu0 %v2198
      %v3359 = vpop.f32.mrf.mxu0
      %v3360 = vadd.f32 %v3271, %v3359
      %v3361 = vpop.f32.mrf.mxu0
      %v3362 = vadd.f32 %v3273, %v3361
      %3363 = vmatmul.bf16.gmra.mxu0 %v2201
      %v3364 = vpop.f32.mrf.mxu0
      %v3365 = vadd.f32 %v3276, %v3364
      %v3366 = vpop.f32.mrf.mxu0
      %v3367 = vadd.f32 %v3278, %v3366
      %3368 = vmatmul.bf16.gmra.mxu0 %v2204
      %v3369 = vpop.f32.mrf.mxu0
      %v3370 = vadd.f32 %v3281, %v3369
      %v3371 = vpop.f32.mrf.mxu0
      %v3372 = vadd.f32 %v3283, %v3371
      %3373 = vmatmul.bf16.gmra.mxu0 %v2207
      %v3374 = vpop.f32.mrf.mxu0
      %v3375 = vadd.f32 %v3286, %v3374
      %v3376 = vpop.f32.mrf.mxu0
      %v3377 = vadd.f32 %v3288, %v3376
      %3378 = vmatmul.bf16.gmra.mxu0 %v2210
      %v3379 = vpop.f32.mrf.mxu0
      %v3380 = vadd.f32 %v3291, %v3379
      %v3381 = vpop.f32.mrf.mxu0
      %v3382 = vadd.f32 %v3293, %v3381
      %3383 = vmatmul.bf16.gmra.mxu0 %v2213
      %v3384 = vpop.f32.mrf.mxu0
      %v3385 = vadd.f32 %v3296, %v3384
      %v3386 = vpop.f32.mrf.mxu0
      %v3387 = vadd.f32 %v3298, %v3386
      %3388 = vmatmul.bf16.gmra.mxu0 %v2216
      %v3389 = vpop.f32.mrf.mxu0
      %v3390 = vadd.f32 %v3301, %v3389
      %v3391 = vpop.f32.mrf.mxu0
      %v3392 = vadd.f32 %v3303, %v3391
      %3393 = vmatmul.bf16.gmra.mxu0 %v2219
      %v3394 = vpop.f32.mrf.mxu0
      %v3395 = vadd.f32 %v3306, %v3394
      %v3396 = vpop.f32.mrf.mxu0
      %v3397 = vadd.f32 %v3308, %v3396
      %3398 = vmatmul.bf16.gmra.mxu0 %v2222
      %v3399 = vpop.f32.mrf.mxu0
      %v3400 = vadd.f32 %v3311, %v3399
      %v3401 = vpop.f32.mrf.mxu0
      %v3402 = vadd.f32 %v3313, %v3401
      %3403 = vmatmul.bf16.gmra.mxu0 %v2225
      %v3404 = vpop.f32.mrf.mxu0
      %v3405 = vadd.f32 %v3316, %v3404
      %v3406 = vpop.f32.mrf.mxu0
      %v3407 = vadd.f32 %v3318, %v3406
      %3408 = vmatmul.bf16.gmra.mxu0 %v2228
      %v3409 = vpop.f32.mrf.mxu0
      %v3410 = vadd.f32 %v3321, %v3409
      %v3411 = vpop.f32.mrf.mxu0
      %v3412 = vadd.f32 %v3323, %v3411
      %3413 = vmatmul.bf16.gmra.mxu0 %v2231
      %v3414 = vpop.f32.mrf.mxu0
      %v3415 = vadd.f32 %v3326, %v3414
      %v3416 = vpop.f32.mrf.mxu0
      %v3417 = vadd.f32 %v3328, %v3416
      %3418 = vmatmul.bf16.gmra.mxu0 %v2234
      %v3419 = vpop.f32.mrf.mxu0
      %v3420 = vadd.f32 %v3331, %v3419
      %v3421 = vpop.f32.mrf.mxu0
      %v3422 = vadd.f32 %v3333, %v3421
      %3423 = vmatmul.bf16.gmra.mxu0 %v2237
      %v3424 = vpop.f32.mrf.mxu0
      %v3425 = vadd.f32 %v3336, %v3424
      %v3426 = vpop.f32.mrf.mxu0
      %v3427 = vadd.f32 %v3338, %v3426
      %3428 = vmatmul.bf16.gmra.mxu0 %v2240
      %v3429 = vpop.f32.mrf.mxu0
      %v3430 = vadd.f32 %v3341, %v3429
      %v3431 = vpop.f32.mrf.mxu0
      %v3432 = vadd.f32 %v3343, %v3431
      %3433 = vdwg.mxu0
      %3434 = vmatpush.bf16.msra.mxu0 %v2649
      %3435 = vmatpush.bf16.msra.mxu0 %v2646
      %3436 = vmatpush.bf16.msra.mxu0 %v2643
      %3437 = vmatpush.bf16.msra.mxu0 %v2640
      %3438 = vmatpush.bf16.msra.mxu0 %v2637
      %3439 = vmatpush.bf16.msra.mxu0 %v2634
      %3440 = vmatpush.bf16.msra.mxu0 %v2631
      %3441 = vmatpush.bf16.msra.mxu0 %v2628
      %3442 = vmatmul.bf16.gmra.mxu0 %v2196
      %v3443 = vpop.f32.mrf.mxu0
      %v3444 = vadd.f32 %v3355, %v3443
      %v3445 = vpop.f32.mrf.mxu0
      %v3446 = vadd.f32 %v3357, %v3445
      %3447 = vmatmul.bf16.gmra.mxu0 %v2199
      %v3448 = vpop.f32.mrf.mxu0
      %v3449 = vadd.f32 %v3360, %v3448
      %v3450 = vpop.f32.mrf.mxu0
      %v3451 = vadd.f32 %v3362, %v3450
      %3452 = vmatmul.bf16.gmra.mxu0 %v2202
      %v3453 = vpop.f32.mrf.mxu0
      %v3454 = vadd.f32 %v3365, %v3453
      %v3455 = vpop.f32.mrf.mxu0
      %v3456 = vadd.f32 %v3367, %v3455
      %3457 = vmatmul.bf16.gmra.mxu0 %v2205
      %v3458 = vpop.f32.mrf.mxu0
      %v3459 = vadd.f32 %v3370, %v3458
      %v3460 = vpop.f32.mrf.mxu0
      %v3461 = vadd.f32 %v3372, %v3460
      %3462 = vmatmul.bf16.gmra.mxu0 %v2208
      %v3463 = vpop.f32.mrf.mxu0
      %v3464 = vadd.f32 %v3375, %v3463
      %v3465 = vpop.f32.mrf.mxu0
      %v3466 = vadd.f32 %v3377, %v3465
      %3467 = vmatmul.bf16.gmra.mxu0 %v2211
      %v3468 = vpop.f32.mrf.mxu0
      %v3469 = vadd.f32 %v3380, %v3468
      %v3470 = vpop.f32.mrf.mxu0
      %v3471 = vadd.f32 %v3382, %v3470
      %3472 = vmatmul.bf16.gmra.mxu0 %v2214
      %v3473 = vpop.f32.mrf.mxu0
      %v3474 = vadd.f32 %v3385, %v3473
      %v3475 = vpop.f32.mrf.mxu0
      %v3476 = vadd.f32 %v3387, %v3475
      %3477 = vmatmul.bf16.gmra.mxu0 %v2217
      %v3478 = vpop.f32.mrf.mxu0
      %v3479 = vadd.f32 %v3390, %v3478
      %v3480 = vpop.f32.mrf.mxu0
      %v3481 = vadd.f32 %v3392, %v3480
      %3482 = vmatmul.bf16.gmra.mxu0 %v2220
      %v3483 = vpop.f32.mrf.mxu0
      %v3484 = vadd.f32 %v3395, %v3483
      %v3485 = vpop.f32.mrf.mxu0
      %v3486 = vadd.f32 %v3397, %v3485
      %3487 = vmatmul.bf16.gmra.mxu0 %v2223
      %v3488 = vpop.f32.mrf.mxu0
      %v3489 = vadd.f32 %v3400, %v3488
      %v3490 = vpop.f32.mrf.mxu0
      %v3491 = vadd.f32 %v3402, %v3490
      %3492 = vmatmul.bf16.gmra.mxu0 %v2226
      %v3493 = vpop.f32.mrf.mxu0
      %v3494 = vadd.f32 %v3405, %v3493
      %v3495 = vpop.f32.mrf.mxu0
      %v3496 = vadd.f32 %v3407, %v3495
      %3497 = vmatmul.bf16.gmra.mxu0 %v2229
      %v3498 = vpop.f32.mrf.mxu0
      %v3499 = vadd.f32 %v3410, %v3498
      %v3500 = vpop.f32.mrf.mxu0
      %v3501 = vadd.f32 %v3412, %v3500
      %3502 = vmatmul.bf16.gmra.mxu0 %v2232
      %v3503 = vpop.f32.mrf.mxu0
      %v3504 = vadd.f32 %v3415, %v3503
      %v3505 = vpop.f32.mrf.mxu0
      %v3506 = vadd.f32 %v3417, %v3505
      %3507 = vmatmul.bf16.gmra.mxu0 %v2235
      %v3508 = vpop.f32.mrf.mxu0
      %v3509 = vadd.f32 %v3420, %v3508
      %v3510 = vpop.f32.mrf.mxu0
      %v3511 = vadd.f32 %v3422, %v3510
      %3512 = vmatmul.bf16.gmra.mxu0 %v2238
      %v3513 = vpop.f32.mrf.mxu0
      %v3514 = vadd.f32 %v3425, %v3513
      %v3515 = vpop.f32.mrf.mxu0
      %v3516 = vadd.f32 %v3427, %v3515
      %3517 = vmatmul.bf16.gmra.mxu0 %v2241
      %v3518 = vpop.f32.mrf.mxu0
      %v3519 = vadd.f32 %v3430, %v3518
      %v3520 = vpop.f32.mrf.mxu0
      %v3521 = vadd.f32 %v3432, %v3520
      %3522 = vdwg.mxu0
      %v3523 = vrot.slane %v2910, 7
      %v3524 = vrot.slane %v2912, 7
      %v3525 = vrot.slane %v2915, 7
      %v3526 = vrot.slane %v2917, 7
      %v3527 = vrot.slane %v2920, 7
      %v3528 = vrot.slane %v2922, 7
      %v3529 = vrot.slane %v2925, 7
      %v3530 = vrot.slane %v2927, 7
      %v3531 = vrot.slane %v2930, 7
      %v3532 = vrot.slane %v2932, 7
      %v3533 = vrot.slane %v2935, 7
      %v3534 = vrot.slane %v2937, 7
      %v3535 = vrot.slane %v2940, 7
      %v3536 = vrot.slane %v2942, 7
      %v3537 = vrot.slane %v2945, 7
      %v3538 = vrot.slane %v2947, 7
      %v3539 = vrot.slane %v2950, 7
      %v3540 = vrot.slane %v2952, 7
      %v3541 = vrot.slane %v2955, 7
      %v3542 = vrot.slane %v2957, 7
      %v3543 = vrot.slane %v2960, 7
      %v3544 = vrot.slane %v2962, 7
      %v3545 = vrot.slane %v2965, 7
      %v3546 = vrot.slane %v2967, 7
      %v3547 = vrot.slane %v2970, 7
      %v3548 = vrot.slane %v2972, 7
      %v3549 = vrot.slane %v2975, 7
      %v3550 = vrot.slane %v2977, 7
      %v3551 = vrot.slane %v2980, 7
      %v3552 = vrot.slane %v2982, 7
      %v3553 = vrot.slane %v2985, 7
      %v3554 = vrot.slane %v2987, 7
      %v3555 = vsel %vm1708, %v3553, %v3554
      %v3556 = vsel %vm1708, %v3552, %v3553
      %v3557 = vsel %vm1708, %v3551, %v3552
      %v3558 = vsel %vm1708, %v3550, %v3551
      %v3559 = vsel %vm1708, %v3549, %v3550
      %v3560 = vsel %vm1708, %v3548, %v3549
      %v3561 = vsel %vm1708, %v3547, %v3548
      %v3562 = vsel %vm1708, %v3546, %v3547
      %v3563 = vsel %vm1708, %v3545, %v3546
      %v3564 = vsel %vm1708, %v3544, %v3545
      %v3565 = vsel %vm1708, %v3543, %v3544
      %v3566 = vsel %vm1708, %v3542, %v3543
      %v3567 = vsel %vm1708, %v3541, %v3542
      %v3568 = vsel %vm1708, %v3540, %v3541
      %v3569 = vsel %vm1708, %v3539, %v3540
      %v3570 = vsel %vm1708, %v3538, %v3539
      %v3571 = vsel %vm1708, %v3537, %v3538
      %v3572 = vsel %vm1708, %v3536, %v3537
      %v3573 = vsel %vm1708, %v3535, %v3536
      %v3574 = vsel %vm1708, %v3534, %v3535
      %v3575 = vsel %vm1708, %v3533, %v3534
      %v3576 = vsel %vm1708, %v3532, %v3533
      %v3577 = vsel %vm1708, %v3531, %v3532
      %v3578 = vsel %vm1708, %v3530, %v3531
      %v3579 = vsel %vm1708, %v3529, %v3530
      %v3580 = vsel %vm1708, %v3528, %v3529
      %v3581 = vsel %vm1708, %v3527, %v3528
      %v3582 = vsel %vm1708, %v3526, %v3527
      %v3583 = vsel %vm1708, %v3525, %v3526
      %v3584 = vsel %vm1708, %v3524, %v3525
      %v3585 = vsel %vm1708, %v3523, %v3524
      %v3586 = vsel %vm1708, %v3554, %v3523
      %v3587 = vsel %vm1773, %v3586, 0.0
      %v3588 = vsel %vm1774, %v3585, 0.0
      %v3589 = vsel %vm1775, %v3584, 0.0
      %v3590 = vsel %vm1776, %v3583, 0.0
      %v3591 = vsel %vm1777, %v3582, 0.0
      %v3592 = vsel %vm1778, %v3581, 0.0
      %v3593 = vsel %vm1779, %v3580, 0.0
      %v3594 = vsel %vm1780, %v3579, 0.0
      %v3595 = vsel %vm1781, %v3578, 0.0
      %v3596 = vsel %vm1782, %v3577, 0.0
      %v3597 = vsel %vm1783, %v3576, 0.0
      %v3598 = vsel %vm1784, %v3575, 0.0
      %v3599 = vsel %vm1785, %v3574, 0.0
      %v3600 = vsel %vm1786, %v3573, 0.0
      %v3601 = vsel %vm1787, %v3572, 0.0
      %v3602 = vsel %vm1788, %v3571, 0.0
      %v3603 = vsel %vm1789, %v3570, 0.0
      %v3604 = vsel %vm1790, %v3569, 0.0
      %v3605 = vsel %vm1791, %v3568, 0.0
      %v3606 = vsel %vm1792, %v3567, 0.0
      %v3607 = vsel %vm1793, %v3566, 0.0
      %v3608 = vsel %vm1794, %v3565, 0.0
      %v3609 = vsel %vm1795, %v3564, 0.0
      %v3610 = vsel %vm1796, %v3563, 0.0
      %v3611 = vsel %vm1797, %v3562, 0.0
      %v3612 = vsel %vm1798, %v3561, 0.0
      %v3613 = vsel %vm1799, %v3560, 0.0
      %v3614 = vsel %vm1800, %v3559, 0.0
      %v3615 = vsel %vm1801, %v3558, 0.0
      %v3616 = vsel %vm1802, %v3557, 0.0
      %v3617 = vsel %vm1803, %v3556, 0.0
      %v3618 = vsel %vm1804, %v3555, 0.0
      %v3619 = vrot.slane %v3444, 1
      %v3620 = vrot.slane %v3446, 1
      %v3621 = vrot.slane %v3449, 1
      %v3622 = vrot.slane %v3451, 1
      %v3623 = vrot.slane %v3454, 1
      %v3624 = vrot.slane %v3456, 1
      %v3625 = vrot.slane %v3459, 1
      %v3626 = vrot.slane %v3461, 1
      %v3627 = vrot.slane %v3464, 1
      %v3628 = vrot.slane %v3466, 1
      %v3629 = vrot.slane %v3469, 1
      %v3630 = vrot.slane %v3471, 1
      %v3631 = vrot.slane %v3474, 1
      %v3632 = vrot.slane %v3476, 1
      %v3633 = vrot.slane %v3479, 1
      %v3634 = vrot.slane %v3481, 1
      %v3635 = vrot.slane %v3484, 1
      %v3636 = vrot.slane %v3486, 1
      %v3637 = vrot.slane %v3489, 1
      %v3638 = vrot.slane %v3491, 1
      %v3639 = vrot.slane %v3494, 1
      %v3640 = vrot.slane %v3496, 1
      %v3641 = vrot.slane %v3499, 1
      %v3642 = vrot.slane %v3501, 1
      %v3643 = vrot.slane %v3504, 1
      %v3644 = vrot.slane %v3506, 1
      %v3645 = vrot.slane %v3509, 1
      %v3646 = vrot.slane %v3511, 1
      %v3647 = vrot.slane %v3514, 1
      %v3648 = vrot.slane %v3516, 1
      %v3649 = vrot.slane %v3519, 1
      %v3650 = vrot.slane %v3521, 1
      %v3651 = vsel %vm1869, %v3649, %v3650
      %v3652 = vsel %vm1869, %v3648, %v3649
      %v3653 = vsel %vm1869, %v3647, %v3648
      %v3654 = vsel %vm1869, %v3646, %v3647
      %v3655 = vsel %vm1869, %v3645, %v3646
      %v3656 = vsel %vm1869, %v3644, %v3645
      %v3657 = vsel %vm1869, %v3643, %v3644
      %v3658 = vsel %vm1869, %v3642, %v3643
      %v3659 = vsel %vm1869, %v3641, %v3642
      %v3660 = vsel %vm1869, %v3640, %v3641
      %v3661 = vsel %vm1869, %v3639, %v3640
      %v3662 = vsel %vm1869, %v3638, %v3639
      %v3663 = vsel %vm1869, %v3637, %v3638
      %v3664 = vsel %vm1869, %v3636, %v3637
      %v3665 = vsel %vm1869, %v3635, %v3636
      %v3666 = vsel %vm1869, %v3634, %v3635
      %v3667 = vsel %vm1869, %v3633, %v3634
      %v3668 = vsel %vm1869, %v3632, %v3633
      %v3669 = vsel %vm1869, %v3631, %v3632
      %v3670 = vsel %vm1869, %v3630, %v3631
      %v3671 = vsel %vm1869, %v3629, %v3630
      %v3672 = vsel %vm1869, %v3628, %v3629
      %v3673 = vsel %vm1869, %v3627, %v3628
      %v3674 = vsel %vm1869, %v3626, %v3627
      %v3675 = vsel %vm1869, %v3625, %v3626
      %v3676 = vsel %vm1869, %v3624, %v3625
      %v3677 = vsel %vm1869, %v3623, %v3624
      %v3678 = vsel %vm1869, %v3622, %v3623
      %v3679 = vsel %vm1869, %v3621, %v3622
      %v3680 = vsel %vm1869, %v3620, %v3621
      %v3681 = vsel %vm1869, %v3619, %v3620
      %v3682 = vsel %vm1869, %v3650, %v3619
      %v3683 = vsel %vm1934, %v3681, 0.0
      %v3684 = vsel %vm1935, %v3680, 0.0
      %v3685 = vsel %vm1936, %v3679, 0.0
      %v3686 = vsel %vm1937, %v3678, 0.0
      %v3687 = vsel %vm1938, %v3677, 0.0
      %v3688 = vsel %vm1939, %v3676, 0.0
      %v3689 = vsel %vm1940, %v3675, 0.0
      %v3690 = vsel %vm1941, %v3674, 0.0
      %v3691 = vsel %vm1942, %v3673, 0.0
      %v3692 = vsel %vm1943, %v3672, 0.0
      %v3693 = vsel %vm1944, %v3671, 0.0
      %v3694 = vsel %vm1945, %v3670, 0.0
      %v3695 = vsel %vm1946, %v3669, 0.0
      %v3696 = vsel %vm1947, %v3668, 0.0
      %v3697 = vsel %vm1948, %v3667, 0.0
      %v3698 = vsel %vm1949, %v3666, 0.0
      %v3699 = vsel %vm1950, %v3665, 0.0
      %v3700 = vsel %vm1951, %v3664, 0.0
      %v3701 = vsel %vm1952, %v3663, 0.0
      %v3702 = vsel %vm1953, %v3662, 0.0
      %v3703 = vsel %vm1954, %v3661, 0.0
      %v3704 = vsel %vm1955, %v3660, 0.0
      %v3705 = vsel %vm1956, %v3659, 0.0
      %v3706 = vsel %vm1957, %v3658, 0.0
      %v3707 = vsel %vm1958, %v3657, 0.0
      %v3708 = vsel %vm1959, %v3656, 0.0
      %v3709 = vsel %vm1960, %v3655, 0.0
      %v3710 = vsel %vm1961, %v3654, 0.0
      %v3711 = vsel %vm1962, %v3653, 0.0
      %v3712 = vsel %vm1963, %v3652, 0.0
      %v3713 = vsel %vm1964, %v3651, 0.0
      %v3714 = vsel %vm1965, %v3682, 0.0
      %v3715 = vadd.f32 %v3587, %v3177
      %v3716 = vadd.f32 %v3588, %v3179
      %v3717 = vadd.f32 %v3589, %v3182
      %v3718 = vadd.f32 %v3590, %v3184
      %v3719 = vadd.f32 %v3591, %v3187
      %v3720 = vadd.f32 %v3592, %v3189
      %v3721 = vadd.f32 %v3593, %v3192
      %v3722 = vadd.f32 %v3594, %v3194
      %v3723 = vadd.f32 %v3595, %v3197
      %v3724 = vadd.f32 %v3596, %v3199
      %v3725 = vadd.f32 %v3597, %v3202
      %v3726 = vadd.f32 %v3598, %v3204
      %v3727 = vadd.f32 %v3599, %v3207
      %v3728 = vadd.f32 %v3600, %v3209
      %v3729 = vadd.f32 %v3601, %v3212
      %v3730 = vadd.f32 %v3602, %v3214
      %v3731 = vadd.f32 %v3603, %v3217
      %v3732 = vadd.f32 %v3604, %v3219
      %v3733 = vadd.f32 %v3605, %v3222
      %v3734 = vadd.f32 %v3606, %v3224
      %v3735 = vadd.f32 %v3607, %v3227
      %v3736 = vadd.f32 %v3608, %v3229
      %v3737 = vadd.f32 %v3609, %v3232
      %v3738 = vadd.f32 %v3610, %v3234
      %v3739 = vadd.f32 %v3611, %v3237
      %v3740 = vadd.f32 %v3612, %v3239
      %v3741 = vadd.f32 %v3613, %v3242
      %v3742 = vadd.f32 %v3614, %v3244
      %v3743 = vadd.f32 %v3615, %v3247
      %v3744 = vadd.f32 %v3616, %v3249
      %v3745 = vadd.f32 %v3617, %v3252
      %v3746 = vadd.f32 %v3618, %v3254
      %v3747 = vadd.f32 %v3715, %v3683
      %v3748 = vadd.f32 %v3716, %v3684
      %v3749 = vadd.f32 %v3717, %v3685
      %v3750 = vadd.f32 %v3718, %v3686
      %v3751 = vadd.f32 %v3719, %v3687
      %v3752 = vadd.f32 %v3720, %v3688
      %v3753 = vadd.f32 %v3721, %v3689
      %v3754 = vadd.f32 %v3722, %v3690
      %v3755 = vadd.f32 %v3723, %v3691
      %v3756 = vadd.f32 %v3724, %v3692
      %v3757 = vadd.f32 %v3725, %v3693
      %v3758 = vadd.f32 %v3726, %v3694
      %v3759 = vadd.f32 %v3727, %v3695
      %v3760 = vadd.f32 %v3728, %v3696
      %v3761 = vadd.f32 %v3729, %v3697
      %v3762 = vadd.f32 %v3730, %v3698
      %v3763 = vadd.f32 %v3731, %v3699
      %v3764 = vadd.f32 %v3732, %v3700
      %v3765 = vadd.f32 %v3733, %v3701
      %v3766 = vadd.f32 %v3734, %v3702
      %v3767 = vadd.f32 %v3735, %v3703
      %v3768 = vadd.f32 %v3736, %v3704
      %v3769 = vadd.f32 %v3737, %v3705
      %v3770 = vadd.f32 %v3738, %v3706
      %v3771 = vadd.f32 %v3739, %v3707
      %v3772 = vadd.f32 %v3740, %v3708
      %v3773 = vadd.f32 %v3741, %v3709
      %v3774 = vadd.f32 %v3742, %v3710
      %v3775 = vadd.f32 %v3743, %v3711
      %v3776 = vadd.f32 %v3744, %v3712
      %v3777 = vadd.f32 %v3745, %v3713
      %v3778 = vadd.f32 %v3746, %v3714
      %v3779 = vld [vmem:[%s4] sm:$0x1]
      %v3781 = vperm.slane %v3779, 0
      %v3783 = vadd.f32 %v3747, %v3781
      %v3784 = vadd.f32 %v3748, %v3781
      %v3785 = vadd.f32 %v3749, %v3781
      %v3786 = vadd.f32 %v3750, %v3781
      %v3787 = vadd.f32 %v3751, %v3781
      %v3788 = vadd.f32 %v3752, %v3781
      %v3789 = vadd.f32 %v3753, %v3781
      %v3790 = vadd.f32 %v3754, %v3781
      %v3791 = vadd.f32 %v3755, %v3781
      %v3792 = vadd.f32 %v3756, %v3781
      %v3793 = vadd.f32 %v3757, %v3781
      %v3794 = vadd.f32 %v3758, %v3781
      %v3795 = vadd.f32 %v3759, %v3781
      %v3796 = vadd.f32 %v3760, %v3781
      %v3797 = vadd.f32 %v3761, %v3781
      %v3798 = vadd.f32 %v3762, %v3781
      %v3799 = vadd.f32 %v3763, %v3781
      %v3800 = vadd.f32 %v3764, %v3781
      %v3801 = vadd.f32 %v3765, %v3781
      %v3802 = vadd.f32 %v3766, %v3781
      %v3803 = vadd.f32 %v3767, %v3781
      %v3804 = vadd.f32 %v3768, %v3781
      %v3805 = vadd.f32 %v3769, %v3781
      %v3806 = vadd.f32 %v3770, %v3781
      %v3807 = vadd.f32 %v3771, %v3781
      %v3808 = vadd.f32 %v3772, %v3781
      %v3809 = vadd.f32 %v3773, %v3781
      %v3810 = vadd.f32 %v3774, %v3781
      %v3811 = vadd.f32 %v3775, %v3781
      %v3812 = vadd.f32 %v3776, %v3781
      %v3813 = vadd.f32 %v3777, %v3781
      %v3814 = vadd.f32 %v3778, %v3781
      %v3815 = vadd.f32 %v3783, %v226
      %v3816 = vadd.f32 %v3784, %v227
      %v3817 = vadd.f32 %v3785, %v228
      %v3818 = vadd.f32 %v3786, %v229
      %v3819 = vadd.f32 %v3787, %v230
      %v3820 = vadd.f32 %v3788, %v231
      %v3821 = vadd.f32 %v3789, %v232
      %v3822 = vadd.f32 %v3790, %v233
      %v3823 = vadd.f32 %v3791, %v234
      %v3824 = vadd.f32 %v3792, %v235
      %v3825 = vadd.f32 %v3793, %v236
      %v3826 = vadd.f32 %v3794, %v237
      %v3827 = vadd.f32 %v3795, %v238
      %v3828 = vadd.f32 %v3796, %v239
      %v3829 = vadd.f32 %v3797, %v240
      %v3830 = vadd.f32 %v3798, %v241
      %v3831 = vadd.f32 %v3799, %v242
      %v3832 = vadd.f32 %v3800, %v243
      %v3833 = vadd.f32 %v3801, %v244
      %v3834 = vadd.f32 %v3802, %v245
      %v3835 = vadd.f32 %v3803, %v246
      %v3836 = vadd.f32 %v3804, %v247
      %v3837 = vadd.f32 %v3805, %v248
      %v3838 = vadd.f32 %v3806, %v249
      %v3839 = vadd.f32 %v3807, %v250
      %v3840 = vadd.f32 %v3808, %v251
      %v3841 = vadd.f32 %v3809, %v252
      %v3842 = vadd.f32 %v3810, %v253
      %v3843 = vadd.f32 %v3811, %v254
      %v3844 = vadd.f32 %v3812, %v255
      %v3845 = vadd.f32 %v3813, %v256
      %v3846 = vadd.f32 %v3814, %v257
      %v3847 = vmax.f32 %v3815, 0.0
      %v3848 = vmax.f32 %v3816, 0.0
      %v3849 = vmax.f32 %v3817, 0.0
      %v3850 = vmax.f32 %v3818, 0.0
      %v3851 = vmax.f32 %v3819, 0.0
      %v3852 = vmax.f32 %v3820, 0.0
      %v3853 = vmax.f32 %v3821, 0.0
      %v3854 = vmax.f32 %v3822, 0.0
      %v3855 = vmax.f32 %v3823, 0.0
      %v3856 = vmax.f32 %v3824, 0.0
      %v3857 = vmax.f32 %v3825, 0.0
      %v3858 = vmax.f32 %v3826, 0.0
      %v3859 = vmax.f32 %v3827, 0.0
      %v3860 = vmax.f32 %v3828, 0.0
      %v3861 = vmax.f32 %v3829, 0.0
      %v3862 = vmax.f32 %v3830, 0.0
      %v3863 = vmax.f32 %v3831, 0.0
      %v3864 = vmax.f32 %v3832, 0.0
      %v3865 = vmax.f32 %v3833, 0.0
      %v3866 = vmax.f32 %v3834, 0.0
      %v3867 = vmax.f32 %v3835, 0.0
      %v3868 = vmax.f32 %v3836, 0.0
      %v3869 = vmax.f32 %v3837, 0.0
      %v3870 = vmax.f32 %v3838, 0.0
      %v3871 = vmax.f32 %v3839, 0.0
      %v3872 = vmax.f32 %v3840, 0.0
      %v3873 = vmax.f32 %v3841, 0.0
      %v3874 = vmax.f32 %v3842, 0.0
      %v3875 = vmax.f32 %v3843, 0.0
      %v3876 = vmax.f32 %v3844, 0.0
      %v3877 = vmax.f32 %v3845, 0.0
      %v3878 = vmax.f32 %v3846, 0.0
      %3879 = vst.msk [vmem:[%s224] sm:$0xff] %vm1251, %v3847
      %3880 = vst.msk [vmem:[%s224 + $0x8] sm:$0xff] %vm1251, %v3848
      %3881 = vst.msk [vmem:[%s224 + $0x10] sm:$0xff] %vm1251, %v3849
      %3882 = vst.msk [vmem:[%s224 + $0x18] sm:$0xff] %vm1251, %v3850
      %3883 = vst.msk [vmem:[%s224 + $0x20] sm:$0xff] %vm1251, %v3851
      %3884 = vst.msk [vmem:[%s224 + $0x28] sm:$0xff] %vm1251, %v3852
      %3885 = vst.msk [vmem:[%s224 + $0x30] sm:$0xff] %vm1251, %v3853
      %3886 = vst.msk [vmem:[%s224 + $0x38] sm:$0xff] %vm1251, %v3854
      %3887 = vst.msk [vmem:[%s224 + $0x40] sm:$0xff] %vm1251, %v3855
      %3888 = vst.msk [vmem:[%s224 + $0x48] sm:$0xff] %vm1251, %v3856
      %3889 = vst.msk [vmem:[%s224 + $0x50] sm:$0xff] %vm1251, %v3857
      %3890 = vst.msk [vmem:[%s224 + $0x58] sm:$0xff] %vm1251, %v3858
      %3891 = vst.msk [vmem:[%s224 + $0x60] sm:$0xff] %vm1251, %v3859
      %3892 = vst.msk [vmem:[%s224 + $0x68] sm:$0xff] %vm1251, %v3860
      %3893 = vst.msk [vmem:[%s224 + $0x70] sm:$0xff] %vm1251, %v3861
      %3894 = vst.msk [vmem:[%s224 + $0x78] sm:$0xff] %vm1251, %v3862
      %3895 = vst.msk [vmem:[%s224 + $0x80] sm:$0xff] %vm1251, %v3863
      %3896 = vst.msk [vmem:[%s224 + $0x88] sm:$0xff] %vm1251, %v3864
      %3897 = vst.msk [vmem:[%s224 + $0x90] sm:$0xff] %vm1251, %v3865
      %3898 = vst.msk [vmem:[%s224 + $0x98] sm:$0xff] %vm1251, %v3866
      %3899 = vst.msk [vmem:[%s224 + $0xa0] sm:$0xff] %vm1251, %v3867
      %3900 = vst.msk [vmem:[%s224 + $0xa8] sm:$0xff] %vm1251, %v3868
      %3901 = vst.msk [vmem:[%s224 + $0xb0] sm:$0xff] %vm1251, %v3869
      %3902 = vst.msk [vmem:[%s224 + $0xb8] sm:$0xff] %vm1251, %v3870
      %3903 = vst.msk [vmem:[%s224 + $0xc0] sm:$0xff] %vm1251, %v3871
      %3904 = vst.msk [vmem:[%s224 + $0xc8] sm:$0xff] %vm1251, %v3872
      %3905 = vst.msk [vmem:[%s224 + $0xd0] sm:$0xff] %vm1251, %v3873
      %3906 = vst.msk [vmem:[%s224 + $0xd8] sm:$0xff] %vm1251, %v3874
      %3907 = vst.msk [vmem:[%s224 + $0xe0] sm:$0xff] %vm1251, %v3875
      %3908 = vst.msk [vmem:[%s224 + $0xe8] sm:$0xff] %vm1251, %v3876
      %3909 = vst.msk [vmem:[%s224 + $0xf0] sm:$0xff] %vm1251, %v3877
      %3910 = vst.msk [vmem:[%s224 + $0xf8] sm:$0xff] %vm1251, %v3878
      %p3911 = scmp.lt.s32.totalorder %s16, 1
      %s3912 = scalar_select %p3911, %s16, 1
      %s3913 = smul.addr %s3912, 32
      %s3914 = smul.addr %s3913, 8
      %s3915 = scalar_lea.vmem %s5, %s3914
      // Predicated region
      $region41: #{basic_block_pallas.1} parent=39 // pred_check
        %p3916 = pneg %p144
      $region42: #{basic_block_pallas.1} parent=39 // pred_check_branch
        %3918 = sbr.rel (%p3916) target = $region44
      $region43: #{basic_block_pallas.1} parent=39 // pred_region
        _
      $region44: #{basic_block_pallas.1} parent=39 // pred_fallthru
        _
    $region40: #{basic_block_pallas.1} parent=5 // pred_fallthru
      _
    %p3919 = scmp.le.s32.totalorder 2, %s11
    // Predicated region
    $region45: #{basic_block_pallas.1} parent=5 // pred_check
      %p3920 = pneg %p3919
    $region46: #{basic_block_pallas.1} parent=5 // pred_check_branch
      %3922 = sbr.rel (%p3920) target = $region48
    $region47: #{basic_block_pallas.1} parent=5 // pred_region
      %s3923 = ssub.s32 %s11, 2
      // Predicated region
      $region49: #{basic_block_pallas.1} parent=47 // pred_check
        %p3924 = pneg %p150
      $region50: #{basic_block_pallas.1} parent=47 // pred_check_branch
        %3926 = sbr.rel (%p3924) target = $region52
      $region51: #{basic_block_pallas.1} parent=47 // pred_region
        %p3927 = scmp.lt.s32.totalorder %s17, 1
        %s3928 = scalar_select %p3927, %s17, 1
        %s3929 = smul.addr %s3928, 32
        %s3930 = smul.addr %s3929, 8
        %s3931 = scalar_lea.vmem %s5, %s3930
      $region52: #{basic_block_pallas.1} parent=47 // pred_fallthru
        _
    $region48: #{basic_block_pallas.1} parent=5 // pred_fallthru
      _
  $region6: #{basic_block_pallas.1} parent=0 // loop_footer
    %s15 = sadd.s32 1, %s11
  $region7: #{basic_block_pallas.1} parent=0 // loop_footer_branch
    %10 = sbr.rel target = $region3
  $region8: #{basic_block_pallas.1} parent=0 // loop_exit
    _

</llo_original>
